<compile_context>
chip_gen: v5e
topology: v5e:2x2
jax: 0.10.0
libtpu: 0.0.40
codegen_flags: <defaults>
</compile_context>

<pallas_src>
import functools

import jax
import jax.numpy as jnp
from jax.experimental import pallas as pl
from jax.experimental.pallas import tpu as pltpu


# ----------------------------- Pallas kernel -----------------------------

def _mynet_kernel(tb,
                  x_ref, w1_ref, w2_ref, b1_ref, b2_ref,
                  wf1_ref, bf1_ref, wf2_ref, bf2_ref,
                  out_ref, p1_ref, p2_ref):
    """Fused forward pass for a block of `tb` images (all matmuls batched)."""
    f32 = jnp.float32
    bf16 = jnp.bfloat16
    m8 = tb * 8

    # ---- conv1 (5x5, 1->10): ONE batched MXU matmul -----------------------
    # x_ref: (tb, 32, 140) bf16; dim1 = m*8 + q (conv1 output row = 4q + m),
    # lanes = ki*28 + input column (the 5 row taps are folded into K host-side).
    xin = x_ref[...].reshape(tb * 32, 140)
    a = jnp.dot(xin, w1_ref[...], preferred_element_type=f32)      # (tb*32, 256)
    a4 = a.reshape(tb, 4, 8, 256)                                  # (b, m, q, lane)

    # 2x2 max-pool + bias + ReLU.  Column parity lives in the two 128-lane
    # halves, row parity in consecutive m slices; the per-channel bias commutes
    # with the max, so adding it after the pool is exact.
    bias1 = b1_ref[...]                                            # (1, 128)

    def pool1(lo, hi):
        me = jnp.maximum(lo[..., 0:128], lo[..., 128:256])
        mo = jnp.maximum(hi[..., 0:128], hi[..., 128:256])
        return jnp.maximum(jnp.maximum(me, mo) + bias1, 0.0)

    p1e = pool1(a4[:, 0], a4[:, 1])        # (tb, 8, 128): pooled1 rows 0,2,...,10
    p1o = pool1(a4[:, 2], a4[:, 3])        # (tb, 8, 128): pooled1 rows 1,3,...,11

    # Stage pooled1 in VMEM so conv2's row taps become sublane-offset window
    # reads of one flat (tb*8, 256) buffer (even rows in lanes 0:128, odd rows
    # in 128:256); the zero tail keeps the offset reads in bounds.
    p1_ref[0:m8, 0:128] = p1e.reshape(m8, 128)
    p1_ref[0:m8, 128:256] = p1o.reshape(m8, 128)
    p1_ref[m8:m8 + 8, :] = jnp.zeros((8, 256), f32)

    # ---- conv2 (5x5, 10->20): 6 batched matmuls, K = 256 ------------------
    # TODO(synk): Dropout2d(p=0.5) after conv2 is identity in eval/inference
    # mode; training-mode stochastic channel dropout is not applied here.
    lhs = [p1_ref[pl.ds(d, m8), :].astype(bf16) for d in range(3)]
    c0 = (jnp.dot(lhs[0], w2_ref[0], preferred_element_type=f32) +
          jnp.dot(lhs[1], w2_ref[1], preferred_element_type=f32) +
          jnp.dot(lhs[2], w2_ref[2], preferred_element_type=f32))   # conv2 rows 2s
    c1 = (jnp.dot(lhs[0], w2_ref[3], preferred_element_type=f32) +
          jnp.dot(lhs[1], w2_ref[4], preferred_element_type=f32) +
          jnp.dot(lhs[2], w2_ref[5], preferred_element_type=f32))   # conv2 rows 2s+1
    cm = jnp.maximum(c0, c1)
    p2 = jnp.maximum(jnp.maximum(cm[:, 0:128], cm[:, 128:256]) + b2_ref[...], 0.0)
    p2_ref[...] = p2                        # (tb*8, 128): row b*8+t = pooled2 row t

    # ---- fc1 (320 -> 50) + ReLU: 4 batched matmuls at M = tb --------------
    z1 = bf1_ref[...]                                              # (1, 50)
    for t in range(4):
        lhs_t = p2_ref[pl.ds(t, tb, 8), :].astype(bf16)            # (tb, 128)
        z1 = z1 + jnp.dot(lhs_t, wf1_ref[t], preferred_element_type=f32)
    h1 = jnp.maximum(z1, 0.0)                                      # (tb, 50)

    # ---- fc2 (50 -> 10) + log_softmax, one block store --------------------
    z2 = jnp.dot(h1, wf2_ref[...], preferred_element_type=f32) + bf2_ref[...]
    z2 = z2 - jnp.max(z2, axis=-1, keepdims=True)
    lse = jnp.log(jnp.sum(jnp.exp(z2), axis=-1, keepdims=True))
    out_ref[...] = z2 - lse


# ------------------- one-time weight preparation (hoisted) -------------------

def prepare_params(params):
    """Precompute banded / permuted / bf16 weight layouts (out of the forward)."""
    w1, b1, w2, b2, wf1, bf1, wf2, bf2 = params
    f32 = jnp.float32
    bf16 = jnp.bfloat16

    # conv1 banded matrices: B1[ki][j_in, u*10 + c] = w1[c, 0, ki, j_in - j_out]
    # (even output columns in lanes [0,120), odd ones in [128,248)).
    w1k = jnp.transpose(w1[:, 0], (1, 2, 0)).astype(f32)          # (ki, kj, cout)
    d1 = jnp.arange(28)[:, None] - jnp.arange(24)[None, :]
    valid1 = (d1 >= 0) & (d1 <= 4)
    taps1 = w1k[:, jnp.clip(d1, 0, 4), :]                         # (5, 28, 24, 10)
    M1 = jnp.where(valid1[None, :, :, None], taps1, 0.0)
    B1e = M1[:, :, 0::2, :].reshape(5, 28, 120)
    B1o = M1[:, :, 1::2, :].reshape(5, 28, 120)
    B1c = (jnp.zeros((5, 28, 256), f32)
           .at[:, :, 0:120].set(B1e)
           .at[:, :, 128:248].set(B1o))
    w1cat = B1c.reshape(140, 256).astype(bf16)      # row taps folded into K

    # conv2 banded matrices over the packed (pooled1 col, cin) lane axis.
    w2k = jnp.transpose(w2, (2, 3, 1, 0)).astype(f32)             # (ki, kj, cin, cout)
    d2 = jnp.arange(12)[:, None] - jnp.arange(8)[None, :]
    valid2 = (d2 >= 0) & (d2 <= 4)
    taps2 = w2k[:, jnp.clip(d2, 0, 4), :, :]                      # (5, 12, 8, 10, 20)
    taps2 = jnp.transpose(taps2, (0, 1, 3, 2, 4))                 # (5, 12, 10, 8, 20)
    M2 = jnp.where(valid2[None, :, None, :, None], taps2, 0.0)
    B2e = M2[:, :, :, 0::2, :].reshape(5, 120, 80)
    B2o = M2[:, :, :, 1::2, :].reshape(5, 120, 80)
    B2c = (jnp.zeros((5, 128, 256), f32)
           .at[:, 0:120, 0:80].set(B2e)
           .at[:, 0:120, 128:208].set(B2o))

    # Pair the row taps so each sublane-offset window d serves two taps at once:
    # w2cat[p*3 + d] = [B2[2d - p] (even pooled1 rows) ; B2[2d + 1 - p] (odd rows)].
    zero = jnp.zeros((128, 256), f32)

    def tap(k):
        return B2c[k] if 0 <= k <= 4 else zero

    w2cat = jnp.stack([jnp.concatenate([tap(2 * d - p), tap(2 * d + 1 - p)], axis=0)
                       for p in range(2) for d in range(3)]).astype(bf16)   # (6,256,256)

    bias1p = jnp.zeros((1, 128), f32).at[0, 0:120].set(jnp.tile(b1, 12))
    bias2p = jnp.zeros((1, 128), f32).at[0, 0:80].set(jnp.tile(b2, 4))

    # fc1 weights permuted from PyTorch (c, h, w) flatten order to the in-kernel
    # (h, w*20 + c) layout, padded to 128 rows per pooled row h.
    wf1p = jnp.transpose(wf1.reshape(50, 20, 4, 4), (2, 3, 1, 0)).reshape(4, 80, 50)
    wf1p = jnp.pad(wf1p, ((0, 0), (0, 48), (0, 0))).astype(bf16)            # (4,128,50)

    return (w1cat, w2cat, bias1p, bias2p, wf1p,
            bf1.reshape(1, 50).astype(f32),
            jnp.transpose(wf2).astype(f32),
            bf2.reshape(1, 10).astype(f32))


# ----------------------------- forward wrapper -----------------------------

def _pick_tile(n):
    n8 = max(8, ((n + 7) // 8) * 8)
    if n8 <= 8:
        tb = 8
    elif n8 <= 64:
        tb = ((n8 // 2 + 7) // 8) * 8      # >= 2 grid steps (v7x has 2 TensorCores)
    else:
        tb = 64
    npad = ((n8 + tb - 1) // tb) * tb
    return tb, npad


def my_network_forward(x, prep):
    """Forward pass of MyNetwork. x: (N, 1, 28, 28) float32 (NCHW)."""
    w1cat, w2cat, bias1p, bias2p, wf1p, bf1r, wf2t, bf2r = prep
    n = x.shape[0]
    tb, npad = _pick_tile(n)

    # Host-side packing (layout only, no compute): fold conv1's 5 row taps into
    # the contraction axis and group output rows by (row mod 4).
    # Result: (npad, 32, 140) bf16 with dim1 = m*8 + q and lanes = ki*28 + col.
    xs = x[:, 0, :, :].astype(jnp.float32)                        # (n, 28, 28)
    xs = jnp.pad(xs, ((0, npad - n), (0, 11), (0, 0)))            # (npad, 39, 28)
    planes = []
    for m in range(4):
        chunks = [xs[:, m + ki:m + ki + 32:4, :] for ki in range(5)]
        planes.append(jnp.concatenate(chunks, axis=-1))           # (npad, 8, 140)
    xpk = jnp.stack(planes, axis=1).reshape(npad, 32, 140).astype(jnp.bfloat16)

    def fixed(shape):
        return pl.BlockSpec(shape, lambda i, _s=shape: (0,) * len(_s))

    out = pl.pallas_call(
        functools.partial(_mynet_kernel, tb),
        out_shape=jax.ShapeDtypeStruct((npad, 10), jnp.float32),
        grid=(npad // tb,),
        in_specs=[pl.BlockSpec((tb, 32, 140), lambda i: (i, 0, 0)),
                  fixed((140, 256)), fixed((6, 256, 256)),
                  fixed((1, 128)), fixed((1, 128)),
                  fixed((4, 128, 50)), fixed((1, 50)),
                  fixed((50, 10)), fixed((1, 10))],
        out_specs=pl.BlockSpec((tb, 10), lambda i: (i, 0)),
        scratch_shapes=[pltpu.VMEM((tb * 8 + 8, 256), jnp.float32),
                        pltpu.VMEM((tb * 8, 128), jnp.float32)],
        compiler_params=pltpu.CompilerParams(
            dimension_semantics=("parallel",),
            vmem_limit_bytes=32 * 1024 * 1024),
    )(xpk, w1cat, w2cat, bias1p, bias2p, wf1p, bf1r, wf2t, bf2r)
    return out[:n]


# ---------------- pure-JAX reference (for self-check) ----------------

def _reference_forward(x, params):
    w1, b1, w2, b2, wf1, bf1, wf2, bf2 = params
    dn = ('NCHW', 'OIHW', 'NCHW')
    hp = jax.lax.Precision.HIGHEST
    n = x.shape[0]
    y = jax.lax.conv_general_dilated(x, w1, (1, 1), 'VALID',
                                     dimension_numbers=dn, precision=hp)
    y = y + b1[None, :, None, None]
    y = jnp.maximum(y.reshape(n, 10, 12, 2, 12, 2).max(axis=(3, 5)), 0.0)
    z = jax.lax.conv_general_dilated(y, w2, (1, 1), 'VALID',
                                     dimension_numbers=dn, precision=hp)
    z = z + b2[None, :, None, None]
    z = jnp.maximum(z.reshape(n, 20, 4, 2, 4, 2).max(axis=(3, 5)), 0.0)
    flat = z.reshape(n, 320)
    h = jnp.maximum(jnp.dot(flat, wf1.T, precision=hp) + bf1, 0.0)
    o = jnp.dot(h, wf2.T, precision=hp) + bf2
    return jax.nn.log_softmax(o, axis=-1)


# ----------------------------- init -----------------------------

def init_params(key):
    """Deterministic PyTorch-default-style init (uniform +-1/sqrt(fan_in))."""
    ks = jax.random.split(key, 8)

    def u(k, shape, fan_in):
        bound = 1.0 / jnp.sqrt(jnp.float32(fan_in))
        return jax.random.uniform(k, shape, jnp.float32, -bound, bound)

    w1 = u(ks[0], (10, 1, 5, 5), 1 * 5 * 5)
    b1 = u(ks[1], (10,), 1 * 5 * 5)
    w2 = u(ks[2], (20, 10, 5, 5), 10 * 5 * 5)
    b2 = u(ks[3], (20,), 10 * 5 * 5)
    wf1 = u(ks[4], (50, 320), 320)
    bf1 = u(ks[5], (50,), 320)
    wf2 = u(ks[6], (10, 50), 50)
    bf2 = u(ks[7], (10,), 50)
    return (w1, b1, w2, b2, wf1, bf1, wf2, bf2)


if __name__ == "__main__":
    key = jax.random.PRNGKey(0)
    k_x, k_p = jax.random.split(key)
    # fc1 expects 320 = 20*4*4 features -> input spatial size must be 28x28.
    x = jax.random.normal(k_x, (2, 1, 28, 28), dtype=jnp.float32)
    params = init_params(k_p)
    prep = prepare_params(params)          # one-time weight layout prep

    fwd = jax.jit(my_network_forward)
    out = jax.block_until_ready(fwd(x, prep))
    assert out.shape == (2, 10), out.shape

    # Self-check against a plain-JAX f32 reference of the PyTorch module
    # (kernel matmul operands are bf16, hence the loose-ish tolerance).
    ref = jax.block_until_ready(jax.jit(_reference_forward)(x, params))
    max_err = float(jnp.max(jnp.abs(out - ref)))
    assert max_err < 1e-1, f"mismatch vs reference: {max_err}"
    # log_softmax rows should exponentiate-sum to 1.
    assert bool(jnp.all(jnp.abs(jnp.sum(jnp.exp(out), axis=-1) - 1.0) < 1e-3))
    print("KERNEL_OK")
</pallas_src>

<mosaic_0001>
module attributes {stable_mosaic.version = 11 : i64} {
  func.func @_mynet_kernel(%arg0: i32, %arg1: memref<8x32x140xbf16, #tpu.memory_space<vmem>>, %arg2: memref<140x256xbf16, #tpu.memory_space<vmem>>, %arg3: memref<6x256x256xbf16, #tpu.memory_space<vmem>>, %arg4: memref<1x128xf32, #tpu.memory_space<vmem>>, %arg5: memref<1x128xf32, #tpu.memory_space<vmem>>, %arg6: memref<4x128x50xbf16, #tpu.memory_space<vmem>>, %arg7: memref<1x50xf32, #tpu.memory_space<vmem>>, %arg8: memref<50x10xf32, #tpu.memory_space<vmem>>, %arg9: memref<1x10xf32, #tpu.memory_space<vmem>>, %arg10: memref<8x10xf32, #tpu.memory_space<vmem>>, %arg11: memref<72x256xf32, #tpu.memory_space<vmem>>, %arg12: memref<64x128xf32, #tpu.memory_space<vmem>>) attributes {dimension_semantics = [#tpu.dimension_semantics<parallel>], iteration_bounds = array<i64: 1>, scalar_prefetch = 0 : i64, scratch_operands = 2 : i64, tpu.core_type = #tpu.core_type<tc>, window_params = [{transform_indices = @transform_0, window_bounds = array<i64: 8, 32, 140>}, {pipeline_mode = #tpu.pipeline_mode<synchronous>, transform_indices = @transform_1, window_bounds = array<i64: 140, 256>}, {pipeline_mode = #tpu.pipeline_mode<synchronous>, transform_indices = @transform_2, window_bounds = array<i64: 6, 256, 256>}, {pipeline_mode = #tpu.pipeline_mode<synchronous>, transform_indices = @transform_3, window_bounds = array<i64: 1, 128>}, {pipeline_mode = #tpu.pipeline_mode<synchronous>, transform_indices = @transform_4, window_bounds = array<i64: 1, 128>}, {pipeline_mode = #tpu.pipeline_mode<synchronous>, transform_indices = @transform_5, window_bounds = array<i64: 4, 128, 50>}, {pipeline_mode = #tpu.pipeline_mode<synchronous>, transform_indices = @transform_6, window_bounds = array<i64: 1, 50>}, {pipeline_mode = #tpu.pipeline_mode<synchronous>, transform_indices = @transform_7, window_bounds = array<i64: 50, 10>}, {pipeline_mode = #tpu.pipeline_mode<synchronous>, transform_indices = @transform_8, window_bounds = array<i64: 1, 10>}, {transform_indices = @transform_9, window_bounds = array<i64: 8, 10>}]} {
    %c0 = arith.constant 0 : index
    %c0_0 = arith.constant 0 : index
    %c0_1 = arith.constant 0 : index
    %0 = vector.load %arg1[%c0, %c0_0, %c0_1] : memref<8x32x140xbf16, #tpu.memory_space<vmem>>, vector<8x32x140xbf16>
    %1 = vector.shape_cast %0 : vector<8x32x140xbf16> to vector<256x140xbf16>
    %c0_2 = arith.constant 0 : index
    %c0_3 = arith.constant 0 : index
    %2 = vector.load %arg2[%c0_2, %c0_3] : memref<140x256xbf16, #tpu.memory_space<vmem>>, vector<140x256xbf16>
    %cst = arith.constant dense<0.000000e+00> : vector<256x256xf32>
    %3 = tpu.matmul %1, %2, %cst {dimension_numbers = #tpu.dot_dimension_numbers<[1], [0], [0], [1], [0, 0, 1, 1], [], []>} : vector<256x140xbf16>, vector<140x256xbf16>, vector<256x256xf32> -> vector<256x256xf32>
    %4 = vector.shape_cast %3 : vector<256x256xf32> to vector<8x4x8x256xf32>
    %c0_4 = arith.constant 0 : index
    %c0_5 = arith.constant 0 : index
    %5 = vector.load %arg4[%c0_4, %c0_5] : memref<1x128xf32, #tpu.memory_space<vmem>>, vector<1x128xf32>
    %6 = vector.extract_strided_slice %4 {offsets = [0, 0, 0, 0], sizes = [8, 1, 8, 256], strides = [1, 1, 1, 1]} : vector<8x4x8x256xf32> to vector<8x1x8x256xf32>
    %7 = vector.shape_cast %6 : vector<8x1x8x256xf32> to vector<8x8x256xf32>
    %8 = vector.extract_strided_slice %4 {offsets = [0, 1, 0, 0], sizes = [8, 1, 8, 256], strides = [1, 1, 1, 1]} : vector<8x4x8x256xf32> to vector<8x1x8x256xf32>
    %9 = vector.shape_cast %8 : vector<8x1x8x256xf32> to vector<8x8x256xf32>
    %10 = vector.extract_strided_slice %7 {offsets = [0, 0, 0], sizes = [8, 8, 128], strides = [1, 1, 1]} : vector<8x8x256xf32> to vector<8x8x128xf32>
    %11 = vector.extract_strided_slice %7 {offsets = [0, 0, 128], sizes = [8, 8, 128], strides = [1, 1, 1]} : vector<8x8x256xf32> to vector<8x8x128xf32>
    %12 = arith.maximumf %10, %11 : vector<8x8x128xf32>
    %13 = vector.extract_strided_slice %9 {offsets = [0, 0, 0], sizes = [8, 8, 128], strides = [1, 1, 1]} : vector<8x8x256xf32> to vector<8x8x128xf32>
    %14 = vector.extract_strided_slice %9 {offsets = [0, 0, 128], sizes = [8, 8, 128], strides = [1, 1, 1]} : vector<8x8x256xf32> to vector<8x8x128xf32>
    %15 = arith.maximumf %13, %14 : vector<8x8x128xf32>
    %16 = arith.maximumf %12, %15 : vector<8x8x128xf32>
    %17 = vector.shape_cast %5 : vector<1x128xf32> to vector<1x1x128xf32>
    %18 = vector.broadcast %17 : vector<1x1x128xf32> to vector<8x8x128xf32>
    %19 = arith.addf %16, %18 : vector<8x8x128xf32>
    %cst_6 = arith.constant 0.000000e+00 : f32
    %20 = vector.broadcast %cst_6 : f32 to vector<8x8x128xf32>
    %21 = arith.maximumf %19, %20 : vector<8x8x128xf32>
    %22 = vector.extract_strided_slice %4 {offsets = [0, 2, 0, 0], sizes = [8, 1, 8, 256], strides = [1, 1, 1, 1]} : vector<8x4x8x256xf32> to vector<8x1x8x256xf32>
    %23 = vector.shape_cast %22 : vector<8x1x8x256xf32> to vector<8x8x256xf32>
    %24 = vector.extract_strided_slice %4 {offsets = [0, 3, 0, 0], sizes = [8, 1, 8, 256], strides = [1, 1, 1, 1]} : vector<8x4x8x256xf32> to vector<8x1x8x256xf32>
    %25 = vector.shape_cast %24 : vector<8x1x8x256xf32> to vector<8x8x256xf32>
    %26 = vector.extract_strided_slice %23 {offsets = [0, 0, 0], sizes = [8, 8, 128], strides = [1, 1, 1]} : vector<8x8x256xf32> to vector<8x8x128xf32>
    %27 = vector.extract_strided_slice %23 {offsets = [0, 0, 128], sizes = [8, 8, 128], strides = [1, 1, 1]} : vector<8x8x256xf32> to vector<8x8x128xf32>
    %28 = arith.maximumf %26, %27 : vector<8x8x128xf32>
    %29 = vector.extract_strided_slice %25 {offsets = [0, 0, 0], sizes = [8, 8, 128], strides = [1, 1, 1]} : vector<8x8x256xf32> to vector<8x8x128xf32>
    %30 = vector.extract_strided_slice %25 {offsets = [0, 0, 128], sizes = [8, 8, 128], strides = [1, 1, 1]} : vector<8x8x256xf32> to vector<8x8x128xf32>
    %31 = arith.maximumf %29, %30 : vector<8x8x128xf32>
    %32 = arith.maximumf %28, %31 : vector<8x8x128xf32>
    %33 = vector.shape_cast %5 : vector<1x128xf32> to vector<1x1x128xf32>
    %34 = vector.broadcast %33 : vector<1x1x128xf32> to vector<8x8x128xf32>
    %35 = arith.addf %32, %34 : vector<8x8x128xf32>
    %cst_7 = arith.constant 0.000000e+00 : f32
    %36 = vector.broadcast %cst_7 : f32 to vector<8x8x128xf32>
    %37 = arith.maximumf %35, %36 : vector<8x8x128xf32>
    %38 = vector.shape_cast %21 : vector<8x8x128xf32> to vector<64x128xf32>
    %c0_8 = arith.constant 0 : index
    %c0_9 = arith.constant 0 : index
    %39 = vector.load %arg11[%c0_8, %c0_9] : memref<72x256xf32, #tpu.memory_space<vmem>>, vector<64x128xf32>
    tpu.vector_store %arg11[%c0_8, %c0_9], %38 {strides = array<i32>} : memref<72x256xf32, #tpu.memory_space<vmem>>, vector<64x128xf32>,
    %40 = vector.shape_cast %37 : vector<8x8x128xf32> to vector<64x128xf32>
    %c0_10 = arith.constant 0 : index
    %c128 = arith.constant 128 : index
    %41 = vector.load %arg11[%c0_10, %c128] : memref<72x256xf32, #tpu.memory_space<vmem>>, vector<64x128xf32>
    tpu.vector_store %arg11[%c0_10, %c128], %40 {strides = array<i32>} : memref<72x256xf32, #tpu.memory_space<vmem>>, vector<64x128xf32>,
    %cst_11 = arith.constant 0.000000e+00 : f32
    %42 = vector.broadcast %cst_11 : f32 to vector<8x256xf32>
    %c64 = arith.constant 64 : index
    %c0_12 = arith.constant 0 : index
    %43 = vector.load %arg11[%c64, %c0_12] : memref<72x256xf32, #tpu.memory_space<vmem>>, vector<8x256xf32>
    tpu.vector_store %arg11[%c64, %c0_12], %42 {strides = array<i32>} : memref<72x256xf32, #tpu.memory_space<vmem>>, vector<8x256xf32>,
    %c0_13 = arith.constant 0 : index
    %c0_14 = arith.constant 0 : index
    %44 = vector.load %arg11[%c0_13, %c0_14] : memref<72x256xf32, #tpu.memory_space<vmem>>, vector<64x256xf32>
    %45 = arith.truncf %44 : vector<64x256xf32> to vector<64x256xbf16>
    %c1 = arith.constant 1 : index
    %c0_15 = arith.constant 0 : index
    %46 = vector.load %arg11[%c1, %c0_15] : memref<72x256xf32, #tpu.memory_space<vmem>>, vector<64x256xf32>
    %47 = arith.truncf %46 : vector<64x256xf32> to vector<64x256xbf16>
    %c2 = arith.constant 2 : index
    %c0_16 = arith.constant 0 : index
    %48 = vector.load %arg11[%c2, %c0_16] : memref<72x256xf32, #tpu.memory_space<vmem>>, vector<64x256xf32>
    %49 = arith.truncf %48 : vector<64x256xf32> to vector<64x256xbf16>
    %c0_17 = arith.constant 0 : index
    %c0_18 = arith.constant 0 : index
    %c0_19 = arith.constant 0 : index
    %50 = vector.load %arg3[%c0_17, %c0_18, %c0_19] : memref<6x256x256xbf16, #tpu.memory_space<vmem>>, vector<1x256x256xbf16>
    %51 = vector.shape_cast %50 : vector<1x256x256xbf16> to vector<256x256xbf16>
    %cst_20 = arith.constant dense<0.000000e+00> : vector<64x256xf32>
    %52 = tpu.matmul %45, %51, %cst_20 {dimension_numbers = #tpu.dot_dimension_numbers<[1], [0], [0], [1], [0, 0, 1, 1], [], []>} : vector<64x256xbf16>, vector<256x256xbf16>, vector<64x256xf32> -> vector<64x256xf32>
    %c1_21 = arith.constant 1 : index
    %c0_22 = arith.constant 0 : index
    %c0_23 = arith.constant 0 : index
    %53 = vector.load %arg3[%c1_21, %c0_22, %c0_23] : memref<6x256x256xbf16, #tpu.memory_space<vmem>>, vector<1x256x256xbf16>
    %54 = vector.shape_cast %53 : vector<1x256x256xbf16> to vector<256x256xbf16>
    %cst_24 = arith.constant dense<0.000000e+00> : vector<64x256xf32>
    %55 = tpu.matmul %47, %54, %cst_24 {dimension_numbers = #tpu.dot_dimension_numbers<[1], [0], [0], [1], [0, 0, 1, 1], [], []>} : vector<64x256xbf16>, vector<256x256xbf16>, vector<64x256xf32> -> vector<64x256xf32>
    %56 = arith.addf %52, %55 : vector<64x256xf32>
    %c2_25 = arith.constant 2 : index
    %c0_26 = arith.constant 0 : index
    %c0_27 = arith.constant 0 : index
    %57 = vector.load %arg3[%c2_25, %c0_26, %c0_27] : memref<6x256x256xbf16, #tpu.memory_space<vmem>>, vector<1x256x256xbf16>
    %58 = vector.shape_cast %57 : vector<1x256x256xbf16> to vector<256x256xbf16>
    %cst_28 = arith.constant dense<0.000000e+00> : vector<64x256xf32>
    %59 = tpu.matmul %49, %58, %cst_28 {dimension_numbers = #tpu.dot_dimension_numbers<[1], [0], [0], [1], [0, 0, 1, 1], [], []>} : vector<64x256xbf16>, vector<256x256xbf16>, vector<64x256xf32> -> vector<64x256xf32>
    %60 = arith.addf %56, %59 : vector<64x256xf32>
    %c3 = arith.constant 3 : index
    %c0_29 = arith.constant 0 : index
    %c0_30 = arith.constant 0 : index
    %61 = vector.load %arg3[%c3, %c0_29, %c0_30] : memref<6x256x256xbf16, #tpu.memory_space<vmem>>, vector<1x256x256xbf16>
    %62 = vector.shape_cast %61 : vector<1x256x256xbf16> to vector<256x256xbf16>
    %cst_31 = arith.constant dense<0.000000e+00> : vector<64x256xf32>
    %63 = tpu.matmul %45, %62, %cst_31 {dimension_numbers = #tpu.dot_dimension_numbers<[1], [0], [0], [1], [0, 0, 1, 1], [], []>} : vector<64x256xbf16>, vector<256x256xbf16>, vector<64x256xf32> -> vector<64x256xf32>
    %c4 = arith.constant 4 : index
    %c0_32 = arith.constant 0 : index
    %c0_33 = arith.constant 0 : index
    %64 = vector.load %arg3[%c4, %c0_32, %c0_33] : memref<6x256x256xbf16, #tpu.memory_space<vmem>>, vector<1x256x256xbf16>
    %65 = vector.shape_cast %64 : vector<1x256x256xbf16> to vector<256x256xbf16>
    %cst_34 = arith.constant dense<0.000000e+00> : vector<64x256xf32>
    %66 = tpu.matmul %47, %65, %cst_34 {dimension_numbers = #tpu.dot_dimension_numbers<[1], [0], [0], [1], [0, 0, 1, 1], [], []>} : vector<64x256xbf16>, vector<256x256xbf16>, vector<64x256xf32> -> vector<64x256xf32>
    %67 = arith.addf %63, %66 : vector<64x256xf32>
    %c5 = arith.constant 5 : index
    %c0_35 = arith.constant 0 : index
    %c0_36 = arith.constant 0 : index
    %68 = vector.load %arg3[%c5, %c0_35, %c0_36] : memref<6x256x256xbf16, #tpu.memory_space<vmem>>, vector<1x256x256xbf16>
    %69 = vector.shape_cast %68 : vector<1x256x256xbf16> to vector<256x256xbf16>
    %cst_37 = arith.constant dense<0.000000e+00> : vector<64x256xf32>
    %70 = tpu.matmul %49, %69, %cst_37 {dimension_numbers = #tpu.dot_dimension_numbers<[1], [0], [0], [1], [0, 0, 1, 1], [], []>} : vector<64x256xbf16>, vector<256x256xbf16>, vector<64x256xf32> -> vector<64x256xf32>
    %71 = arith.addf %67, %70 : vector<64x256xf32>
    %72 = arith.maximumf %60, %71 : vector<64x256xf32>
    %73 = vector.extract_strided_slice %72 {offsets = [0, 0], sizes = [64, 128], strides = [1, 1]} : vector<64x256xf32> to vector<64x128xf32>
    %74 = vector.extract_strided_slice %72 {offsets = [0, 128], sizes = [64, 128], strides = [1, 1]} : vector<64x256xf32> to vector<64x128xf32>
    %75 = arith.maximumf %73, %74 : vector<64x128xf32>
    %c0_38 = arith.constant 0 : index
    %c0_39 = arith.constant 0 : index
    %76 = vector.load %arg5[%c0_38, %c0_39] : memref<1x128xf32, #tpu.memory_space<vmem>>, vector<1x128xf32>
    %77 = vector.broadcast %76 : vector<1x128xf32> to vector<64x128xf32>
    %78 = arith.addf %75, %77 : vector<64x128xf32>
    %cst_40 = arith.constant 0.000000e+00 : f32
    %79 = vector.broadcast %cst_40 : f32 to vector<64x128xf32>
    %80 = arith.maximumf %78, %79 : vector<64x128xf32>
    %c0_41 = arith.constant 0 : index
    %c0_42 = arith.constant 0 : index
    %81 = vector.load %arg12[%c0_41, %c0_42] : memref<64x128xf32, #tpu.memory_space<vmem>>, vector<64x128xf32>
    tpu.vector_store %arg12[%c0_41, %c0_42], %80 {strides = array<i32>} : memref<64x128xf32, #tpu.memory_space<vmem>>, vector<64x128xf32>,
    %c0_43 = arith.constant 0 : index
    %c0_44 = arith.constant 0 : index
    %82 = vector.load %arg7[%c0_43, %c0_44] : memref<1x50xf32, #tpu.memory_space<vmem>>, vector<1x50xf32>
    %c0_45 = arith.constant 0 : index
    %c0_46 = arith.constant 0 : index
    %83 = tpu.strided_load %arg12[%c0_45, %c0_46] {strides = array<i32: 8, 1>} : memref<64x128xf32, #tpu.memory_space<vmem>>, vector<8x128xf32>
    %84 = arith.truncf %83 : vector<8x128xf32> to vector<8x128xbf16>
    %c0_47 = arith.constant 0 : index
    %c0_48 = arith.constant 0 : index
    %c0_49 = arith.constant 0 : index
    %85 = vector.load %arg6[%c0_47, %c0_48, %c0_49] : memref<4x128x50xbf16, #tpu.memory_space<vmem>>, vector<1x128x50xbf16>
    %86 = vector.shape_cast %85 : vector<1x128x50xbf16> to vector<128x50xbf16>
    %cst_50 = arith.constant dense<0.000000e+00> : vector<8x50xf32>
    %87 = tpu.matmul %84, %86, %cst_50 {dimension_numbers = #tpu.dot_dimension_numbers<[1], [0], [0], [1], [0, 0, 1, 1], [], []>} : vector<8x128xbf16>, vector<128x50xbf16>, vector<8x50xf32> -> vector<8x50xf32>
    %88 = vector.broadcast %82 : vector<1x50xf32> to vector<8x50xf32>
    %89 = arith.addf %88, %87 : vector<8x50xf32>
    %c1_51 = arith.constant 1 : index
    %c0_52 = arith.constant 0 : index
    %90 = tpu.strided_load %arg12[%c1_51, %c0_52] {strides = array<i32: 8, 1>} : memref<64x128xf32, #tpu.memory_space<vmem>>, vector<8x128xf32>
    %91 = arith.truncf %90 : vector<8x128xf32> to vector<8x128xbf16>
    %c1_53 = arith.constant 1 : index
    %c0_54 = arith.constant 0 : index
    %c0_55 = arith.constant 0 : index
    %92 = vector.load %arg6[%c1_53, %c0_54, %c0_55] : memref<4x128x50xbf16, #tpu.memory_space<vmem>>, vector<1x128x50xbf16>
    %93 = vector.shape_cast %92 : vector<1x128x50xbf16> to vector<128x50xbf16>
    %cst_56 = arith.constant dense<0.000000e+00> : vector<8x50xf32>
    %94 = tpu.matmul %91, %93, %cst_56 {dimension_numbers = #tpu.dot_dimension_numbers<[1], [0], [0], [1], [0, 0, 1, 1], [], []>} : vector<8x128xbf16>, vector<128x50xbf16>, vector<8x50xf32> -> vector<8x50xf32>
    %95 = arith.addf %89, %94 : vector<8x50xf32>
    %c2_57 = arith.constant 2 : index
    %c0_58 = arith.constant 0 : index
    %96 = tpu.strided_load %arg12[%c2_57, %c0_58] {strides = array<i32: 8, 1>} : memref<64x128xf32, #tpu.memory_space<vmem>>, vector<8x128xf32>
    %97 = arith.truncf %96 : vector<8x128xf32> to vector<8x128xbf16>
    %c2_59 = arith.constant 2 : index
    %c0_60 = arith.constant 0 : index
    %c0_61 = arith.constant 0 : index
    %98 = vector.load %arg6[%c2_59, %c0_60, %c0_61] : memref<4x128x50xbf16, #tpu.memory_space<vmem>>, vector<1x128x50xbf16>
    %99 = vector.shape_cast %98 : vector<1x128x50xbf16> to vector<128x50xbf16>
    %cst_62 = arith.constant dense<0.000000e+00> : vector<8x50xf32>
    %100 = tpu.matmul %97, %99, %cst_62 {dimension_numbers = #tpu.dot_dimension_numbers<[1], [0], [0], [1], [0, 0, 1, 1], [], []>} : vector<8x128xbf16>, vector<128x50xbf16>, vector<8x50xf32> -> vector<8x50xf32>
    %101 = arith.addf %95, %100 : vector<8x50xf32>
    %c3_63 = arith.constant 3 : index
    %c0_64 = arith.constant 0 : index
    %102 = tpu.strided_load %arg12[%c3_63, %c0_64] {strides = array<i32: 8, 1>} : memref<64x128xf32, #tpu.memory_space<vmem>>, vector<8x128xf32>
    %103 = arith.truncf %102 : vector<8x128xf32> to vector<8x128xbf16>
    %c3_65 = arith.constant 3 : index
    %c0_66 = arith.constant 0 : index
    %c0_67 = arith.constant 0 : index
    %104 = vector.load %arg6[%c3_65, %c0_66, %c0_67] : memref<4x128x50xbf16, #tpu.memory_space<vmem>>, vector<1x128x50xbf16>
    %105 = vector.shape_cast %104 : vector<1x128x50xbf16> to vector<128x50xbf16>
    %cst_68 = arith.constant dense<0.000000e+00> : vector<8x50xf32>
    %106 = tpu.matmul %103, %105, %cst_68 {dimension_numbers = #tpu.dot_dimension_numbers<[1], [0], [0], [1], [0, 0, 1, 1], [], []>} : vector<8x128xbf16>, vector<128x50xbf16>, vector<8x50xf32> -> vector<8x50xf32>
    %107 = arith.addf %101, %106 : vector<8x50xf32>
    %cst_69 = arith.constant 0.000000e+00 : f32
    %108 = vector.broadcast %cst_69 : f32 to vector<8x50xf32>
    %109 = arith.maximumf %107, %108 : vector<8x50xf32>
    %c0_70 = arith.constant 0 : index
    %c0_71 = arith.constant 0 : index
    %110 = vector.load %arg8[%c0_70, %c0_71] : memref<50x10xf32, #tpu.memory_space<vmem>>, vector<50x10xf32>
    %cst_72 = arith.constant dense<0.000000e+00> : vector<8x10xf32>
    %111 = tpu.matmul %109, %110, %cst_72 {dimension_numbers = #tpu.dot_dimension_numbers<[1], [0], [0], [1], [0, 0, 1, 1], [], []>} : vector<8x50xf32>, vector<50x10xf32>, vector<8x10xf32> -> vector<8x10xf32>
    %c0_73 = arith.constant 0 : index
    %c0_74 = arith.constant 0 : index
    %112 = vector.load %arg9[%c0_73, %c0_74] : memref<1x10xf32, #tpu.memory_space<vmem>>, vector<1x10xf32>
    %113 = vector.broadcast %112 : vector<1x10xf32> to vector<8x10xf32>
    %114 = arith.addf %111, %113 : vector<8x10xf32>
    %cst_75 = arith.constant dense<0xFF800000> : vector<8xf32>
    %115 = vector.multi_reduction <maximumf>, %114, %cst_75 [1] : vector<8x10xf32> to vector<8xf32>
    %116 = vector.shape_cast %115 : vector<8xf32> to vector<8x1xf32>
    %117 = vector.broadcast %116 : vector<8x1xf32> to vector<8x10xf32>
    %118 = arith.subf %114, %117 : vector<8x10xf32>
    %119 = math.exp %118 : vector<8x10xf32>
    %cst_76 = arith.constant dense<0.000000e+00> : vector<8xf32>
    %120 = vector.multi_reduction <add>, %119, %cst_76 [1] : vector<8x10xf32> to vector<8xf32>
    %121 = vector.shape_cast %120 : vector<8xf32> to vector<8x1xf32>
    %122 = math.log %121 : vector<8x1xf32>
    %123 = vector.broadcast %122 : vector<8x1xf32> to vector<8x10xf32>
    %124 = arith.subf %118, %123 : vector<8x10xf32>
    %c0_77 = arith.constant 0 : index
    %c0_78 = arith.constant 0 : index
    %125 = vector.load %arg10[%c0_77, %c0_78] : memref<8x10xf32, #tpu.memory_space<vmem>>, vector<8x10xf32>
    tpu.vector_store %arg10[%c0_77, %c0_78], %124 {strides = array<i32>} : memref<8x10xf32, #tpu.memory_space<vmem>>, vector<8x10xf32>,
    return
  }
  func.func @transform_0(%arg0: i32) -> (i32, i32, i32) {
    %c0_i32 = arith.constant 0 : i32
    %c0_i32_0 = arith.constant 0 : i32
    %c0_i32_1 = arith.constant 0 : i32
    return %arg0, %c0_i32, %c0_i32_0 : i32, i32, i32
  }
  func.func @transform_1(%arg0: i32) -> (i32, i32) {
    %c0_i32 = arith.constant 0 : i32
    %c0_i32_0 = arith.constant 0 : i32
    %c0_i32_1 = arith.constant 0 : i32
    return %c0_i32, %c0_i32_0 : i32, i32
  }
  func.func @transform_2(%arg0: i32) -> (i32, i32, i32) {
    %c0_i32 = arith.constant 0 : i32
    %c0_i32_0 = arith.constant 0 : i32
    %c0_i32_1 = arith.constant 0 : i32
    %c0_i32_2 = arith.constant 0 : i32
    return %c0_i32, %c0_i32_0, %c0_i32_1 : i32, i32, i32
  }
  func.func @transform_3(%arg0: i32) -> (i32, i32) {
    %c0_i32 = arith.constant 0 : i32
    %c0_i32_0 = arith.constant 0 : i32
    %c0_i32_1 = arith.constant 0 : i32
    return %c0_i32, %c0_i32_0 : i32, i32
  }
  func.func @transform_4(%arg0: i32) -> (i32, i32) {
    %c0_i32 = arith.constant 0 : i32
    %c0_i32_0 = arith.constant 0 : i32
    %c0_i32_1 = arith.constant 0 : i32
    return %c0_i32, %c0_i32_0 : i32, i32
  }
  func.func @transform_5(%arg0: i32) -> (i32, i32, i32) {
    %c0_i32 = arith.constant 0 : i32
    %c0_i32_0 = arith.constant 0 : i32
    %c0_i32_1 = arith.constant 0 : i32
    %c0_i32_2 = arith.constant 0 : i32
    return %c0_i32, %c0_i32_0, %c0_i32_1 : i32, i32, i32
  }
  func.func @transform_6(%arg0: i32) -> (i32, i32) {
    %c0_i32 = arith.constant 0 : i32
    %c0_i32_0 = arith.constant 0 : i32
    %c0_i32_1 = arith.constant 0 : i32
    return %c0_i32, %c0_i32_0 : i32, i32
  }
  func.func @transform_7(%arg0: i32) -> (i32, i32) {
    %c0_i32 = arith.constant 0 : i32
    %c0_i32_0 = arith.constant 0 : i32
    %c0_i32_1 = arith.constant 0 : i32
    return %c0_i32, %c0_i32_0 : i32, i32
  }
  func.func @transform_8(%arg0: i32) -> (i32, i32) {
    %c0_i32 = arith.constant 0 : i32
    %c0_i32_0 = arith.constant 0 : i32
    %c0_i32_1 = arith.constant 0 : i32
    return %c0_i32, %c0_i32_0 : i32, i32
  }
  func.func @transform_9(%arg0: i32) -> (i32, i32) {
    %c0_i32 = arith.constant 0 : i32
    %c0_i32_0 = arith.constant 0 : i32
    return %arg0, %c0_i32 : i32, i32
  }
}

</mosaic_0001>

<llo_original>
// kernel: my_network_forward.1
$region0: #{my_network_forward.1}
  #allocation0 [shape = 'u32[]', space=smem, size = 0x4, offset = 0x4, fixed_abs, tag = 'smem constant byte address 0x4 - core index']
  #allocation1 [shape = 'u32[72,128]{1,0:T(1,128)}', space=vmem, size = 0x9000, scoped, tag = 'internal scratch']
  #allocation2 [shape = 'f32[72,256]{1,0:T(8,128)}', space=vmem, size = 0x12000, scoped, tag = 'scratch operand']
  #allocation3 [shape = 'f32[64,128]{1,0:T(8,128)}', space=vmem, size = 0x8000, scoped, tag = 'scratch operand']
  %s0 = inlined_call_operand.vmem [shape: bf16[8,32,140], index: 0, kind: input, shape index: {}]
  %s1 = inlined_call_operand.vmem [shape: bf16[140,256], index: 1, kind: input, shape index: {}]
  %s2 = inlined_call_operand.vmem [shape: bf16[6,256,256], index: 2, kind: input, shape index: {}]
  %s3 = inlined_call_operand.vmem [shape: f32[1,128], index: 3, kind: input, shape index: {}]
  %s4 = inlined_call_operand.vmem [shape: f32[1,128], index: 4, kind: input, shape index: {}]
  %s5 = inlined_call_operand.vmem [shape: bf16[4,128,50], index: 5, kind: input, shape index: {}]
  %s6 = inlined_call_operand.vmem [shape: f32[1,50], index: 6, kind: input, shape index: {}]
  %s7 = inlined_call_operand.vmem [shape: f32[50,10], index: 7, kind: input, shape index: {}]
  %s8 = inlined_call_operand.vmem [shape: f32[1,10], index: 8, kind: input, shape index: {}]
  %s9 = inlined_call_operand.vmem [shape: f32[8,10], index: 9, kind: output, shape index: {}]
  %s10 = sld [smem:[#allocation0]]
  $region46: #{my_network_forward.1} parent=0
    _
  %s12 = ssub.s32 1, %s10
  %s13 = scalar_select 0, %s12, %s10
  // Predicated region
  $region2: #{my_network_forward.1} parent=0 // pred_check
    _
  $region3: #{my_network_forward.1} parent=0 // pred_check_branch
    %15 = sbr.rel (0) target = $region5
  $region4: #{my_network_forward.1} parent=0 // pred_region
    _
  $region5: #{my_network_forward.1} parent=0 // pred_fallthru
    _
  // Predicated region
  $region6: #{my_network_forward.1} parent=0 // pred_check
    _
  $region7: #{my_network_forward.1} parent=0 // pred_check_branch
    %17 = sbr.rel (0) target = $region9
  $region8: #{my_network_forward.1} parent=0 // pred_region
    _
  $region9: #{my_network_forward.1} parent=0 // pred_fallthru
    _
  // Predicated region
  $region10: #{my_network_forward.1} parent=0 // pred_check
    _
  $region11: #{my_network_forward.1} parent=0 // pred_check_branch
    %19 = sbr.rel (0) target = $region13
  $region12: #{my_network_forward.1} parent=0 // pred_region
    _
  $region13: #{my_network_forward.1} parent=0 // pred_fallthru
    _
  // Predicated region
  $region14: #{my_network_forward.1} parent=0 // pred_check
    _
  $region15: #{my_network_forward.1} parent=0 // pred_check_branch
    %21 = sbr.rel (0) target = $region17
  $region16: #{my_network_forward.1} parent=0 // pred_region
    _
  $region17: #{my_network_forward.1} parent=0 // pred_fallthru
    _
  // Predicated region
  $region18: #{my_network_forward.1} parent=0 // pred_check
    _
  $region19: #{my_network_forward.1} parent=0 // pred_check_branch
    %23 = sbr.rel (0) target = $region21
  $region20: #{my_network_forward.1} parent=0 // pred_region
    _
  $region21: #{my_network_forward.1} parent=0 // pred_fallthru
    _
  // Predicated region
  $region22: #{my_network_forward.1} parent=0 // pred_check
    _
  $region23: #{my_network_forward.1} parent=0 // pred_check_branch
    %25 = sbr.rel (0) target = $region25
  $region24: #{my_network_forward.1} parent=0 // pred_region
    _
  $region25: #{my_network_forward.1} parent=0 // pred_fallthru
    _
  // Predicated region
  $region26: #{my_network_forward.1} parent=0 // pred_check
    _
  $region27: #{my_network_forward.1} parent=0 // pred_check_branch
    %27 = sbr.rel (0) target = $region29
  $region28: #{my_network_forward.1} parent=0 // pred_region
    _
  $region29: #{my_network_forward.1} parent=0 // pred_fallthru
    _
  // Predicated region
  $region30: #{my_network_forward.1} parent=0 // pred_check
    _
  $region31: #{my_network_forward.1} parent=0 // pred_check_branch
    %29 = sbr.rel (0) target = $region33
  $region32: #{my_network_forward.1} parent=0 // pred_region
    _
  $region33: #{my_network_forward.1} parent=0 // pred_fallthru
    _
  // Predicated region
  $region34: #{my_network_forward.1} parent=0 // pred_check
    _
  $region35: #{my_network_forward.1} parent=0 // pred_check_branch
    %31 = sbr.rel (0) target = $region37
  $region36: #{my_network_forward.1} parent=0 // pred_region
    _
  $region37: #{my_network_forward.1} parent=0 // pred_fallthru
    _
  %v33 = vld [vmem:[%s0] sm:$0xff]
  %v34 = vld [vmem:[%s0 + $0x8] sm:$0xff]
  %v35 = vld [vmem:[%s0 + $0x10] sm:$0xff]
  %v36 = vld [vmem:[%s0 + $0x18] sm:$0xff]
  %v37 = vld [vmem:[%s0 + $0x20] sm:$0xff]
  %v38 = vld [vmem:[%s0 + $0x28] sm:$0xff]
  %v39 = vld [vmem:[%s0 + $0x30] sm:$0xff]
  %v40 = vld [vmem:[%s0 + $0x38] sm:$0xff]
  %v41 = vld [vmem:[%s0 + $0x40] sm:$0xff]
  %v42 = vld [vmem:[%s0 + $0x48] sm:$0xff]
  %v43 = vld [vmem:[%s0 + $0x50] sm:$0xff]
  %v44 = vld [vmem:[%s0 + $0x58] sm:$0xff]
  %v45 = vld [vmem:[%s0 + $0x60] sm:$0xff]
  %v46 = vld [vmem:[%s0 + $0x68] sm:$0xff]
  %v47 = vld [vmem:[%s0 + $0x70] sm:$0xff]
  %v48 = vld [vmem:[%s0 + $0x78] sm:$0xff]
  %v49 = vld [vmem:[%s0 + $0x80] sm:$0xff]
  %v50 = vld [vmem:[%s0 + $0x88] sm:$0xff]
  %v51 = vld [vmem:[%s0 + $0x90] sm:$0xff]
  %v52 = vld [vmem:[%s0 + $0x98] sm:$0xff]
  %v53 = vld [vmem:[%s0 + $0xa0] sm:$0xff]
  %v54 = vld [vmem:[%s0 + $0xa8] sm:$0xff]
  %v55 = vld [vmem:[%s0 + $0xb0] sm:$0xff]
  %v56 = vld [vmem:[%s0 + $0xb8] sm:$0xff]
  %v57 = vld [vmem:[%s0 + $0xc0] sm:$0xff]
  %v58 = vld [vmem:[%s0 + $0xc8] sm:$0xff]
  %v59 = vld [vmem:[%s0 + $0xd0] sm:$0xff]
  %v60 = vld [vmem:[%s0 + $0xd8] sm:$0xff]
  %v61 = vld [vmem:[%s0 + $0xe0] sm:$0xff]
  %v62 = vld [vmem:[%s0 + $0xe8] sm:$0xff]
  %v63 = vld [vmem:[%s0 + $0xf0] sm:$0xff]
  %v64 = vld [vmem:[%s0 + $0xf8] sm:$0xff]
  %v65 = vld [vmem:[%s1] sm:$0xff]
  %v66 = vld [vmem:[%s1 + $0x8] sm:$0xff]
  %v67 = vld [vmem:[%s1 + $0x10] sm:$0xff]
  %v68 = vld [vmem:[%s1 + $0x18] sm:$0xff]
  %v69 = vld [vmem:[%s1 + $0x20] sm:$0xff]
  %v70 = vld [vmem:[%s1 + $0x28] sm:$0xff]
  %v71 = vld [vmem:[%s1 + $0x30] sm:$0xff]
  %v72 = vld [vmem:[%s1 + $0x38] sm:$0xff]
  %v73 = vld [vmem:[%s1 + $0x40] sm:$0xff]
  %v74 = vld [vmem:[%s1 + $0x48] sm:$0xff]
  %v75 = vld [vmem:[%s1 + $0x50] sm:$0xff]
  %v76 = vld [vmem:[%s1 + $0x58] sm:$0xff]
  %v77 = vld [vmem:[%s1 + $0x60] sm:$0xff]
  %v78 = vld [vmem:[%s1 + $0x68] sm:$0xff]
  %v79 = vld [vmem:[%s1 + $0x70] sm:$0xff]
  %v80 = vld [vmem:[%s1 + $0x78] sm:$0xff]
  %v81 = vld [vmem:[%s1 + $0x80] sm:$0xff]
  %v82 = vld [vmem:[%s1 + $0x88] sm:$0x33]
  %v115 = vunpack.c.l.b16 %v33
  %v116 = vunpack.c.h.b16 %v33
  %v117 = vunpack.c.l.b16 %v34
  %v118 = vunpack.c.h.b16 %v34
  %v119 = vunpack.c.l.b16 %v35
  %v120 = vunpack.c.h.b16 %v35
  %v121 = vunpack.c.l.b16 %v36
  %v122 = vunpack.c.h.b16 %v36
  %v123 = vunpack.c.l.b16 %v37
  %v124 = vunpack.c.h.b16 %v37
  %v125 = vunpack.c.l.b16 %v38
  %v126 = vunpack.c.h.b16 %v38
  %v127 = vunpack.c.l.b16 %v39
  %v128 = vunpack.c.h.b16 %v39
  %v129 = vunpack.c.l.b16 %v40
  %v130 = vunpack.c.h.b16 %v40
  %v131 = vunpack.c.l.b16 %v41
  %v132 = vunpack.c.h.b16 %v41
  %v133 = vunpack.c.l.b16 %v42
  %v134 = vunpack.c.h.b16 %v42
  %v135 = vunpack.c.l.b16 %v43
  %v136 = vunpack.c.h.b16 %v43
  %v137 = vunpack.c.l.b16 %v44
  %v138 = vunpack.c.h.b16 %v44
  %v139 = vunpack.c.l.b16 %v45
  %v140 = vunpack.c.h.b16 %v45
  %v141 = vunpack.c.l.b16 %v46
  %v142 = vunpack.c.h.b16 %v46
  %v143 = vunpack.c.l.b16 %v47
  %v144 = vunpack.c.h.b16 %v47
  %v145 = vunpack.c.l.b16 %v48
  %v146 = vunpack.c.h.b16 %v48
  %v147 = vunpack.c.l.b16 %v49
  %v148 = vunpack.c.h.b16 %v49
  %v149 = vunpack.c.l.b16 %v50
  %v150 = vunpack.c.h.b16 %v50
  %v151 = vunpack.c.l.b16 %v51
  %v152 = vunpack.c.h.b16 %v51
  %v153 = vunpack.c.l.b16 %v52
  %v154 = vunpack.c.h.b16 %v52
  %v155 = vunpack.c.l.b16 %v53
  %v156 = vunpack.c.h.b16 %v53
  %v157 = vunpack.c.l.b16 %v54
  %v158 = vunpack.c.h.b16 %v54
  %v159 = vunpack.c.l.b16 %v55
  %v160 = vunpack.c.h.b16 %v55
  %v161 = vunpack.c.l.b16 %v56
  %v162 = vunpack.c.h.b16 %v56
  %v163 = vunpack.c.l.b16 %v57
  %v164 = vunpack.c.h.b16 %v57
  %v165 = vunpack.c.l.b16 %v58
  %v166 = vunpack.c.h.b16 %v58
  %v167 = vunpack.c.l.b16 %v59
  %v168 = vunpack.c.h.b16 %v59
  %v169 = vunpack.c.l.b16 %v60
  %v170 = vunpack.c.h.b16 %v60
  %v171 = vunpack.c.l.b16 %v61
  %v172 = vunpack.c.h.b16 %v61
  %v173 = vunpack.c.l.b16 %v62
  %v174 = vunpack.c.h.b16 %v62
  %v175 = vunpack.c.l.b16 %v63
  %v176 = vunpack.c.h.b16 %v63
  %v177 = vunpack.c.l.b16 %v64
  %v178 = vunpack.c.h.b16 %v64
  %v179 = vpack.c.b16 %v117, %v115
  %v180 = vpack.c.b16 %v118, %v116
  %v181 = vpack.c.b16 %v121, %v119
  %v182 = vpack.c.b16 %v122, %v120
  %v183 = vpack.c.b16 %v125, %v123
  %v184 = vpack.c.b16 %v126, %v124
  %v185 = vpack.c.b16 %v129, %v127
  %v186 = vpack.c.b16 %v130, %v128
  %v187 = vpack.c.b16 %v133, %v131
  %v188 = vpack.c.b16 %v134, %v132
  %v189 = vpack.c.b16 %v137, %v135
  %v190 = vpack.c.b16 %v138, %v136
  %v191 = vpack.c.b16 %v141, %v139
  %v192 = vpack.c.b16 %v142, %v140
  %v193 = vpack.c.b16 %v145, %v143
  %v194 = vpack.c.b16 %v146, %v144
  %v195 = vpack.c.b16 %v149, %v147
  %v196 = vpack.c.b16 %v150, %v148
  %v197 = vpack.c.b16 %v153, %v151
  %v198 = vpack.c.b16 %v154, %v152
  %v199 = vpack.c.b16 %v157, %v155
  %v200 = vpack.c.b16 %v158, %v156
  %v201 = vpack.c.b16 %v161, %v159
  %v202 = vpack.c.b16 %v162, %v160
  %v203 = vpack.c.b16 %v165, %v163
  %v204 = vpack.c.b16 %v166, %v164
  %v205 = vpack.c.b16 %v169, %v167
  %v206 = vpack.c.b16 %v170, %v168
  %v207 = vpack.c.b16 %v173, %v171
  %v208 = vpack.c.b16 %v174, %v172
  %v209 = vpack.c.b16 %v177, %v175
  %v210 = vpack.c.b16 %v178, %v176
  %v245 = vunpack.c.l.b16 %v65
  %v246 = vunpack.c.h.b16 %v65
  %v247 = vunpack.c.l.b16 %v66
  %v248 = vunpack.c.h.b16 %v66
  %v249 = vunpack.c.l.b16 %v67
  %v250 = vunpack.c.h.b16 %v67
  %v251 = vunpack.c.l.b16 %v68
  %v252 = vunpack.c.h.b16 %v68
  %v253 = vunpack.c.l.b16 %v69
  %v254 = vunpack.c.h.b16 %v69
  %v255 = vunpack.c.l.b16 %v70
  %v256 = vunpack.c.h.b16 %v70
  %v257 = vunpack.c.l.b16 %v71
  %v258 = vunpack.c.h.b16 %v71
  %v259 = vunpack.c.l.b16 %v72
  %v260 = vunpack.c.h.b16 %v72
  %v261 = vunpack.c.l.b16 %v73
  %v262 = vunpack.c.h.b16 %v73
  %v263 = vunpack.c.l.b16 %v74
  %v264 = vunpack.c.h.b16 %v74
  %v265 = vunpack.c.l.b16 %v75
  %v266 = vunpack.c.h.b16 %v75
  %v267 = vunpack.c.l.b16 %v76
  %v268 = vunpack.c.h.b16 %v76
  %v269 = vunpack.c.l.b16 %v77
  %v270 = vunpack.c.h.b16 %v77
  %v271 = vunpack.c.l.b16 %v78
  %v272 = vunpack.c.h.b16 %v78
  %v273 = vunpack.c.l.b16 %v79
  %v274 = vunpack.c.h.b16 %v79
  %v275 = vunpack.c.l.b16 %v80
  %v276 = vunpack.c.h.b16 %v80
  %v277 = vunpack.c.l.b16 %v81
  %v278 = vunpack.c.h.b16 %v81
  %v279 = vunpack.c.l.b16 %v82
  %v280 = vunpack.c.h.b16 %v82
  %v281 = vpack.c.b16 %v247, %v245
  %v282 = vpack.c.b16 %v248, %v246
  %v283 = vpack.c.b16 %v251, %v249
  %v284 = vpack.c.b16 %v252, %v250
  %v285 = vpack.c.b16 %v255, %v253
  %v286 = vpack.c.b16 %v256, %v254
  %v287 = vpack.c.b16 %v259, %v257
  %v288 = vpack.c.b16 %v260, %v258
  %v289 = vpack.c.b16 %v263, %v261
  %v290 = vpack.c.b16 %v264, %v262
  %v291 = vpack.c.b16 %v267, %v265
  %v292 = vpack.c.b16 %v268, %v266
  %v293 = vpack.c.b16 %v271, %v269
  %v294 = vpack.c.b16 %v272, %v270
  %v295 = vpack.c.b16 %v275, %v273
  %v296 = vpack.c.b16 %v276, %v274
  %v297 = vpack.c.b16 %v279, %v277
  %v298 = vpack.c.b16 %v280, %v278
  %vm315 = vcmask 97280
  %v317 = vsel %vm315, %v180, 0
  %v320 = vsel %vm315, %v182, 0
  %v323 = vsel %vm315, %v184, 0
  %v326 = vsel %vm315, %v186, 0
  %v329 = vsel %vm315, %v188, 0
  %v332 = vsel %vm315, %v190, 0
  %v335 = vsel %vm315, %v192, 0
  %v338 = vsel %vm315, %v194, 0
  %v341 = vsel %vm315, %v196, 0
  %v344 = vsel %vm315, %v198, 0
  %v347 = vsel %vm315, %v200, 0
  %v350 = vsel %vm315, %v202, 0
  %v353 = vsel %vm315, %v204, 0
  %v356 = vsel %vm315, %v206, 0
  %v359 = vsel %vm315, %v208, 0
  %v362 = vsel %vm315, %v210, 0
  %vm364 = vcmask 1045504
  %v366 = vsel %vm364, %v297, 0
  %v369 = vsel %vm364, %v298, 0
  %371 = vmatpush.bf16.msra.mxu0 %v295
  %372 = vmatpush.bf16.msra.mxu0 %v293
  %373 = vmatpush.bf16.msra.mxu0 %v291
  %374 = vmatpush.bf16.msra.mxu0 %v289
  %375 = vmatpush.bf16.msra.mxu0 %v287
  %376 = vmatpush.bf16.msra.mxu0 %v285
  %377 = vmatpush.bf16.msra.mxu0 %v283
  %378 = vmatpush.bf16.msra.mxu0 %v281
  %379 = vmatmul.bf16.gmra.mxu0 %v179
  %v380 = vpop.f32.mrf.mxu0
  %v381 = vadd.f32 0.0, %v380
  %v382 = vpop.f32.mrf.mxu0
  %v383 = vadd.f32 0.0, %v382
  %384 = vmatmul.bf16.gmra.mxu0 %v181
  %v385 = vpop.f32.mrf.mxu0
  %v386 = vadd.f32 0.0, %v385
  %v387 = vpop.f32.mrf.mxu0
  %v388 = vadd.f32 0.0, %v387
  %389 = vmatmul.bf16.gmra.mxu0 %v183
  %v390 = vpop.f32.mrf.mxu0
  %v391 = vadd.f32 0.0, %v390
  %v392 = vpop.f32.mrf.mxu0
  %v393 = vadd.f32 0.0, %v392
  %394 = vmatmul.bf16.gmra.mxu0 %v185
  %v395 = vpop.f32.mrf.mxu0
  %v396 = vadd.f32 0.0, %v395
  %v397 = vpop.f32.mrf.mxu0
  %v398 = vadd.f32 0.0, %v397
  %399 = vmatmul.bf16.gmra.mxu0 %v187
  %v400 = vpop.f32.mrf.mxu0
  %v401 = vadd.f32 0.0, %v400
  %v402 = vpop.f32.mrf.mxu0
  %v403 = vadd.f32 0.0, %v402
  %404 = vmatmul.bf16.gmra.mxu0 %v189
  %v405 = vpop.f32.mrf.mxu0
  %v406 = vadd.f32 0.0, %v405
  %v407 = vpop.f32.mrf.mxu0
  %v408 = vadd.f32 0.0, %v407
  %409 = vmatmul.bf16.gmra.mxu0 %v191
  %v410 = vpop.f32.mrf.mxu0
  %v411 = vadd.f32 0.0, %v410
  %v412 = vpop.f32.mrf.mxu0
  %v413 = vadd.f32 0.0, %v412
  %414 = vmatmul.bf16.gmra.mxu0 %v193
  %v415 = vpop.f32.mrf.mxu0
  %v416 = vadd.f32 0.0, %v415
  %v417 = vpop.f32.mrf.mxu0
  %v418 = vadd.f32 0.0, %v417
  %419 = vmatmul.bf16.gmra.mxu0 %v195
  %v420 = vpop.f32.mrf.mxu0
  %v421 = vadd.f32 0.0, %v420
  %v422 = vpop.f32.mrf.mxu0
  %v423 = vadd.f32 0.0, %v422
  %424 = vmatmul.bf16.gmra.mxu0 %v197
  %v425 = vpop.f32.mrf.mxu0
  %v426 = vadd.f32 0.0, %v425
  %v427 = vpop.f32.mrf.mxu0
  %v428 = vadd.f32 0.0, %v427
  %429 = vmatmul.bf16.gmra.mxu0 %v199
  %v430 = vpop.f32.mrf.mxu0
  %v431 = vadd.f32 0.0, %v430
  %v432 = vpop.f32.mrf.mxu0
  %v433 = vadd.f32 0.0, %v432
  %434 = vmatmul.bf16.gmra.mxu0 %v201
  %v435 = vpop.f32.mrf.mxu0
  %v436 = vadd.f32 0.0, %v435
  %v437 = vpop.f32.mrf.mxu0
  %v438 = vadd.f32 0.0, %v437
  %439 = vmatmul.bf16.gmra.mxu0 %v203
  %v440 = vpop.f32.mrf.mxu0
  %v441 = vadd.f32 0.0, %v440
  %v442 = vpop.f32.mrf.mxu0
  %v443 = vadd.f32 0.0, %v442
  %444 = vmatmul.bf16.gmra.mxu0 %v205
  %v445 = vpop.f32.mrf.mxu0
  %v446 = vadd.f32 0.0, %v445
  %v447 = vpop.f32.mrf.mxu0
  %v448 = vadd.f32 0.0, %v447
  %449 = vmatmul.bf16.gmra.mxu0 %v207
  %v450 = vpop.f32.mrf.mxu0
  %v451 = vadd.f32 0.0, %v450
  %v452 = vpop.f32.mrf.mxu0
  %v453 = vadd.f32 0.0, %v452
  %454 = vmatmul.bf16.gmra.mxu0 %v209
  %v455 = vpop.f32.mrf.mxu0
  %v456 = vadd.f32 0.0, %v455
  %v457 = vpop.f32.mrf.mxu0
  %v458 = vadd.f32 0.0, %v457
  %459 = vdwg.mxu0
  %460 = vmatpush.bf16.msra.mxu0 0
  %461 = vmatpush.bf16.msra.mxu0 0
  %462 = vmatpush.bf16.msra.mxu0 0
  %463 = vmatpush.bf16.msra.mxu0 0
  %464 = vmatpush.bf16.msra.mxu0 0
  %465 = vmatpush.bf16.msra.mxu0 0
  %466 = vmatpush.bf16.msra.mxu0 0
  %467 = vmatpush.bf16.msra.mxu0 %v366
  %468 = vmatmul.bf16.gmra.mxu0 %v317
  %v469 = vpop.f32.mrf.mxu0
  %v470 = vadd.f32 %v381, %v469
  %v471 = vpop.f32.mrf.mxu0
  %v472 = vadd.f32 %v383, %v471
  %473 = vmatmul.bf16.gmra.mxu0 %v320
  %v474 = vpop.f32.mrf.mxu0
  %v475 = vadd.f32 %v386, %v474
  %v476 = vpop.f32.mrf.mxu0
  %v477 = vadd.f32 %v388, %v476
  %478 = vmatmul.bf16.gmra.mxu0 %v323
  %v479 = vpop.f32.mrf.mxu0
  %v480 = vadd.f32 %v391, %v479
  %v481 = vpop.f32.mrf.mxu0
  %v482 = vadd.f32 %v393, %v481
  %483 = vmatmul.bf16.gmra.mxu0 %v326
  %v484 = vpop.f32.mrf.mxu0
  %v485 = vadd.f32 %v396, %v484
  %v486 = vpop.f32.mrf.mxu0
  %v487 = vadd.f32 %v398, %v486
  %488 = vmatmul.bf16.gmra.mxu0 %v329
  %v489 = vpop.f32.mrf.mxu0
  %v490 = vadd.f32 %v401, %v489
  %v491 = vpop.f32.mrf.mxu0
  %v492 = vadd.f32 %v403, %v491
  %493 = vmatmul.bf16.gmra.mxu0 %v332
  %v494 = vpop.f32.mrf.mxu0
  %v495 = vadd.f32 %v406, %v494
  %v496 = vpop.f32.mrf.mxu0
  %v497 = vadd.f32 %v408, %v496
  %498 = vmatmul.bf16.gmra.mxu0 %v335
  %v499 = vpop.f32.mrf.mxu0
  %v500 = vadd.f32 %v411, %v499
  %v501 = vpop.f32.mrf.mxu0
  %v502 = vadd.f32 %v413, %v501
  %503 = vmatmul.bf16.gmra.mxu0 %v338
  %v504 = vpop.f32.mrf.mxu0
  %v505 = vadd.f32 %v416, %v504
  %v506 = vpop.f32.mrf.mxu0
  %v507 = vadd.f32 %v418, %v506
  %508 = vmatmul.bf16.gmra.mxu0 %v341
  %v509 = vpop.f32.mrf.mxu0
  %v510 = vadd.f32 %v421, %v509
  %v511 = vpop.f32.mrf.mxu0
  %v512 = vadd.f32 %v423, %v511
  %513 = vmatmul.bf16.gmra.mxu0 %v344
  %v514 = vpop.f32.mrf.mxu0
  %v515 = vadd.f32 %v426, %v514
  %v516 = vpop.f32.mrf.mxu0
  %v517 = vadd.f32 %v428, %v516
  %518 = vmatmul.bf16.gmra.mxu0 %v347
  %v519 = vpop.f32.mrf.mxu0
  %v520 = vadd.f32 %v431, %v519
  %v521 = vpop.f32.mrf.mxu0
  %v522 = vadd.f32 %v433, %v521
  %523 = vmatmul.bf16.gmra.mxu0 %v350
  %v524 = vpop.f32.mrf.mxu0
  %v525 = vadd.f32 %v436, %v524
  %v526 = vpop.f32.mrf.mxu0
  %v527 = vadd.f32 %v438, %v526
  %528 = vmatmul.bf16.gmra.mxu0 %v353
  %v529 = vpop.f32.mrf.mxu0
  %v530 = vadd.f32 %v441, %v529
  %v531 = vpop.f32.mrf.mxu0
  %v532 = vadd.f32 %v443, %v531
  %533 = vmatmul.bf16.gmra.mxu0 %v356
  %v534 = vpop.f32.mrf.mxu0
  %v535 = vadd.f32 %v446, %v534
  %v536 = vpop.f32.mrf.mxu0
  %v537 = vadd.f32 %v448, %v536
  %538 = vmatmul.bf16.gmra.mxu0 %v359
  %v539 = vpop.f32.mrf.mxu0
  %v540 = vadd.f32 %v451, %v539
  %v541 = vpop.f32.mrf.mxu0
  %v542 = vadd.f32 %v453, %v541
  %543 = vmatmul.bf16.gmra.mxu0 %v362
  %v544 = vpop.f32.mrf.mxu0
  %v545 = vadd.f32 %v456, %v544
  %v546 = vpop.f32.mrf.mxu0
  %v547 = vadd.f32 %v458, %v546
  %548 = vdwg.mxu0
  %549 = vmatpush.bf16.msra.mxu0 %v296
  %550 = vmatpush.bf16.msra.mxu0 %v294
  %551 = vmatpush.bf16.msra.mxu0 %v292
  %552 = vmatpush.bf16.msra.mxu0 %v290
  %553 = vmatpush.bf16.msra.mxu0 %v288
  %554 = vmatpush.bf16.msra.mxu0 %v286
  %555 = vmatpush.bf16.msra.mxu0 %v284
  %556 = vmatpush.bf16.msra.mxu0 %v282
  %557 = vmatmul.bf16.gmra.mxu0 %v179
  %v558 = vpop.f32.mrf.mxu0
  %v559 = vadd.f32 0.0, %v558
  %v560 = vpop.f32.mrf.mxu0
  %v561 = vadd.f32 0.0, %v560
  %562 = vmatmul.bf16.gmra.mxu0 %v181
  %v563 = vpop.f32.mrf.mxu0
  %v564 = vadd.f32 0.0, %v563
  %v565 = vpop.f32.mrf.mxu0
  %v566 = vadd.f32 0.0, %v565
  %567 = vmatmul.bf16.gmra.mxu0 %v183
  %v568 = vpop.f32.mrf.mxu0
  %v569 = vadd.f32 0.0, %v568
  %v570 = vpop.f32.mrf.mxu0
  %v571 = vadd.f32 0.0, %v570
  %572 = vmatmul.bf16.gmra.mxu0 %v185
  %v573 = vpop.f32.mrf.mxu0
  %v574 = vadd.f32 0.0, %v573
  %v575 = vpop.f32.mrf.mxu0
  %v576 = vadd.f32 0.0, %v575
  %577 = vmatmul.bf16.gmra.mxu0 %v187
  %v578 = vpop.f32.mrf.mxu0
  %v579 = vadd.f32 0.0, %v578
  %v580 = vpop.f32.mrf.mxu0
  %v581 = vadd.f32 0.0, %v580
  %582 = vmatmul.bf16.gmra.mxu0 %v189
  %v583 = vpop.f32.mrf.mxu0
  %v584 = vadd.f32 0.0, %v583
  %v585 = vpop.f32.mrf.mxu0
  %v586 = vadd.f32 0.0, %v585
  %587 = vmatmul.bf16.gmra.mxu0 %v191
  %v588 = vpop.f32.mrf.mxu0
  %v589 = vadd.f32 0.0, %v588
  %v590 = vpop.f32.mrf.mxu0
  %v591 = vadd.f32 0.0, %v590
  %592 = vmatmul.bf16.gmra.mxu0 %v193
  %v593 = vpop.f32.mrf.mxu0
  %v594 = vadd.f32 0.0, %v593
  %v595 = vpop.f32.mrf.mxu0
  %v596 = vadd.f32 0.0, %v595
  %597 = vmatmul.bf16.gmra.mxu0 %v195
  %v598 = vpop.f32.mrf.mxu0
  %v599 = vadd.f32 0.0, %v598
  %v600 = vpop.f32.mrf.mxu0
  %v601 = vadd.f32 0.0, %v600
  %602 = vmatmul.bf16.gmra.mxu0 %v197
  %v603 = vpop.f32.mrf.mxu0
  %v604 = vadd.f32 0.0, %v603
  %v605 = vpop.f32.mrf.mxu0
  %v606 = vadd.f32 0.0, %v605
  %607 = vmatmul.bf16.gmra.mxu0 %v199
  %v608 = vpop.f32.mrf.mxu0
  %v609 = vadd.f32 0.0, %v608
  %v610 = vpop.f32.mrf.mxu0
  %v611 = vadd.f32 0.0, %v610
  %612 = vmatmul.bf16.gmra.mxu0 %v201
  %v613 = vpop.f32.mrf.mxu0
  %v614 = vadd.f32 0.0, %v613
  %v615 = vpop.f32.mrf.mxu0
  %v616 = vadd.f32 0.0, %v615
  %617 = vmatmul.bf16.gmra.mxu0 %v203
  %v618 = vpop.f32.mrf.mxu0
  %v619 = vadd.f32 0.0, %v618
  %v620 = vpop.f32.mrf.mxu0
  %v621 = vadd.f32 0.0, %v620
  %622 = vmatmul.bf16.gmra.mxu0 %v205
  %v623 = vpop.f32.mrf.mxu0
  %v624 = vadd.f32 0.0, %v623
  %v625 = vpop.f32.mrf.mxu0
  %v626 = vadd.f32 0.0, %v625
  %627 = vmatmul.bf16.gmra.mxu0 %v207
  %v628 = vpop.f32.mrf.mxu0
  %v629 = vadd.f32 0.0, %v628
  %v630 = vpop.f32.mrf.mxu0
  %v631 = vadd.f32 0.0, %v630
  %632 = vmatmul.bf16.gmra.mxu0 %v209
  %v633 = vpop.f32.mrf.mxu0
  %v634 = vadd.f32 0.0, %v633
  %v635 = vpop.f32.mrf.mxu0
  %v636 = vadd.f32 0.0, %v635
  %637 = vdwg.mxu0
  %638 = vmatpush.bf16.msra.mxu0 0
  %639 = vmatpush.bf16.msra.mxu0 0
  %640 = vmatpush.bf16.msra.mxu0 0
  %641 = vmatpush.bf16.msra.mxu0 0
  %642 = vmatpush.bf16.msra.mxu0 0
  %643 = vmatpush.bf16.msra.mxu0 0
  %644 = vmatpush.bf16.msra.mxu0 0
  %645 = vmatpush.bf16.msra.mxu0 %v369
  %646 = vmatmul.bf16.gmra.mxu0 %v317
  %v647 = vpop.f32.mrf.mxu0
  %v648 = vadd.f32 %v559, %v647
  %v649 = vpop.f32.mrf.mxu0
  %v650 = vadd.f32 %v561, %v649
  %651 = vmatmul.bf16.gmra.mxu0 %v320
  %v652 = vpop.f32.mrf.mxu0
  %v653 = vadd.f32 %v564, %v652
  %v654 = vpop.f32.mrf.mxu0
  %v655 = vadd.f32 %v566, %v654
  %656 = vmatmul.bf16.gmra.mxu0 %v323
  %v657 = vpop.f32.mrf.mxu0
  %v658 = vadd.f32 %v569, %v657
  %v659 = vpop.f32.mrf.mxu0
  %v660 = vadd.f32 %v571, %v659
  %661 = vmatmul.bf16.gmra.mxu0 %v326
  %v662 = vpop.f32.mrf.mxu0
  %v663 = vadd.f32 %v574, %v662
  %v664 = vpop.f32.mrf.mxu0
  %v665 = vadd.f32 %v576, %v664
  %666 = vmatmul.bf16.gmra.mxu0 %v329
  %v667 = vpop.f32.mrf.mxu0
  %v668 = vadd.f32 %v579, %v667
  %v669 = vpop.f32.mrf.mxu0
  %v670 = vadd.f32 %v581, %v669
  %671 = vmatmul.bf16.gmra.mxu0 %v332
  %v672 = vpop.f32.mrf.mxu0
  %v673 = vadd.f32 %v584, %v672
  %v674 = vpop.f32.mrf.mxu0
  %v675 = vadd.f32 %v586, %v674
  %676 = vmatmul.bf16.gmra.mxu0 %v335
  %v677 = vpop.f32.mrf.mxu0
  %v678 = vadd.f32 %v589, %v677
  %v679 = vpop.f32.mrf.mxu0
  %v680 = vadd.f32 %v591, %v679
  %681 = vmatmul.bf16.gmra.mxu0 %v338
  %v682 = vpop.f32.mrf.mxu0
  %v683 = vadd.f32 %v594, %v682
  %v684 = vpop.f32.mrf.mxu0
  %v685 = vadd.f32 %v596, %v684
  %686 = vmatmul.bf16.gmra.mxu0 %v341
  %v687 = vpop.f32.mrf.mxu0
  %v688 = vadd.f32 %v599, %v687
  %v689 = vpop.f32.mrf.mxu0
  %v690 = vadd.f32 %v601, %v689
  %691 = vmatmul.bf16.gmra.mxu0 %v344
  %v692 = vpop.f32.mrf.mxu0
  %v693 = vadd.f32 %v604, %v692
  %v694 = vpop.f32.mrf.mxu0
  %v695 = vadd.f32 %v606, %v694
  %696 = vmatmul.bf16.gmra.mxu0 %v347
  %v697 = vpop.f32.mrf.mxu0
  %v698 = vadd.f32 %v609, %v697
  %v699 = vpop.f32.mrf.mxu0
  %v700 = vadd.f32 %v611, %v699
  %701 = vmatmul.bf16.gmra.mxu0 %v350
  %v702 = vpop.f32.mrf.mxu0
  %v703 = vadd.f32 %v614, %v702
  %v704 = vpop.f32.mrf.mxu0
  %v705 = vadd.f32 %v616, %v704
  %706 = vmatmul.bf16.gmra.mxu0 %v353
  %v707 = vpop.f32.mrf.mxu0
  %v708 = vadd.f32 %v619, %v707
  %v709 = vpop.f32.mrf.mxu0
  %v710 = vadd.f32 %v621, %v709
  %711 = vmatmul.bf16.gmra.mxu0 %v356
  %v712 = vpop.f32.mrf.mxu0
  %v713 = vadd.f32 %v624, %v712
  %v714 = vpop.f32.mrf.mxu0
  %v715 = vadd.f32 %v626, %v714
  %716 = vmatmul.bf16.gmra.mxu0 %v359
  %v717 = vpop.f32.mrf.mxu0
  %v718 = vadd.f32 %v629, %v717
  %v719 = vpop.f32.mrf.mxu0
  %v720 = vadd.f32 %v631, %v719
  %721 = vmatmul.bf16.gmra.mxu0 %v362
  %v722 = vpop.f32.mrf.mxu0
  %v723 = vadd.f32 %v634, %v722
  %v724 = vpop.f32.mrf.mxu0
  %v725 = vadd.f32 %v636, %v724
  %726 = vdwg.mxu0
  %v727 = vld [vmem:[%s3] sm:$0x1]
  %v728 = vmax.f32 %v470, %v648
  %v729 = vmax.f32 %v480, %v658
  %v730 = vmax.f32 %v490, %v668
  %v731 = vmax.f32 %v500, %v678
  %v732 = vmax.f32 %v510, %v688
  %v733 = vmax.f32 %v520, %v698
  %v734 = vmax.f32 %v530, %v708
  %v735 = vmax.f32 %v540, %v718
  %v736 = vmax.f32 %v472, %v650
  %v737 = vmax.f32 %v482, %v660
  %v738 = vmax.f32 %v492, %v670
  %v739 = vmax.f32 %v502, %v680
  %v740 = vmax.f32 %v512, %v690
  %v741 = vmax.f32 %v522, %v700
  %v742 = vmax.f32 %v532, %v710
  %v743 = vmax.f32 %v542, %v720
  %v744 = vmax.f32 %v728, %v736
  %v745 = vmax.f32 %v729, %v737
  %v746 = vmax.f32 %v730, %v738
  %v747 = vmax.f32 %v731, %v739
  %v748 = vmax.f32 %v732, %v740
  %v749 = vmax.f32 %v733, %v741
  %v750 = vmax.f32 %v734, %v742
  %v751 = vmax.f32 %v735, %v743
  %v753 = vperm.slane %v727, 0
  %v755 = vadd.f32 %v744, %v753
  %v756 = vadd.f32 %v745, %v753
  %v757 = vadd.f32 %v746, %v753
  %v758 = vadd.f32 %v747, %v753
  %v759 = vadd.f32 %v748, %v753
  %v760 = vadd.f32 %v749, %v753
  %v761 = vadd.f32 %v750, %v753
  %v762 = vadd.f32 %v751, %v753
  %v763 = vmax.f32 %v755, 0.0
  %v764 = vmax.f32 %v756, 0.0
  %v765 = vmax.f32 %v757, 0.0
  %v766 = vmax.f32 %v758, 0.0
  %v767 = vmax.f32 %v759, 0.0
  %v768 = vmax.f32 %v760, 0.0
  %v769 = vmax.f32 %v761, 0.0
  %v770 = vmax.f32 %v762, 0.0
  %v771 = vmax.f32 %v475, %v653
  %v772 = vmax.f32 %v485, %v663
  %v773 = vmax.f32 %v495, %v673
  %v774 = vmax.f32 %v505, %v683
  %v775 = vmax.f32 %v515, %v693
  %v776 = vmax.f32 %v525, %v703
  %v777 = vmax.f32 %v535, %v713
  %v778 = vmax.f32 %v545, %v723
  %v779 = vmax.f32 %v477, %v655
  %v780 = vmax.f32 %v487, %v665
  %v781 = vmax.f32 %v497, %v675
  %v782 = vmax.f32 %v507, %v685
  %v783 = vmax.f32 %v517, %v695
  %v784 = vmax.f32 %v527, %v705
  %v785 = vmax.f32 %v537, %v715
  %v786 = vmax.f32 %v547, %v725
  %v787 = vmax.f32 %v771, %v779
  %v788 = vmax.f32 %v772, %v780
  %v789 = vmax.f32 %v773, %v781
  %v790 = vmax.f32 %v774, %v782
  %v791 = vmax.f32 %v775, %v783
  %v792 = vmax.f32 %v776, %v784
  %v793 = vmax.f32 %v777, %v785
  %v794 = vmax.f32 %v778, %v786
  %v795 = vadd.f32 %v787, %v753
  %v796 = vadd.f32 %v788, %v753
  %v797 = vadd.f32 %v789, %v753
  %v798 = vadd.f32 %v790, %v753
  %v799 = vadd.f32 %v791, %v753
  %v800 = vadd.f32 %v792, %v753
  %v801 = vadd.f32 %v793, %v753
  %v802 = vadd.f32 %v794, %v753
  %v803 = vmax.f32 %v795, 0.0
  %v804 = vmax.f32 %v796, 0.0
  %v805 = vmax.f32 %v797, 0.0
  %v806 = vmax.f32 %v798, 0.0
  %v807 = vmax.f32 %v799, 0.0
  %v808 = vmax.f32 %v800, 0.0
  %v809 = vmax.f32 %v801, 0.0
  %v810 = vmax.f32 %v802, 0.0
  %811 = vst [vmem:[#allocation2] sm:$0xff] %v763
  %812 = vst [vmem:[#allocation2 + $0x10] sm:$0xff] %v764
  %813 = vst [vmem:[#allocation2 + $0x20] sm:$0xff] %v765
  %814 = vst [vmem:[#allocation2 + $0x30] sm:$0xff] %v766
  %815 = vst [vmem:[#allocation2 + $0x40] sm:$0xff] %v767
  %816 = vst [vmem:[#allocation2 + $0x50] sm:$0xff] %v768
  %817 = vst [vmem:[#allocation2 + $0x60] sm:$0xff] %v769
  %818 = vst [vmem:[#allocation2 + $0x70] sm:$0xff] %v770
  %819 = vst [vmem:[#allocation2 + $0x8] sm:$0xff] %v803
  %820 = vst [vmem:[#allocation2 + $0x18] sm:$0xff] %v804
  %821 = vst [vmem:[#allocation2 + $0x28] sm:$0xff] %v805
  %822 = vst [vmem:[#allocation2 + $0x38] sm:$0xff] %v806
  %823 = vst [vmem:[#allocation2 + $0x48] sm:$0xff] %v807
  %824 = vst [vmem:[#allocation2 + $0x58] sm:$0xff] %v808
  %825 = vst [vmem:[#allocation2 + $0x68] sm:$0xff] %v809
  %826 = vst [vmem:[#allocation2 + $0x78] sm:$0xff] %v810
  %827 = vst [vmem:[#allocation2 + $0x80] sm:$0xff] 0.0
  %828 = vst [vmem:[#allocation2 + $0x88] sm:$0xff] 0.0
  %v829 = vld [vmem:[#allocation2] sm:$0xff]
  %v830 = vld [vmem:[#allocation2 + $0x8] sm:$0xff]
  %v831 = vld [vmem:[#allocation2 + $0x10] sm:$0xff]
  %v832 = vld [vmem:[#allocation2 + $0x18] sm:$0xff]
  %v833 = vld [vmem:[#allocation2 + $0x20] sm:$0xff]
  %v834 = vld [vmem:[#allocation2 + $0x28] sm:$0xff]
  %v835 = vld [vmem:[#allocation2 + $0x30] sm:$0xff]
  %v836 = vld [vmem:[#allocation2 + $0x38] sm:$0xff]
  %v837 = vld [vmem:[#allocation2 + $0x40] sm:$0xff]
  %v838 = vld [vmem:[#allocation2 + $0x48] sm:$0xff]
  %v839 = vld [vmem:[#allocation2 + $0x50] sm:$0xff]
  %v840 = vld [vmem:[#allocation2 + $0x58] sm:$0xff]
  %v841 = vld [vmem:[#allocation2 + $0x60] sm:$0xff]
  %v842 = vld [vmem:[#allocation2 + $0x68] sm:$0xff]
  %v843 = vld [vmem:[#allocation2 + $0x70] sm:$0xff]
  %v844 = vld [vmem:[#allocation2 + $0x78] sm:$0xff]
  %v845 = vpack.c.bf16 %v831, %v829
  %v846 = vpack.c.bf16 %v832, %v830
  %v847 = vpack.c.bf16 %v835, %v833
  %v848 = vpack.c.bf16 %v836, %v834
  %v849 = vpack.c.bf16 %v839, %v837
  %v850 = vpack.c.bf16 %v840, %v838
  %v851 = vpack.c.bf16 %v843, %v841
  %v852 = vpack.c.bf16 %v844, %v842
  %v853 = vld [vmem:[#allocation2] sm:$0xfe]
  %v854 = vld [vmem:[#allocation2 + $0x8] sm:$0xfe]
  %v855 = vld [vmem:[#allocation2 + $0x10] sm:$0xff]
  %v856 = vld [vmem:[#allocation2 + $0x18] sm:$0xff]
  %v857 = vld [vmem:[#allocation2 + $0x20] sm:$0xff]
  %v858 = vld [vmem:[#allocation2 + $0x28] sm:$0xff]
  %v859 = vld [vmem:[#allocation2 + $0x30] sm:$0xff]
  %v860 = vld [vmem:[#allocation2 + $0x38] sm:$0xff]
  %v861 = vld [vmem:[#allocation2 + $0x40] sm:$0xff]
  %v862 = vld [vmem:[#allocation2 + $0x48] sm:$0xff]
  %v863 = vld [vmem:[#allocation2 + $0x50] sm:$0xff]
  %v864 = vld [vmem:[#allocation2 + $0x58] sm:$0xff]
  %v865 = vld [vmem:[#allocation2 + $0x60] sm:$0xff]
  %v866 = vld [vmem:[#allocation2 + $0x68] sm:$0xff]
  %v867 = vld [vmem:[#allocation2 + $0x70] sm:$0xff]
  %v868 = vld [vmem:[#allocation2 + $0x78] sm:$0xff]
  %v869 = vld [vmem:[#allocation2 + $0x80] sm:$0x1]
  %v870 = vld [vmem:[#allocation2 + $0x88] sm:$0x1]
  %v871 = vpack.c.bf16 %v855, %v853
  %v872 = vpack.c.bf16 %v856, %v854
  %v873 = vpack.c.bf16 %v859, %v857
  %v874 = vpack.c.bf16 %v860, %v858
  %v875 = vpack.c.bf16 %v863, %v861
  %v876 = vpack.c.bf16 %v864, %v862
  %v877 = vpack.c.bf16 %v867, %v865
  %v878 = vpack.c.bf16 %v868, %v866
  %v879 = vpack.c.bf16 %v869, %v869
  %v880 = vpack.c.bf16 %v870, %v870
  %v881 = vld [vmem:[#allocation2] sm:$0xfc]
  %v882 = vld [vmem:[#allocation2 + $0x8] sm:$0xfc]
  %v883 = vld [vmem:[#allocation2 + $0x80] sm:$0x3]
  %v884 = vld [vmem:[#allocation2 + $0x88] sm:$0x3]
  %v885 = vpack.c.bf16 %v855, %v881
  %v886 = vpack.c.bf16 %v856, %v882
  %v887 = vpack.c.bf16 %v883, %v883
  %v888 = vpack.c.bf16 %v884, %v884
  %v889 = vld [vmem:[%s2] sm:$0xff]
  %v890 = vld [vmem:[%s2 + $0x8] sm:$0xff]
  %v891 = vld [vmem:[%s2 + $0x10] sm:$0xff]
  %v892 = vld [vmem:[%s2 + $0x18] sm:$0xff]
  %v893 = vld [vmem:[%s2 + $0x20] sm:$0xff]
  %v894 = vld [vmem:[%s2 + $0x28] sm:$0xff]
  %v895 = vld [vmem:[%s2 + $0x30] sm:$0xff]
  %v896 = vld [vmem:[%s2 + $0x38] sm:$0xff]
  %v897 = vld [vmem:[%s2 + $0x40] sm:$0xff]
  %v898 = vld [vmem:[%s2 + $0x48] sm:$0xff]
  %v899 = vld [vmem:[%s2 + $0x50] sm:$0xff]
  %v900 = vld [vmem:[%s2 + $0x58] sm:$0xff]
  %v901 = vld [vmem:[%s2 + $0x60] sm:$0xff]
  %v902 = vld [vmem:[%s2 + $0x68] sm:$0xff]
  %v903 = vld [vmem:[%s2 + $0x70] sm:$0xff]
  %v904 = vld [vmem:[%s2 + $0x78] sm:$0xff]
  %v905 = vld [vmem:[%s2 + $0x80] sm:$0xff]
  %v906 = vld [vmem:[%s2 + $0x88] sm:$0xff]
  %v907 = vld [vmem:[%s2 + $0x90] sm:$0xff]
  %v908 = vld [vmem:[%s2 + $0x98] sm:$0xff]
  %v909 = vld [vmem:[%s2 + $0xa0] sm:$0xff]
  %v910 = vld [vmem:[%s2 + $0xa8] sm:$0xff]
  %v911 = vld [vmem:[%s2 + $0xb0] sm:$0xff]
  %v912 = vld [vmem:[%s2 + $0xb8] sm:$0xff]
  %v913 = vld [vmem:[%s2 + $0xc0] sm:$0xff]
  %v914 = vld [vmem:[%s2 + $0xc8] sm:$0xff]
  %v915 = vld [vmem:[%s2 + $0xd0] sm:$0xff]
  %v916 = vld [vmem:[%s2 + $0xd8] sm:$0xff]
  %v917 = vld [vmem:[%s2 + $0xe0] sm:$0xff]
  %v918 = vld [vmem:[%s2 + $0xe8] sm:$0xff]
  %v919 = vld [vmem:[%s2 + $0xf0] sm:$0xff]
  %v920 = vld [vmem:[%s2 + $0xf8] sm:$0xff]
  %s921 = scalar_lea.vmem %s2, 256
  %v922 = vld [vmem:[%s921] sm:$0xff]
  %v923 = vld [vmem:[%s921 + $0x8] sm:$0xff]
  %v924 = vld [vmem:[%s921 + $0x10] sm:$0xff]
  %v925 = vld [vmem:[%s921 + $0x18] sm:$0xff]
  %v926 = vld [vmem:[%s921 + $0x20] sm:$0xff]
  %v927 = vld [vmem:[%s921 + $0x28] sm:$0xff]
  %v928 = vld [vmem:[%s921 + $0x30] sm:$0xff]
  %v929 = vld [vmem:[%s921 + $0x38] sm:$0xff]
  %v930 = vld [vmem:[%s921 + $0x40] sm:$0xff]
  %v931 = vld [vmem:[%s921 + $0x48] sm:$0xff]
  %v932 = vld [vmem:[%s921 + $0x50] sm:$0xff]
  %v933 = vld [vmem:[%s921 + $0x58] sm:$0xff]
  %v934 = vld [vmem:[%s921 + $0x60] sm:$0xff]
  %v935 = vld [vmem:[%s921 + $0x68] sm:$0xff]
  %v936 = vld [vmem:[%s921 + $0x70] sm:$0xff]
  %v937 = vld [vmem:[%s921 + $0x78] sm:$0xff]
  %v938 = vld [vmem:[%s921 + $0x80] sm:$0xff]
  %v939 = vld [vmem:[%s921 + $0x88] sm:$0xff]
  %v940 = vld [vmem:[%s921 + $0x90] sm:$0xff]
  %v941 = vld [vmem:[%s921 + $0x98] sm:$0xff]
  %v942 = vld [vmem:[%s921 + $0xa0] sm:$0xff]
  %v943 = vld [vmem:[%s921 + $0xa8] sm:$0xff]
  %v944 = vld [vmem:[%s921 + $0xb0] sm:$0xff]
  %v945 = vld [vmem:[%s921 + $0xb8] sm:$0xff]
  %v946 = vld [vmem:[%s921 + $0xc0] sm:$0xff]
  %v947 = vld [vmem:[%s921 + $0xc8] sm:$0xff]
  %v948 = vld [vmem:[%s921 + $0xd0] sm:$0xff]
  %v949 = vld [vmem:[%s921 + $0xd8] sm:$0xff]
  %v950 = vld [vmem:[%s921 + $0xe0] sm:$0xff]
  %v951 = vld [vmem:[%s921 + $0xe8] sm:$0xff]
  %v952 = vld [vmem:[%s921 + $0xf0] sm:$0xff]
  %v953 = vld [vmem:[%s921 + $0xf8] sm:$0xff]
  %vm954 = vsmask.f32 7424
  %v956 = vshrl.u32 %v871, 16
  %v958 = vshll.u32 %v871, 16
  %v960 = vrot.slane %v958, 1
  %v961 = vor.u32 %v956, %v960
  %v963 = vshll.u32 %v873, 16
  %v965 = vrot.slane %v963, 1
  %v966 = vsel %vm954, %v961, %v965
  %v968 = vshrl.u32 %v872, 16
  %v970 = vshll.u32 %v872, 16
  %v972 = vrot.slane %v970, 1
  %v973 = vor.u32 %v968, %v972
  %v975 = vshll.u32 %v874, 16
  %v977 = vrot.slane %v975, 1
  %v978 = vsel %vm954, %v973, %v977
  %v979 = vshrl.u32 %v873, 16
  %v981 = vor.u32 %v979, %v965
  %v983 = vshll.u32 %v875, 16
  %v985 = vrot.slane %v983, 1
  %v986 = vsel %vm954, %v981, %v985
  %v987 = vshrl.u32 %v874, 16
  %v989 = vor.u32 %v987, %v977
  %v991 = vshll.u32 %v876, 16
  %v993 = vrot.slane %v991, 1
  %v994 = vsel %vm954, %v989, %v993
  %v995 = vshrl.u32 %v875, 16
  %v997 = vor.u32 %v995, %v985
  %v999 = vshll.u32 %v877, 16
  %v1001 = vrot.slane %v999, 1
  %v1002 = vsel %vm954, %v997, %v1001
  %v1003 = vshrl.u32 %v876, 16
  %v1005 = vor.u32 %v1003, %v993
  %v1007 = vshll.u32 %v878, 16
  %v1009 = vrot.slane %v1007, 1
  %v1010 = vsel %vm954, %v1005, %v1009
  %v1011 = vshrl.u32 %v877, 16
  %v1013 = vor.u32 %v1011, %v1001
  %v1015 = vshll.u32 %v879, 16
  %v1017 = vrot.slane %v1015, 1
  %v1018 = vsel %vm954, %v1013, %v1017
  %v1019 = vshrl.u32 %v878, 16
  %v1021 = vor.u32 %v1019, %v1009
  %v1023 = vshll.u32 %v880, 16
  %v1025 = vrot.slane %v1023, 1
  %v1026 = vsel %vm954, %v1021, %v1025
  %v1067 = vunpack.c.l.b16 %v922
  %v1068 = vunpack.c.h.b16 %v922
  %v1069 = vunpack.c.l.b16 %v923
  %v1070 = vunpack.c.h.b16 %v923
  %v1071 = vunpack.c.l.b16 %v924
  %v1072 = vunpack.c.h.b16 %v924
  %v1073 = vunpack.c.l.b16 %v925
  %v1074 = vunpack.c.h.b16 %v925
  %v1075 = vunpack.c.l.b16 %v926
  %v1076 = vunpack.c.h.b16 %v926
  %v1077 = vunpack.c.l.b16 %v927
  %v1078 = vunpack.c.h.b16 %v927
  %v1079 = vunpack.c.l.b16 %v928
  %v1080 = vunpack.c.h.b16 %v928
  %v1081 = vunpack.c.l.b16 %v929
  %v1082 = vunpack.c.h.b16 %v929
  %v1083 = vunpack.c.l.b16 %v930
  %v1084 = vunpack.c.h.b16 %v930
  %v1085 = vunpack.c.l.b16 %v931
  %v1086 = vunpack.c.h.b16 %v931
  %v1087 = vunpack.c.l.b16 %v932
  %v1088 = vunpack.c.h.b16 %v932
  %v1089 = vunpack.c.l.b16 %v933
  %v1090 = vunpack.c.h.b16 %v933
  %v1091 = vunpack.c.l.b16 %v934
  %v1092 = vunpack.c.h.b16 %v934
  %v1093 = vunpack.c.l.b16 %v935
  %v1094 = vunpack.c.h.b16 %v935
  %v1095 = vunpack.c.l.b16 %v936
  %v1096 = vunpack.c.h.b16 %v936
  %v1097 = vunpack.c.l.b16 %v937
  %v1098 = vunpack.c.h.b16 %v937
  %v1099 = vunpack.c.l.b16 %v938
  %v1100 = vunpack.c.h.b16 %v938
  %v1101 = vunpack.c.l.b16 %v939
  %v1102 = vunpack.c.h.b16 %v939
  %v1103 = vunpack.c.l.b16 %v940
  %v1104 = vunpack.c.h.b16 %v940
  %v1105 = vunpack.c.l.b16 %v941
  %v1106 = vunpack.c.h.b16 %v941
  %v1107 = vunpack.c.l.b16 %v942
  %v1108 = vunpack.c.h.b16 %v942
  %v1109 = vunpack.c.l.b16 %v943
  %v1110 = vunpack.c.h.b16 %v943
  %v1111 = vunpack.c.l.b16 %v944
  %v1112 = vunpack.c.h.b16 %v944
  %v1113 = vunpack.c.l.b16 %v945
  %v1114 = vunpack.c.h.b16 %v945
  %v1115 = vunpack.c.l.b16 %v946
  %v1116 = vunpack.c.h.b16 %v946
  %v1117 = vunpack.c.l.b16 %v947
  %v1118 = vunpack.c.h.b16 %v947
  %v1119 = vunpack.c.l.b16 %v948
  %v1120 = vunpack.c.h.b16 %v948
  %v1121 = vunpack.c.l.b16 %v949
  %v1122 = vunpack.c.h.b16 %v949
  %v1123 = vunpack.c.l.b16 %v950
  %v1124 = vunpack.c.h.b16 %v950
  %v1125 = vunpack.c.l.b16 %v951
  %v1126 = vunpack.c.h.b16 %v951
  %v1127 = vunpack.c.l.b16 %v952
  %v1128 = vunpack.c.h.b16 %v952
  %v1129 = vunpack.c.l.b16 %v953
  %v1130 = vunpack.c.h.b16 %v953
  %v1131 = vpack.c.b16 %v1069, %v1067
  %v1132 = vpack.c.b16 %v1070, %v1068
  %v1133 = vpack.c.b16 %v1073, %v1071
  %v1134 = vpack.c.b16 %v1074, %v1072
  %v1135 = vpack.c.b16 %v1077, %v1075
  %v1136 = vpack.c.b16 %v1078, %v1076
  %v1137 = vpack.c.b16 %v1081, %v1079
  %v1138 = vpack.c.b16 %v1082, %v1080
  %v1139 = vpack.c.b16 %v1085, %v1083
  %v1140 = vpack.c.b16 %v1086, %v1084
  %v1141 = vpack.c.b16 %v1089, %v1087
  %v1142 = vpack.c.b16 %v1090, %v1088
  %v1143 = vpack.c.b16 %v1093, %v1091
  %v1144 = vpack.c.b16 %v1094, %v1092
  %v1145 = vpack.c.b16 %v1097, %v1095
  %v1146 = vpack.c.b16 %v1098, %v1096
  %v1147 = vpack.c.b16 %v1101, %v1099
  %v1148 = vpack.c.b16 %v1102, %v1100
  %v1149 = vpack.c.b16 %v1105, %v1103
  %v1150 = vpack.c.b16 %v1106, %v1104
  %v1151 = vpack.c.b16 %v1109, %v1107
  %v1152 = vpack.c.b16 %v1110, %v1108
  %v1153 = vpack.c.b16 %v1113, %v1111
  %v1154 = vpack.c.b16 %v1114, %v1112
  %v1155 = vpack.c.b16 %v1117, %v1115
  %v1156 = vpack.c.b16 %v1118, %v1116
  %v1157 = vpack.c.b16 %v1121, %v1119
  %v1158 = vpack.c.b16 %v1122, %v1120
  %v1159 = vpack.c.b16 %v1125, %v1123
  %v1160 = vpack.c.b16 %v1126, %v1124
  %v1161 = vpack.c.b16 %v1129, %v1127
  %v1162 = vpack.c.b16 %v1130, %v1128
  %1195 = vmatpush.bf16.msra.mxu0 %v1145
  %1196 = vmatpush.bf16.msra.mxu0 %v1143
  %1197 = vmatpush.bf16.msra.mxu0 %v1141
  %1198 = vmatpush.bf16.msra.mxu0 %v1139
  %1199 = vmatpush.bf16.msra.mxu0 %v1137
  %1200 = vmatpush.bf16.msra.mxu0 %v1135
  %1201 = vmatpush.bf16.msra.mxu0 %v1133
  %1202 = vmatpush.bf16.msra.mxu0 %v1131
  %1203 = vmatmul.bf16.gmra.mxu0 %v966
  %v1204 = vpop.f32.mrf.mxu0
  %v1205 = vadd.f32 0.0, %v1204
  %v1206 = vpop.f32.mrf.mxu0
  %v1207 = vadd.f32 0.0, %v1206
  %1208 = vmatmul.bf16.gmra.mxu0 %v986
  %v1209 = vpop.f32.mrf.mxu0
  %v1210 = vadd.f32 0.0, %v1209
  %v1211 = vpop.f32.mrf.mxu0
  %v1212 = vadd.f32 0.0, %v1211
  %1213 = vmatmul.bf16.gmra.mxu0 %v1002
  %v1214 = vpop.f32.mrf.mxu0
  %v1215 = vadd.f32 0.0, %v1214
  %v1216 = vpop.f32.mrf.mxu0
  %v1217 = vadd.f32 0.0, %v1216
  %1218 = vmatmul.bf16.gmra.mxu0 %v1018
  %v1219 = vpop.f32.mrf.mxu0
  %v1220 = vadd.f32 0.0, %v1219
  %v1221 = vpop.f32.mrf.mxu0
  %v1222 = vadd.f32 0.0, %v1221
  %1223 = vdwg.mxu0
  %1224 = vmatpush.bf16.msra.mxu0 %v1161
  %1225 = vmatpush.bf16.msra.mxu0 %v1159
  %1226 = vmatpush.bf16.msra.mxu0 %v1157
  %1227 = vmatpush.bf16.msra.mxu0 %v1155
  %1228 = vmatpush.bf16.msra.mxu0 %v1153
  %1229 = vmatpush.bf16.msra.mxu0 %v1151
  %1230 = vmatpush.bf16.msra.mxu0 %v1149
  %1231 = vmatpush.bf16.msra.mxu0 %v1147
  %1232 = vmatmul.bf16.gmra.mxu0 %v978
  %v1233 = vpop.f32.mrf.mxu0
  %v1234 = vadd.f32 %v1205, %v1233
  %v1235 = vpop.f32.mrf.mxu0
  %v1236 = vadd.f32 %v1207, %v1235
  %1237 = vmatmul.bf16.gmra.mxu0 %v994
  %v1238 = vpop.f32.mrf.mxu0
  %v1239 = vadd.f32 %v1210, %v1238
  %v1240 = vpop.f32.mrf.mxu0
  %v1241 = vadd.f32 %v1212, %v1240
  %1242 = vmatmul.bf16.gmra.mxu0 %v1010
  %v1243 = vpop.f32.mrf.mxu0
  %v1244 = vadd.f32 %v1215, %v1243
  %v1245 = vpop.f32.mrf.mxu0
  %v1246 = vadd.f32 %v1217, %v1245
  %1247 = vmatmul.bf16.gmra.mxu0 %v1026
  %v1248 = vpop.f32.mrf.mxu0
  %v1249 = vadd.f32 %v1220, %v1248
  %v1250 = vpop.f32.mrf.mxu0
  %v1251 = vadd.f32 %v1222, %v1250
  %1252 = vdwg.mxu0
  %1253 = vmatpush.bf16.msra.mxu0 %v1146
  %1254 = vmatpush.bf16.msra.mxu0 %v1144
  %1255 = vmatpush.bf16.msra.mxu0 %v1142
  %1256 = vmatpush.bf16.msra.mxu0 %v1140
  %1257 = vmatpush.bf16.msra.mxu0 %v1138
  %1258 = vmatpush.bf16.msra.mxu0 %v1136
  %1259 = vmatpush.bf16.msra.mxu0 %v1134
  %1260 = vmatpush.bf16.msra.mxu0 %v1132
  %1261 = vmatmul.bf16.gmra.mxu0 %v966
  %v1262 = vpop.f32.mrf.mxu0
  %v1263 = vadd.f32 0.0, %v1262
  %v1264 = vpop.f32.mrf.mxu0
  %v1265 = vadd.f32 0.0, %v1264
  %1266 = vmatmul.bf16.gmra.mxu0 %v986
  %v1267 = vpop.f32.mrf.mxu0
  %v1268 = vadd.f32 0.0, %v1267
  %v1269 = vpop.f32.mrf.mxu0
  %v1270 = vadd.f32 0.0, %v1269
  %1271 = vmatmul.bf16.gmra.mxu0 %v1002
  %v1272 = vpop.f32.mrf.mxu0
  %v1273 = vadd.f32 0.0, %v1272
  %v1274 = vpop.f32.mrf.mxu0
  %v1275 = vadd.f32 0.0, %v1274
  %1276 = vmatmul.bf16.gmra.mxu0 %v1018
  %v1277 = vpop.f32.mrf.mxu0
  %v1278 = vadd.f32 0.0, %v1277
  %v1279 = vpop.f32.mrf.mxu0
  %v1280 = vadd.f32 0.0, %v1279
  %1281 = vdwg.mxu0
  %1282 = vmatpush.bf16.msra.mxu0 %v1162
  %1283 = vmatpush.bf16.msra.mxu0 %v1160
  %1284 = vmatpush.bf16.msra.mxu0 %v1158
  %1285 = vmatpush.bf16.msra.mxu0 %v1156
  %1286 = vmatpush.bf16.msra.mxu0 %v1154
  %1287 = vmatpush.bf16.msra.mxu0 %v1152
  %1288 = vmatpush.bf16.msra.mxu0 %v1150
  %1289 = vmatpush.bf16.msra.mxu0 %v1148
  %1290 = vmatmul.bf16.gmra.mxu0 %v978
  %v1291 = vpop.f32.mrf.mxu0
  %v1292 = vadd.f32 %v1263, %v1291
  %v1293 = vpop.f32.mrf.mxu0
  %v1294 = vadd.f32 %v1265, %v1293
  %1295 = vmatmul.bf16.gmra.mxu0 %v994
  %v1296 = vpop.f32.mrf.mxu0
  %v1297 = vadd.f32 %v1268, %v1296
  %v1298 = vpop.f32.mrf.mxu0
  %v1299 = vadd.f32 %v1270, %v1298
  %1300 = vmatmul.bf16.gmra.mxu0 %v1010
  %v1301 = vpop.f32.mrf.mxu0
  %v1302 = vadd.f32 %v1273, %v1301
  %v1303 = vpop.f32.mrf.mxu0
  %v1304 = vadd.f32 %v1275, %v1303
  %1305 = vmatmul.bf16.gmra.mxu0 %v1026
  %v1306 = vpop.f32.mrf.mxu0
  %v1307 = vadd.f32 %v1278, %v1306
  %v1308 = vpop.f32.mrf.mxu0
  %v1309 = vadd.f32 %v1280, %v1308
  %1310 = vdwg.mxu0
  %v1343 = vunpack.c.l.b16 %v889
  %v1344 = vunpack.c.h.b16 %v889
  %v1345 = vunpack.c.l.b16 %v890
  %v1346 = vunpack.c.h.b16 %v890
  %v1347 = vunpack.c.l.b16 %v891
  %v1348 = vunpack.c.h.b16 %v891
  %v1349 = vunpack.c.l.b16 %v892
  %v1350 = vunpack.c.h.b16 %v892
  %v1351 = vunpack.c.l.b16 %v893
  %v1352 = vunpack.c.h.b16 %v893
  %v1353 = vunpack.c.l.b16 %v894
  %v1354 = vunpack.c.h.b16 %v894
  %v1355 = vunpack.c.l.b16 %v895
  %v1356 = vunpack.c.h.b16 %v895
  %v1357 = vunpack.c.l.b16 %v896
  %v1358 = vunpack.c.h.b16 %v896
  %v1359 = vunpack.c.l.b16 %v897
  %v1360 = vunpack.c.h.b16 %v897
  %v1361 = vunpack.c.l.b16 %v898
  %v1362 = vunpack.c.h.b16 %v898
  %v1363 = vunpack.c.l.b16 %v899
  %v1364 = vunpack.c.h.b16 %v899
  %v1365 = vunpack.c.l.b16 %v900
  %v1366 = vunpack.c.h.b16 %v900
  %v1367 = vunpack.c.l.b16 %v901
  %v1368 = vunpack.c.h.b16 %v901
  %v1369 = vunpack.c.l.b16 %v902
  %v1370 = vunpack.c.h.b16 %v902
  %v1371 = vunpack.c.l.b16 %v903
  %v1372 = vunpack.c.h.b16 %v903
  %v1373 = vunpack.c.l.b16 %v904
  %v1374 = vunpack.c.h.b16 %v904
  %v1375 = vunpack.c.l.b16 %v905
  %v1376 = vunpack.c.h.b16 %v905
  %v1377 = vunpack.c.l.b16 %v906
  %v1378 = vunpack.c.h.b16 %v906
  %v1379 = vunpack.c.l.b16 %v907
  %v1380 = vunpack.c.h.b16 %v907
  %v1381 = vunpack.c.l.b16 %v908
  %v1382 = vunpack.c.h.b16 %v908
  %v1383 = vunpack.c.l.b16 %v909
  %v1384 = vunpack.c.h.b16 %v909
  %v1385 = vunpack.c.l.b16 %v910
  %v1386 = vunpack.c.h.b16 %v910
  %v1387 = vunpack.c.l.b16 %v911
  %v1388 = vunpack.c.h.b16 %v911
  %v1389 = vunpack.c.l.b16 %v912
  %v1390 = vunpack.c.h.b16 %v912
  %v1391 = vunpack.c.l.b16 %v913
  %v1392 = vunpack.c.h.b16 %v913
  %v1393 = vunpack.c.l.b16 %v914
  %v1394 = vunpack.c.h.b16 %v914
  %v1395 = vunpack.c.l.b16 %v915
  %v1396 = vunpack.c.h.b16 %v915
  %v1397 = vunpack.c.l.b16 %v916
  %v1398 = vunpack.c.h.b16 %v916
  %v1399 = vunpack.c.l.b16 %v917
  %v1400 = vunpack.c.h.b16 %v917
  %v1401 = vunpack.c.l.b16 %v918
  %v1402 = vunpack.c.h.b16 %v918
  %v1403 = vunpack.c.l.b16 %v919
  %v1404 = vunpack.c.h.b16 %v919
  %v1405 = vunpack.c.l.b16 %v920
  %v1406 = vunpack.c.h.b16 %v920
  %v1407 = vpack.c.b16 %v1345, %v1343
  %v1408 = vpack.c.b16 %v1346, %v1344
  %v1409 = vpack.c.b16 %v1349, %v1347
  %v1410 = vpack.c.b16 %v1350, %v1348
  %v1411 = vpack.c.b16 %v1353, %v1351
  %v1412 = vpack.c.b16 %v1354, %v1352
  %v1413 = vpack.c.b16 %v1357, %v1355
  %v1414 = vpack.c.b16 %v1358, %v1356
  %v1415 = vpack.c.b16 %v1361, %v1359
  %v1416 = vpack.c.b16 %v1362, %v1360
  %v1417 = vpack.c.b16 %v1365, %v1363
  %v1418 = vpack.c.b16 %v1366, %v1364
  %v1419 = vpack.c.b16 %v1369, %v1367
  %v1420 = vpack.c.b16 %v1370, %v1368
  %v1421 = vpack.c.b16 %v1373, %v1371
  %v1422 = vpack.c.b16 %v1374, %v1372
  %v1423 = vpack.c.b16 %v1377, %v1375
  %v1424 = vpack.c.b16 %v1378, %v1376
  %v1425 = vpack.c.b16 %v1381, %v1379
  %v1426 = vpack.c.b16 %v1382, %v1380
  %v1427 = vpack.c.b16 %v1385, %v1383
  %v1428 = vpack.c.b16 %v1386, %v1384
  %v1429 = vpack.c.b16 %v1389, %v1387
  %v1430 = vpack.c.b16 %v1390, %v1388
  %v1431 = vpack.c.b16 %v1393, %v1391
  %v1432 = vpack.c.b16 %v1394, %v1392
  %v1433 = vpack.c.b16 %v1397, %v1395
  %v1434 = vpack.c.b16 %v1398, %v1396
  %v1435 = vpack.c.b16 %v1401, %v1399
  %v1436 = vpack.c.b16 %v1402, %v1400
  %v1437 = vpack.c.b16 %v1405, %v1403
  %v1438 = vpack.c.b16 %v1406, %v1404
  %1471 = vmatpush.bf16.msra.mxu0 %v1421
  %1472 = vmatpush.bf16.msra.mxu0 %v1419
  %1473 = vmatpush.bf16.msra.mxu0 %v1417
  %1474 = vmatpush.bf16.msra.mxu0 %v1415
  %1475 = vmatpush.bf16.msra.mxu0 %v1413
  %1476 = vmatpush.bf16.msra.mxu0 %v1411
  %1477 = vmatpush.bf16.msra.mxu0 %v1409
  %1478 = vmatpush.bf16.msra.mxu0 %v1407
  %1479 = vmatmul.bf16.gmra.mxu0 %v845
  %v1480 = vpop.f32.mrf.mxu0
  %v1481 = vadd.f32 %v1234, %v1480
  %v1482 = vpop.f32.mrf.mxu0
  %v1483 = vadd.f32 %v1236, %v1482
  %1484 = vmatmul.bf16.gmra.mxu0 %v847
  %v1485 = vpop.f32.mrf.mxu0
  %v1486 = vadd.f32 %v1239, %v1485
  %v1487 = vpop.f32.mrf.mxu0
  %v1488 = vadd.f32 %v1241, %v1487
  %1489 = vmatmul.bf16.gmra.mxu0 %v849
  %v1490 = vpop.f32.mrf.mxu0
  %v1491 = vadd.f32 %v1244, %v1490
  %v1492 = vpop.f32.mrf.mxu0
  %v1493 = vadd.f32 %v1246, %v1492
  %1494 = vmatmul.bf16.gmra.mxu0 %v851
  %v1495 = vpop.f32.mrf.mxu0
  %v1496 = vadd.f32 %v1249, %v1495
  %v1497 = vpop.f32.mrf.mxu0
  %v1498 = vadd.f32 %v1251, %v1497
  %1499 = vdwg.mxu0
  %1500 = vmatpush.bf16.msra.mxu0 %v1437
  %1501 = vmatpush.bf16.msra.mxu0 %v1435
  %1502 = vmatpush.bf16.msra.mxu0 %v1433
  %1503 = vmatpush.bf16.msra.mxu0 %v1431
  %1504 = vmatpush.bf16.msra.mxu0 %v1429
  %1505 = vmatpush.bf16.msra.mxu0 %v1427
  %1506 = vmatpush.bf16.msra.mxu0 %v1425
  %1507 = vmatpush.bf16.msra.mxu0 %v1423
  %1508 = vmatmul.bf16.gmra.mxu0 %v846
  %v1509 = vpop.f32.mrf.mxu0
  %v1510 = vadd.f32 %v1481, %v1509
  %v1511 = vpop.f32.mrf.mxu0
  %v1512 = vadd.f32 %v1483, %v1511
  %1513 = vmatmul.bf16.gmra.mxu0 %v848
  %v1514 = vpop.f32.mrf.mxu0
  %v1515 = vadd.f32 %v1486, %v1514
  %v1516 = vpop.f32.mrf.mxu0
  %v1517 = vadd.f32 %v1488, %v1516
  %1518 = vmatmul.bf16.gmra.mxu0 %v850
  %v1519 = vpop.f32.mrf.mxu0
  %v1520 = vadd.f32 %v1491, %v1519
  %v1521 = vpop.f32.mrf.mxu0
  %v1522 = vadd.f32 %v1493, %v1521
  %1523 = vmatmul.bf16.gmra.mxu0 %v852
  %v1524 = vpop.f32.mrf.mxu0
  %v1525 = vadd.f32 %v1496, %v1524
  %v1526 = vpop.f32.mrf.mxu0
  %v1527 = vadd.f32 %v1498, %v1526
  %1528 = vdwg.mxu0
  %1529 = vmatpush.bf16.msra.mxu0 %v1422
  %1530 = vmatpush.bf16.msra.mxu0 %v1420
  %1531 = vmatpush.bf16.msra.mxu0 %v1418
  %1532 = vmatpush.bf16.msra.mxu0 %v1416
  %1533 = vmatpush.bf16.msra.mxu0 %v1414
  %1534 = vmatpush.bf16.msra.mxu0 %v1412
  %1535 = vmatpush.bf16.msra.mxu0 %v1410
  %1536 = vmatpush.bf16.msra.mxu0 %v1408
  %1537 = vmatmul.bf16.gmra.mxu0 %v845
  %v1538 = vpop.f32.mrf.mxu0
  %v1539 = vadd.f32 %v1292, %v1538
  %v1540 = vpop.f32.mrf.mxu0
  %v1541 = vadd.f32 %v1294, %v1540
  %1542 = vmatmul.bf16.gmra.mxu0 %v847
  %v1543 = vpop.f32.mrf.mxu0
  %v1544 = vadd.f32 %v1297, %v1543
  %v1545 = vpop.f32.mrf.mxu0
  %v1546 = vadd.f32 %v1299, %v1545
  %1547 = vmatmul.bf16.gmra.mxu0 %v849
  %v1548 = vpop.f32.mrf.mxu0
  %v1549 = vadd.f32 %v1302, %v1548
  %v1550 = vpop.f32.mrf.mxu0
  %v1551 = vadd.f32 %v1304, %v1550
  %1552 = vmatmul.bf16.gmra.mxu0 %v851
  %v1553 = vpop.f32.mrf.mxu0
  %v1554 = vadd.f32 %v1307, %v1553
  %v1555 = vpop.f32.mrf.mxu0
  %v1556 = vadd.f32 %v1309, %v1555
  %1557 = vdwg.mxu0
  %1558 = vmatpush.bf16.msra.mxu0 %v1438
  %1559 = vmatpush.bf16.msra.mxu0 %v1436
  %1560 = vmatpush.bf16.msra.mxu0 %v1434
  %1561 = vmatpush.bf16.msra.mxu0 %v1432
  %1562 = vmatpush.bf16.msra.mxu0 %v1430
  %1563 = vmatpush.bf16.msra.mxu0 %v1428
  %1564 = vmatpush.bf16.msra.mxu0 %v1426
  %1565 = vmatpush.bf16.msra.mxu0 %v1424
  %1566 = vmatmul.bf16.gmra.mxu0 %v846
  %v1567 = vpop.f32.mrf.mxu0
  %v1568 = vadd.f32 %v1539, %v1567
  %v1569 = vpop.f32.mrf.mxu0
  %v1570 = vadd.f32 %v1541, %v1569
  %1571 = vmatmul.bf16.gmra.mxu0 %v848
  %v1572 = vpop.f32.mrf.mxu0
  %v1573 = vadd.f32 %v1544, %v1572
  %v1574 = vpop.f32.mrf.mxu0
  %v1575 = vadd.f32 %v1546, %v1574
  %1576 = vmatmul.bf16.gmra.mxu0 %v850
  %v1577 = vpop.f32.mrf.mxu0
  %v1578 = vadd.f32 %v1549, %v1577
  %v1579 = vpop.f32.mrf.mxu0
  %v1580 = vadd.f32 %v1551, %v1579
  %1581 = vmatmul.bf16.gmra.mxu0 %v852
  %v1582 = vpop.f32.mrf.mxu0
  %v1583 = vadd.f32 %v1554, %v1582
  %v1584 = vpop.f32.mrf.mxu0
  %v1585 = vadd.f32 %v1556, %v1584
  %1586 = vdwg.mxu0
  %s1587 = scalar_lea.vmem %s2, 512
  %v1588 = vld [vmem:[%s1587] sm:$0xff]
  %v1589 = vld [vmem:[%s1587 + $0x8] sm:$0xff]
  %v1590 = vld [vmem:[%s1587 + $0x10] sm:$0xff]
  %v1591 = vld [vmem:[%s1587 + $0x18] sm:$0xff]
  %v1592 = vld [vmem:[%s1587 + $0x20] sm:$0xff]
  %v1593 = vld [vmem:[%s1587 + $0x28] sm:$0xff]
  %v1594 = vld [vmem:[%s1587 + $0x30] sm:$0xff]
  %v1595 = vld [vmem:[%s1587 + $0x38] sm:$0xff]
  %v1596 = vld [vmem:[%s1587 + $0x40] sm:$0xff]
  %v1597 = vld [vmem:[%s1587 + $0x48] sm:$0xff]
  %v1598 = vld [vmem:[%s1587 + $0x50] sm:$0xff]
  %v1599 = vld [vmem:[%s1587 + $0x58] sm:$0xff]
  %v1600 = vld [vmem:[%s1587 + $0x60] sm:$0xff]
  %v1601 = vld [vmem:[%s1587 + $0x68] sm:$0xff]
  %v1602 = vld [vmem:[%s1587 + $0x70] sm:$0xff]
  %v1603 = vld [vmem:[%s1587 + $0x78] sm:$0xff]
  %v1604 = vld [vmem:[%s1587 + $0x80] sm:$0xff]
  %v1605 = vld [vmem:[%s1587 + $0x88] sm:$0xff]
  %v1606 = vld [vmem:[%s1587 + $0x90] sm:$0xff]
  %v1607 = vld [vmem:[%s1587 + $0x98] sm:$0xff]
  %v1608 = vld [vmem:[%s1587 + $0xa0] sm:$0xff]
  %v1609 = vld [vmem:[%s1587 + $0xa8] sm:$0xff]
  %v1610 = vld [vmem:[%s1587 + $0xb0] sm:$0xff]
  %v1611 = vld [vmem:[%s1587 + $0xb8] sm:$0xff]
  %v1612 = vld [vmem:[%s1587 + $0xc0] sm:$0xff]
  %v1613 = vld [vmem:[%s1587 + $0xc8] sm:$0xff]
  %v1614 = vld [vmem:[%s1587 + $0xd0] sm:$0xff]
  %v1615 = vld [vmem:[%s1587 + $0xd8] sm:$0xff]
  %v1616 = vld [vmem:[%s1587 + $0xe0] sm:$0xff]
  %v1617 = vld [vmem:[%s1587 + $0xe8] sm:$0xff]
  %v1618 = vld [vmem:[%s1587 + $0xf0] sm:$0xff]
  %v1619 = vld [vmem:[%s1587 + $0xf8] sm:$0xff]
  %vm1630 = vcmask 1046528
  %v1631 = vrot.slane %v885, 1
  %v1632 = vrot.slane %v873, 1
  %v1633 = vsel %vm1630, %v1631, %v1632
  %v1634 = vrot.slane %v886, 1
  %v1635 = vrot.slane %v874, 1
  %v1636 = vsel %vm1630, %v1634, %v1635
  %v1637 = vrot.slane %v875, 1
  %v1638 = vsel %vm1630, %v1632, %v1637
  %v1639 = vrot.slane %v876, 1
  %v1640 = vsel %vm1630, %v1635, %v1639
  %v1641 = vrot.slane %v877, 1
  %v1642 = vsel %vm1630, %v1637, %v1641
  %v1643 = vrot.slane %v878, 1
  %v1644 = vsel %vm1630, %v1639, %v1643
  %v1645 = vrot.slane %v887, 1
  %v1646 = vsel %vm1630, %v1641, %v1645
  %v1647 = vrot.slane %v888, 1
  %v1648 = vsel %vm1630, %v1643, %v1647
  %v1689 = vunpack.c.l.b16 %v1588
  %v1690 = vunpack.c.h.b16 %v1588
  %v1691 = vunpack.c.l.b16 %v1589
  %v1692 = vunpack.c.h.b16 %v1589
  %v1693 = vunpack.c.l.b16 %v1590
  %v1694 = vunpack.c.h.b16 %v1590
  %v1695 = vunpack.c.l.b16 %v1591
  %v1696 = vunpack.c.h.b16 %v1591
  %v1697 = vunpack.c.l.b16 %v1592
  %v1698 = vunpack.c.h.b16 %v1592
  %v1699 = vunpack.c.l.b16 %v1593
  %v1700 = vunpack.c.h.b16 %v1593
  %v1701 = vunpack.c.l.b16 %v1594
  %v1702 = vunpack.c.h.b16 %v1594
  %v1703 = vunpack.c.l.b16 %v1595
  %v1704 = vunpack.c.h.b16 %v1595
  %v1705 = vunpack.c.l.b16 %v1596
  %v1706 = vunpack.c.h.b16 %v1596
  %v1707 = vunpack.c.l.b16 %v1597
  %v1708 = vunpack.c.h.b16 %v1597
  %v1709 = vunpack.c.l.b16 %v1598
  %v1710 = vunpack.c.h.b16 %v1598
  %v1711 = vunpack.c.l.b16 %v1599
  %v1712 = vunpack.c.h.b16 %v1599
  %v1713 = vunpack.c.l.b16 %v1600
  %v1714 = vunpack.c.h.b16 %v1600
  %v1715 = vunpack.c.l.b16 %v1601
  %v1716 = vunpack.c.h.b16 %v1601
  %v1717 = vunpack.c.l.b16 %v1602
  %v1718 = vunpack.c.h.b16 %v1602
  %v1719 = vunpack.c.l.b16 %v1603
  %v1720 = vunpack.c.h.b16 %v1603
  %v1721 = vunpack.c.l.b16 %v1604
  %v1722 = vunpack.c.h.b16 %v1604
  %v1723 = vunpack.c.l.b16 %v1605
  %v1724 = vunpack.c.h.b16 %v1605
  %v1725 = vunpack.c.l.b16 %v1606
  %v1726 = vunpack.c.h.b16 %v1606
  %v1727 = vunpack.c.l.b16 %v1607
  %v1728 = vunpack.c.h.b16 %v1607
  %v1729 = vunpack.c.l.b16 %v1608
  %v1730 = vunpack.c.h.b16 %v1608
  %v1731 = vunpack.c.l.b16 %v1609
  %v1732 = vunpack.c.h.b16 %v1609
  %v1733 = vunpack.c.l.b16 %v1610
  %v1734 = vunpack.c.h.b16 %v1610
  %v1735 = vunpack.c.l.b16 %v1611
  %v1736 = vunpack.c.h.b16 %v1611
  %v1737 = vunpack.c.l.b16 %v1612
  %v1738 = vunpack.c.h.b16 %v1612
  %v1739 = vunpack.c.l.b16 %v1613
  %v1740 = vunpack.c.h.b16 %v1613
  %v1741 = vunpack.c.l.b16 %v1614
  %v1742 = vunpack.c.h.b16 %v1614
  %v1743 = vunpack.c.l.b16 %v1615
  %v1744 = vunpack.c.h.b16 %v1615
  %v1745 = vunpack.c.l.b16 %v1616
  %v1746 = vunpack.c.h.b16 %v1616
  %v1747 = vunpack.c.l.b16 %v1617
  %v1748 = vunpack.c.h.b16 %v1617
  %v1749 = vunpack.c.l.b16 %v1618
  %v1750 = vunpack.c.h.b16 %v1618
  %v1751 = vunpack.c.l.b16 %v1619
  %v1752 = vunpack.c.h.b16 %v1619
  %v1753 = vpack.c.b16 %v1691, %v1689
  %v1754 = vpack.c.b16 %v1692, %v1690
  %v1755 = vpack.c.b16 %v1695, %v1693
  %v1756 = vpack.c.b16 %v1696, %v1694
  %v1757 = vpack.c.b16 %v1699, %v1697
  %v1758 = vpack.c.b16 %v1700, %v1698
  %v1759 = vpack.c.b16 %v1703, %v1701
  %v1760 = vpack.c.b16 %v1704, %v1702
  %v1761 = vpack.c.b16 %v1707, %v1705
  %v1762 = vpack.c.b16 %v1708, %v1706
  %v1763 = vpack.c.b16 %v1711, %v1709
  %v1764 = vpack.c.b16 %v1712, %v1710
  %v1765 = vpack.c.b16 %v1715, %v1713
  %v1766 = vpack.c.b16 %v1716, %v1714
  %v1767 = vpack.c.b16 %v1719, %v1717
  %v1768 = vpack.c.b16 %v1720, %v1718
  %v1769 = vpack.c.b16 %v1723, %v1721
  %v1770 = vpack.c.b16 %v1724, %v1722
  %v1771 = vpack.c.b16 %v1727, %v1725
  %v1772 = vpack.c.b16 %v1728, %v1726
  %v1773 = vpack.c.b16 %v1731, %v1729
  %v1774 = vpack.c.b16 %v1732, %v1730
  %v1775 = vpack.c.b16 %v1735, %v1733
  %v1776 = vpack.c.b16 %v1736, %v1734
  %v1777 = vpack.c.b16 %v1739, %v1737
  %v1778 = vpack.c.b16 %v1740, %v1738
  %v1779 = vpack.c.b16 %v1743, %v1741
  %v1780 = vpack.c.b16 %v1744, %v1742
  %v1781 = vpack.c.b16 %v1747, %v1745
  %v1782 = vpack.c.b16 %v1748, %v1746
  %v1783 = vpack.c.b16 %v1751, %v1749
  %v1784 = vpack.c.b16 %v1752, %v1750
  %1817 = vmatpush.bf16.msra.mxu0 %v1767
  %1818 = vmatpush.bf16.msra.mxu0 %v1765
  %1819 = vmatpush.bf16.msra.mxu0 %v1763
  %1820 = vmatpush.bf16.msra.mxu0 %v1761
  %1821 = vmatpush.bf16.msra.mxu0 %v1759
  %1822 = vmatpush.bf16.msra.mxu0 %v1757
  %1823 = vmatpush.bf16.msra.mxu0 %v1755
  %1824 = vmatpush.bf16.msra.mxu0 %v1753
  %1825 = vmatmul.bf16.gmra.mxu0 %v1633
  %v1826 = vpop.f32.mrf.mxu0
  %v1827 = vadd.f32 0.0, %v1826
  %v1828 = vpop.f32.mrf.mxu0
  %v1829 = vadd.f32 0.0, %v1828
  %1830 = vmatmul.bf16.gmra.mxu0 %v1638
  %v1831 = vpop.f32.mrf.mxu0
  %v1832 = vadd.f32 0.0, %v1831
  %v1833 = vpop.f32.mrf.mxu0
  %v1834 = vadd.f32 0.0, %v1833
  %1835 = vmatmul.bf16.gmra.mxu0 %v1642
  %v1836 = vpop.f32.mrf.mxu0
  %v1837 = vadd.f32 0.0, %v1836
  %v1838 = vpop.f32.mrf.mxu0
  %v1839 = vadd.f32 0.0, %v1838
  %1840 = vmatmul.bf16.gmra.mxu0 %v1646
  %v1841 = vpop.f32.mrf.mxu0
  %v1842 = vadd.f32 0.0, %v1841
  %v1843 = vpop.f32.mrf.mxu0
  %v1844 = vadd.f32 0.0, %v1843
  %1845 = vdwg.mxu0
  %1846 = vmatpush.bf16.msra.mxu0 %v1783
  %1847 = vmatpush.bf16.msra.mxu0 %v1781
  %1848 = vmatpush.bf16.msra.mxu0 %v1779
  %1849 = vmatpush.bf16.msra.mxu0 %v1777
  %1850 = vmatpush.bf16.msra.mxu0 %v1775
  %1851 = vmatpush.bf16.msra.mxu0 %v1773
  %1852 = vmatpush.bf16.msra.mxu0 %v1771
  %1853 = vmatpush.bf16.msra.mxu0 %v1769
  %1854 = vmatmul.bf16.gmra.mxu0 %v1636
  %v1855 = vpop.f32.mrf.mxu0
  %v1856 = vadd.f32 %v1827, %v1855
  %v1857 = vpop.f32.mrf.mxu0
  %v1858 = vadd.f32 %v1829, %v1857
  %1859 = vmatmul.bf16.gmra.mxu0 %v1640
  %v1860 = vpop.f32.mrf.mxu0
  %v1861 = vadd.f32 %v1832, %v1860
  %v1862 = vpop.f32.mrf.mxu0
  %v1863 = vadd.f32 %v1834, %v1862
  %1864 = vmatmul.bf16.gmra.mxu0 %v1644
  %v1865 = vpop.f32.mrf.mxu0
  %v1866 = vadd.f32 %v1837, %v1865
  %v1867 = vpop.f32.mrf.mxu0
  %v1868 = vadd.f32 %v1839, %v1867
  %1869 = vmatmul.bf16.gmra.mxu0 %v1648
  %v1870 = vpop.f32.mrf.mxu0
  %v1871 = vadd.f32 %v1842, %v1870
  %v1872 = vpop.f32.mrf.mxu0
  %v1873 = vadd.f32 %v1844, %v1872
  %1874 = vdwg.mxu0
  %1875 = vmatpush.bf16.msra.mxu0 %v1768
  %1876 = vmatpush.bf16.msra.mxu0 %v1766
  %1877 = vmatpush.bf16.msra.mxu0 %v1764
  %1878 = vmatpush.bf16.msra.mxu0 %v1762
  %1879 = vmatpush.bf16.msra.mxu0 %v1760
  %1880 = vmatpush.bf16.msra.mxu0 %v1758
  %1881 = vmatpush.bf16.msra.mxu0 %v1756
  %1882 = vmatpush.bf16.msra.mxu0 %v1754
  %1883 = vmatmul.bf16.gmra.mxu0 %v1633
  %v1884 = vpop.f32.mrf.mxu0
  %v1885 = vadd.f32 0.0, %v1884
  %v1886 = vpop.f32.mrf.mxu0
  %v1887 = vadd.f32 0.0, %v1886
  %1888 = vmatmul.bf16.gmra.mxu0 %v1638
  %v1889 = vpop.f32.mrf.mxu0
  %v1890 = vadd.f32 0.0, %v1889
  %v1891 = vpop.f32.mrf.mxu0
  %v1892 = vadd.f32 0.0, %v1891
  %1893 = vmatmul.bf16.gmra.mxu0 %v1642
  %v1894 = vpop.f32.mrf.mxu0
  %v1895 = vadd.f32 0.0, %v1894
  %v1896 = vpop.f32.mrf.mxu0
  %v1897 = vadd.f32 0.0, %v1896
  %1898 = vmatmul.bf16.gmra.mxu0 %v1646
  %v1899 = vpop.f32.mrf.mxu0
  %v1900 = vadd.f32 0.0, %v1899
  %v1901 = vpop.f32.mrf.mxu0
  %v1902 = vadd.f32 0.0, %v1901
  %1903 = vdwg.mxu0
  %1904 = vmatpush.bf16.msra.mxu0 %v1784
  %1905 = vmatpush.bf16.msra.mxu0 %v1782
  %1906 = vmatpush.bf16.msra.mxu0 %v1780
  %1907 = vmatpush.bf16.msra.mxu0 %v1778
  %1908 = vmatpush.bf16.msra.mxu0 %v1776
  %1909 = vmatpush.bf16.msra.mxu0 %v1774
  %1910 = vmatpush.bf16.msra.mxu0 %v1772
  %1911 = vmatpush.bf16.msra.mxu0 %v1770
  %1912 = vmatmul.bf16.gmra.mxu0 %v1636
  %v1913 = vpop.f32.mrf.mxu0
  %v1914 = vadd.f32 %v1885, %v1913
  %v1915 = vpop.f32.mrf.mxu0
  %v1916 = vadd.f32 %v1887, %v1915
  %1917 = vmatmul.bf16.gmra.mxu0 %v1640
  %v1918 = vpop.f32.mrf.mxu0
  %v1919 = vadd.f32 %v1890, %v1918
  %v1920 = vpop.f32.mrf.mxu0
  %v1921 = vadd.f32 %v1892, %v1920
  %1922 = vmatmul.bf16.gmra.mxu0 %v1644
  %v1923 = vpop.f32.mrf.mxu0
  %v1924 = vadd.f32 %v1895, %v1923
  %v1925 = vpop.f32.mrf.mxu0
  %v1926 = vadd.f32 %v1897, %v1925
  %1927 = vmatmul.bf16.gmra.mxu0 %v1648
  %v1928 = vpop.f32.mrf.mxu0
  %v1929 = vadd.f32 %v1900, %v1928
  %v1930 = vpop.f32.mrf.mxu0
  %v1931 = vadd.f32 %v1902, %v1930
  %1932 = vdwg.mxu0
  %v1933 = vadd.f32 %v1510, %v1856
  %v1934 = vadd.f32 %v1568, %v1914
  %v1935 = vadd.f32 %v1512, %v1858
  %v1936 = vadd.f32 %v1570, %v1916
  %v1937 = vadd.f32 %v1515, %v1861
  %v1938 = vadd.f32 %v1573, %v1919
  %v1939 = vadd.f32 %v1517, %v1863
  %v1940 = vadd.f32 %v1575, %v1921
  %v1941 = vadd.f32 %v1520, %v1866
  %v1942 = vadd.f32 %v1578, %v1924
  %v1943 = vadd.f32 %v1522, %v1868
  %v1944 = vadd.f32 %v1580, %v1926
  %v1945 = vadd.f32 %v1525, %v1871
  %v1946 = vadd.f32 %v1583, %v1929
  %v1947 = vadd.f32 %v1527, %v1873
  %v1948 = vadd.f32 %v1585, %v1931
  %s1949 = scalar_lea.vmem %s2, 768
  %v1950 = vld [vmem:[%s1949] sm:$0xff]
  %v1951 = vld [vmem:[%s1949 + $0x8] sm:$0xff]
  %v1952 = vld [vmem:[%s1949 + $0x10] sm:$0xff]
  %v1953 = vld [vmem:[%s1949 + $0x18] sm:$0xff]
  %v1954 = vld [vmem:[%s1949 + $0x20] sm:$0xff]
  %v1955 = vld [vmem:[%s1949 + $0x28] sm:$0xff]
  %v1956 = vld [vmem:[%s1949 + $0x30] sm:$0xff]
  %v1957 = vld [vmem:[%s1949 + $0x38] sm:$0xff]
  %v1958 = vld [vmem:[%s1949 + $0x40] sm:$0xff]
  %v1959 = vld [vmem:[%s1949 + $0x48] sm:$0xff]
  %v1960 = vld [vmem:[%s1949 + $0x50] sm:$0xff]
  %v1961 = vld [vmem:[%s1949 + $0x58] sm:$0xff]
  %v1962 = vld [vmem:[%s1949 + $0x60] sm:$0xff]
  %v1963 = vld [vmem:[%s1949 + $0x68] sm:$0xff]
  %v1964 = vld [vmem:[%s1949 + $0x70] sm:$0xff]
  %v1965 = vld [vmem:[%s1949 + $0x78] sm:$0xff]
  %v1966 = vld [vmem:[%s1949 + $0x80] sm:$0xff]
  %v1967 = vld [vmem:[%s1949 + $0x88] sm:$0xff]
  %v1968 = vld [vmem:[%s1949 + $0x90] sm:$0xff]
  %v1969 = vld [vmem:[%s1949 + $0x98] sm:$0xff]
  %v1970 = vld [vmem:[%s1949 + $0xa0] sm:$0xff]
  %v1971 = vld [vmem:[%s1949 + $0xa8] sm:$0xff]
  %v1972 = vld [vmem:[%s1949 + $0xb0] sm:$0xff]
  %v1973 = vld [vmem:[%s1949 + $0xb8] sm:$0xff]
  %v1974 = vld [vmem:[%s1949 + $0xc0] sm:$0xff]
  %v1975 = vld [vmem:[%s1949 + $0xc8] sm:$0xff]
  %v1976 = vld [vmem:[%s1949 + $0xd0] sm:$0xff]
  %v1977 = vld [vmem:[%s1949 + $0xd8] sm:$0xff]
  %v1978 = vld [vmem:[%s1949 + $0xe0] sm:$0xff]
  %v1979 = vld [vmem:[%s1949 + $0xe8] sm:$0xff]
  %v1980 = vld [vmem:[%s1949 + $0xf0] sm:$0xff]
  %v1981 = vld [vmem:[%s1949 + $0xf8] sm:$0xff]
  %s1982 = scalar_lea.vmem %s2, 1024
  %v1983 = vld [vmem:[%s1982] sm:$0xff]
  %v1984 = vld [vmem:[%s1982 + $0x8] sm:$0xff]
  %v1985 = vld [vmem:[%s1982 + $0x10] sm:$0xff]
  %v1986 = vld [vmem:[%s1982 + $0x18] sm:$0xff]
  %v1987 = vld [vmem:[%s1982 + $0x20] sm:$0xff]
  %v1988 = vld [vmem:[%s1982 + $0x28] sm:$0xff]
  %v1989 = vld [vmem:[%s1982 + $0x30] sm:$0xff]
  %v1990 = vld [vmem:[%s1982 + $0x38] sm:$0xff]
  %v1991 = vld [vmem:[%s1982 + $0x40] sm:$0xff]
  %v1992 = vld [vmem:[%s1982 + $0x48] sm:$0xff]
  %v1993 = vld [vmem:[%s1982 + $0x50] sm:$0xff]
  %v1994 = vld [vmem:[%s1982 + $0x58] sm:$0xff]
  %v1995 = vld [vmem:[%s1982 + $0x60] sm:$0xff]
  %v1996 = vld [vmem:[%s1982 + $0x68] sm:$0xff]
  %v1997 = vld [vmem:[%s1982 + $0x70] sm:$0xff]
  %v1998 = vld [vmem:[%s1982 + $0x78] sm:$0xff]
  %v1999 = vld [vmem:[%s1982 + $0x80] sm:$0xff]
  %v2000 = vld [vmem:[%s1982 + $0x88] sm:$0xff]
  %v2001 = vld [vmem:[%s1982 + $0x90] sm:$0xff]
  %v2002 = vld [vmem:[%s1982 + $0x98] sm:$0xff]
  %v2003 = vld [vmem:[%s1982 + $0xa0] sm:$0xff]
  %v2004 = vld [vmem:[%s1982 + $0xa8] sm:$0xff]
  %v2005 = vld [vmem:[%s1982 + $0xb0] sm:$0xff]
  %v2006 = vld [vmem:[%s1982 + $0xb8] sm:$0xff]
  %v2007 = vld [vmem:[%s1982 + $0xc0] sm:$0xff]
  %v2008 = vld [vmem:[%s1982 + $0xc8] sm:$0xff]
  %v2009 = vld [vmem:[%s1982 + $0xd0] sm:$0xff]
  %v2010 = vld [vmem:[%s1982 + $0xd8] sm:$0xff]
  %v2011 = vld [vmem:[%s1982 + $0xe0] sm:$0xff]
  %v2012 = vld [vmem:[%s1982 + $0xe8] sm:$0xff]
  %v2013 = vld [vmem:[%s1982 + $0xf0] sm:$0xff]
  %v2014 = vld [vmem:[%s1982 + $0xf8] sm:$0xff]
  %v2047 = vunpack.c.l.b16 %v1983
  %v2048 = vunpack.c.h.b16 %v1983
  %v2049 = vunpack.c.l.b16 %v1984
  %v2050 = vunpack.c.h.b16 %v1984
  %v2051 = vunpack.c.l.b16 %v1985
  %v2052 = vunpack.c.h.b16 %v1985
  %v2053 = vunpack.c.l.b16 %v1986
  %v2054 = vunpack.c.h.b16 %v1986
  %v2055 = vunpack.c.l.b16 %v1987
  %v2056 = vunpack.c.h.b16 %v1987
  %v2057 = vunpack.c.l.b16 %v1988
  %v2058 = vunpack.c.h.b16 %v1988
  %v2059 = vunpack.c.l.b16 %v1989
  %v2060 = vunpack.c.h.b16 %v1989
  %v2061 = vunpack.c.l.b16 %v1990
  %v2062 = vunpack.c.h.b16 %v1990
  %v2063 = vunpack.c.l.b16 %v1991
  %v2064 = vunpack.c.h.b16 %v1991
  %v2065 = vunpack.c.l.b16 %v1992
  %v2066 = vunpack.c.h.b16 %v1992
  %v2067 = vunpack.c.l.b16 %v1993
  %v2068 = vunpack.c.h.b16 %v1993
  %v2069 = vunpack.c.l.b16 %v1994
  %v2070 = vunpack.c.h.b16 %v1994
  %v2071 = vunpack.c.l.b16 %v1995
  %v2072 = vunpack.c.h.b16 %v1995
  %v2073 = vunpack.c.l.b16 %v1996
  %v2074 = vunpack.c.h.b16 %v1996
  %v2075 = vunpack.c.l.b16 %v1997
  %v2076 = vunpack.c.h.b16 %v1997
  %v2077 = vunpack.c.l.b16 %v1998
  %v2078 = vunpack.c.h.b16 %v1998
  %v2079 = vunpack.c.l.b16 %v1999
  %v2080 = vunpack.c.h.b16 %v1999
  %v2081 = vunpack.c.l.b16 %v2000
  %v2082 = vunpack.c.h.b16 %v2000
  %v2083 = vunpack.c.l.b16 %v2001
  %v2084 = vunpack.c.h.b16 %v2001
  %v2085 = vunpack.c.l.b16 %v2002
  %v2086 = vunpack.c.h.b16 %v2002
  %v2087 = vunpack.c.l.b16 %v2003
  %v2088 = vunpack.c.h.b16 %v2003
  %v2089 = vunpack.c.l.b16 %v2004
  %v2090 = vunpack.c.h.b16 %v2004
  %v2091 = vunpack.c.l.b16 %v2005
  %v2092 = vunpack.c.h.b16 %v2005
  %v2093 = vunpack.c.l.b16 %v2006
  %v2094 = vunpack.c.h.b16 %v2006
  %v2095 = vunpack.c.l.b16 %v2007
  %v2096 = vunpack.c.h.b16 %v2007
  %v2097 = vunpack.c.l.b16 %v2008
  %v2098 = vunpack.c.h.b16 %v2008
  %v2099 = vunpack.c.l.b16 %v2009
  %v2100 = vunpack.c.h.b16 %v2009
  %v2101 = vunpack.c.l.b16 %v2010
  %v2102 = vunpack.c.h.b16 %v2010
  %v2103 = vunpack.c.l.b16 %v2011
  %v2104 = vunpack.c.h.b16 %v2011
  %v2105 = vunpack.c.l.b16 %v2012
  %v2106 = vunpack.c.h.b16 %v2012
  %v2107 = vunpack.c.l.b16 %v2013
  %v2108 = vunpack.c.h.b16 %v2013
  %v2109 = vunpack.c.l.b16 %v2014
  %v2110 = vunpack.c.h.b16 %v2014
  %v2111 = vpack.c.b16 %v2049, %v2047
  %v2112 = vpack.c.b16 %v2050, %v2048
  %v2113 = vpack.c.b16 %v2053, %v2051
  %v2114 = vpack.c.b16 %v2054, %v2052
  %v2115 = vpack.c.b16 %v2057, %v2055
  %v2116 = vpack.c.b16 %v2058, %v2056
  %v2117 = vpack.c.b16 %v2061, %v2059
  %v2118 = vpack.c.b16 %v2062, %v2060
  %v2119 = vpack.c.b16 %v2065, %v2063
  %v2120 = vpack.c.b16 %v2066, %v2064
  %v2121 = vpack.c.b16 %v2069, %v2067
  %v2122 = vpack.c.b16 %v2070, %v2068
  %v2123 = vpack.c.b16 %v2073, %v2071
  %v2124 = vpack.c.b16 %v2074, %v2072
  %v2125 = vpack.c.b16 %v2077, %v2075
  %v2126 = vpack.c.b16 %v2078, %v2076
  %v2127 = vpack.c.b16 %v2081, %v2079
  %v2128 = vpack.c.b16 %v2082, %v2080
  %v2129 = vpack.c.b16 %v2085, %v2083
  %v2130 = vpack.c.b16 %v2086, %v2084
  %v2131 = vpack.c.b16 %v2089, %v2087
  %v2132 = vpack.c.b16 %v2090, %v2088
  %v2133 = vpack.c.b16 %v2093, %v2091
  %v2134 = vpack.c.b16 %v2094, %v2092
  %v2135 = vpack.c.b16 %v2097, %v2095
  %v2136 = vpack.c.b16 %v2098, %v2096
  %v2137 = vpack.c.b16 %v2101, %v2099
  %v2138 = vpack.c.b16 %v2102, %v2100
  %v2139 = vpack.c.b16 %v2105, %v2103
  %v2140 = vpack.c.b16 %v2106, %v2104
  %v2141 = vpack.c.b16 %v2109, %v2107
  %v2142 = vpack.c.b16 %v2110, %v2108
  %2175 = vmatpush.bf16.msra.mxu0 %v2125
  %2176 = vmatpush.bf16.msra.mxu0 %v2123
  %2177 = vmatpush.bf16.msra.mxu0 %v2121
  %2178 = vmatpush.bf16.msra.mxu0 %v2119
  %2179 = vmatpush.bf16.msra.mxu0 %v2117
  %2180 = vmatpush.bf16.msra.mxu0 %v2115
  %2181 = vmatpush.bf16.msra.mxu0 %v2113
  %2182 = vmatpush.bf16.msra.mxu0 %v2111
  %2183 = vmatmul.bf16.gmra.mxu0 %v966
  %v2184 = vpop.f32.mrf.mxu0
  %v2185 = vadd.f32 0.0, %v2184
  %v2186 = vpop.f32.mrf.mxu0
  %v2187 = vadd.f32 0.0, %v2186
  %2188 = vmatmul.bf16.gmra.mxu0 %v986
  %v2189 = vpop.f32.mrf.mxu0
  %v2190 = vadd.f32 0.0, %v2189
  %v2191 = vpop.f32.mrf.mxu0
  %v2192 = vadd.f32 0.0, %v2191
  %2193 = vmatmul.bf16.gmra.mxu0 %v1002
  %v2194 = vpop.f32.mrf.mxu0
  %v2195 = vadd.f32 0.0, %v2194
  %v2196 = vpop.f32.mrf.mxu0
  %v2197 = vadd.f32 0.0, %v2196
  %2198 = vmatmul.bf16.gmra.mxu0 %v1018
  %v2199 = vpop.f32.mrf.mxu0
  %v2200 = vadd.f32 0.0, %v2199
  %v2201 = vpop.f32.mrf.mxu0
  %v2202 = vadd.f32 0.0, %v2201
  %2203 = vdwg.mxu0
  %2204 = vmatpush.bf16.msra.mxu0 %v2141
  %2205 = vmatpush.bf16.msra.mxu0 %v2139
  %2206 = vmatpush.bf16.msra.mxu0 %v2137
  %2207 = vmatpush.bf16.msra.mxu0 %v2135
  %2208 = vmatpush.bf16.msra.mxu0 %v2133
  %2209 = vmatpush.bf16.msra.mxu0 %v2131
  %2210 = vmatpush.bf16.msra.mxu0 %v2129
  %2211 = vmatpush.bf16.msra.mxu0 %v2127
  %2212 = vmatmul.bf16.gmra.mxu0 %v978
  %v2213 = vpop.f32.mrf.mxu0
  %v2214 = vadd.f32 %v2185, %v2213
  %v2215 = vpop.f32.mrf.mxu0
  %v2216 = vadd.f32 %v2187, %v2215
  %2217 = vmatmul.bf16.gmra.mxu0 %v994
  %v2218 = vpop.f32.mrf.mxu0
  %v2219 = vadd.f32 %v2190, %v2218
  %v2220 = vpop.f32.mrf.mxu0
  %v2221 = vadd.f32 %v2192, %v2220
  %2222 = vmatmul.bf16.gmra.mxu0 %v1010
  %v2223 = vpop.f32.mrf.mxu0
  %v2224 = vadd.f32 %v2195, %v2223
  %v2225 = vpop.f32.mrf.mxu0
  %v2226 = vadd.f32 %v2197, %v2225
  %2227 = vmatmul.bf16.gmra.mxu0 %v1026
  %v2228 = vpop.f32.mrf.mxu0
  %v2229 = vadd.f32 %v2200, %v2228
  %v2230 = vpop.f32.mrf.mxu0
  %v2231 = vadd.f32 %v2202, %v2230
  %2232 = vdwg.mxu0
  %2233 = vmatpush.bf16.msra.mxu0 %v2126
  %2234 = vmatpush.bf16.msra.mxu0 %v2124
  %2235 = vmatpush.bf16.msra.mxu0 %v2122
  %2236 = vmatpush.bf16.msra.mxu0 %v2120
  %2237 = vmatpush.bf16.msra.mxu0 %v2118
  %2238 = vmatpush.bf16.msra.mxu0 %v2116
  %2239 = vmatpush.bf16.msra.mxu0 %v2114
  %2240 = vmatpush.bf16.msra.mxu0 %v2112
  %2241 = vmatmul.bf16.gmra.mxu0 %v966
  %v2242 = vpop.f32.mrf.mxu0
  %v2243 = vadd.f32 0.0, %v2242
  %v2244 = vpop.f32.mrf.mxu0
  %v2245 = vadd.f32 0.0, %v2244
  %2246 = vmatmul.bf16.gmra.mxu0 %v986
  %v2247 = vpop.f32.mrf.mxu0
  %v2248 = vadd.f32 0.0, %v2247
  %v2249 = vpop.f32.mrf.mxu0
  %v2250 = vadd.f32 0.0, %v2249
  %2251 = vmatmul.bf16.gmra.mxu0 %v1002
  %v2252 = vpop.f32.mrf.mxu0
  %v2253 = vadd.f32 0.0, %v2252
  %v2254 = vpop.f32.mrf.mxu0
  %v2255 = vadd.f32 0.0, %v2254
  %2256 = vmatmul.bf16.gmra.mxu0 %v1018
  %v2257 = vpop.f32.mrf.mxu0
  %v2258 = vadd.f32 0.0, %v2257
  %v2259 = vpop.f32.mrf.mxu0
  %v2260 = vadd.f32 0.0, %v2259
  %2261 = vdwg.mxu0
  %2262 = vmatpush.bf16.msra.mxu0 %v2142
  %2263 = vmatpush.bf16.msra.mxu0 %v2140
  %2264 = vmatpush.bf16.msra.mxu0 %v2138
  %2265 = vmatpush.bf16.msra.mxu0 %v2136
  %2266 = vmatpush.bf16.msra.mxu0 %v2134
  %2267 = vmatpush.bf16.msra.mxu0 %v2132
  %2268 = vmatpush.bf16.msra.mxu0 %v2130
  %2269 = vmatpush.bf16.msra.mxu0 %v2128
  %2270 = vmatmul.bf16.gmra.mxu0 %v978
  %v2271 = vpop.f32.mrf.mxu0
  %v2272 = vadd.f32 %v2243, %v2271
  %v2273 = vpop.f32.mrf.mxu0
  %v2274 = vadd.f32 %v2245, %v2273
  %2275 = vmatmul.bf16.gmra.mxu0 %v994
  %v2276 = vpop.f32.mrf.mxu0
  %v2277 = vadd.f32 %v2248, %v2276
  %v2278 = vpop.f32.mrf.mxu0
  %v2279 = vadd.f32 %v2250, %v2278
  %2280 = vmatmul.bf16.gmra.mxu0 %v1010
  %v2281 = vpop.f32.mrf.mxu0
  %v2282 = vadd.f32 %v2253, %v2281
  %v2283 = vpop.f32.mrf.mxu0
  %v2284 = vadd.f32 %v2255, %v2283
  %2285 = vmatmul.bf16.gmra.mxu0 %v1026
  %v2286 = vpop.f32.mrf.mxu0
  %v2287 = vadd.f32 %v2258, %v2286
  %v2288 = vpop.f32.mrf.mxu0
  %v2289 = vadd.f32 %v2260, %v2288
  %2290 = vdwg.mxu0
  %v2323 = vunpack.c.l.b16 %v1950
  %v2324 = vunpack.c.h.b16 %v1950
  %v2325 = vunpack.c.l.b16 %v1951
  %v2326 = vunpack.c.h.b16 %v1951
  %v2327 = vunpack.c.l.b16 %v1952
  %v2328 = vunpack.c.h.b16 %v1952
  %v2329 = vunpack.c.l.b16 %v1953
  %v2330 = vunpack.c.h.b16 %v1953
  %v2331 = vunpack.c.l.b16 %v1954
  %v2332 = vunpack.c.h.b16 %v1954
  %v2333 = vunpack.c.l.b16 %v1955
  %v2334 = vunpack.c.h.b16 %v1955
  %v2335 = vunpack.c.l.b16 %v1956
  %v2336 = vunpack.c.h.b16 %v1956
  %v2337 = vunpack.c.l.b16 %v1957
  %v2338 = vunpack.c.h.b16 %v1957
  %v2339 = vunpack.c.l.b16 %v1958
  %v2340 = vunpack.c.h.b16 %v1958
  %v2341 = vunpack.c.l.b16 %v1959
  %v2342 = vunpack.c.h.b16 %v1959
  %v2343 = vunpack.c.l.b16 %v1960
  %v2344 = vunpack.c.h.b16 %v1960
  %v2345 = vunpack.c.l.b16 %v1961
  %v2346 = vunpack.c.h.b16 %v1961
  %v2347 = vunpack.c.l.b16 %v1962
  %v2348 = vunpack.c.h.b16 %v1962
  %v2349 = vunpack.c.l.b16 %v1963
  %v2350 = vunpack.c.h.b16 %v1963
  %v2351 = vunpack.c.l.b16 %v1964
  %v2352 = vunpack.c.h.b16 %v1964
  %v2353 = vunpack.c.l.b16 %v1965
  %v2354 = vunpack.c.h.b16 %v1965
  %v2355 = vunpack.c.l.b16 %v1966
  %v2356 = vunpack.c.h.b16 %v1966
  %v2357 = vunpack.c.l.b16 %v1967
  %v2358 = vunpack.c.h.b16 %v1967
  %v2359 = vunpack.c.l.b16 %v1968
  %v2360 = vunpack.c.h.b16 %v1968
  %v2361 = vunpack.c.l.b16 %v1969
  %v2362 = vunpack.c.h.b16 %v1969
  %v2363 = vunpack.c.l.b16 %v1970
  %v2364 = vunpack.c.h.b16 %v1970
  %v2365 = vunpack.c.l.b16 %v1971
  %v2366 = vunpack.c.h.b16 %v1971
  %v2367 = vunpack.c.l.b16 %v1972
  %v2368 = vunpack.c.h.b16 %v1972
  %v2369 = vunpack.c.l.b16 %v1973
  %v2370 = vunpack.c.h.b16 %v1973
  %v2371 = vunpack.c.l.b16 %v1974
  %v2372 = vunpack.c.h.b16 %v1974
  %v2373 = vunpack.c.l.b16 %v1975
  %v2374 = vunpack.c.h.b16 %v1975
  %v2375 = vunpack.c.l.b16 %v1976
  %v2376 = vunpack.c.h.b16 %v1976
  %v2377 = vunpack.c.l.b16 %v1977
  %v2378 = vunpack.c.h.b16 %v1977
  %v2379 = vunpack.c.l.b16 %v1978
  %v2380 = vunpack.c.h.b16 %v1978
  %v2381 = vunpack.c.l.b16 %v1979
  %v2382 = vunpack.c.h.b16 %v1979
  %v2383 = vunpack.c.l.b16 %v1980
  %v2384 = vunpack.c.h.b16 %v1980
  %v2385 = vunpack.c.l.b16 %v1981
  %v2386 = vunpack.c.h.b16 %v1981
  %v2387 = vpack.c.b16 %v2325, %v2323
  %v2388 = vpack.c.b16 %v2326, %v2324
  %v2389 = vpack.c.b16 %v2329, %v2327
  %v2390 = vpack.c.b16 %v2330, %v2328
  %v2391 = vpack.c.b16 %v2333, %v2331
  %v2392 = vpack.c.b16 %v2334, %v2332
  %v2393 = vpack.c.b16 %v2337, %v2335
  %v2394 = vpack.c.b16 %v2338, %v2336
  %v2395 = vpack.c.b16 %v2341, %v2339
  %v2396 = vpack.c.b16 %v2342, %v2340
  %v2397 = vpack.c.b16 %v2345, %v2343
  %v2398 = vpack.c.b16 %v2346, %v2344
  %v2399 = vpack.c.b16 %v2349, %v2347
  %v2400 = vpack.c.b16 %v2350, %v2348
  %v2401 = vpack.c.b16 %v2353, %v2351
  %v2402 = vpack.c.b16 %v2354, %v2352
  %v2403 = vpack.c.b16 %v2357, %v2355
  %v2404 = vpack.c.b16 %v2358, %v2356
  %v2405 = vpack.c.b16 %v2361, %v2359
  %v2406 = vpack.c.b16 %v2362, %v2360
  %v2407 = vpack.c.b16 %v2365, %v2363
  %v2408 = vpack.c.b16 %v2366, %v2364
  %v2409 = vpack.c.b16 %v2369, %v2367
  %v2410 = vpack.c.b16 %v2370, %v2368
  %v2411 = vpack.c.b16 %v2373, %v2371
  %v2412 = vpack.c.b16 %v2374, %v2372
  %v2413 = vpack.c.b16 %v2377, %v2375
  %v2414 = vpack.c.b16 %v2378, %v2376
  %v2415 = vpack.c.b16 %v2381, %v2379
  %v2416 = vpack.c.b16 %v2382, %v2380
  %v2417 = vpack.c.b16 %v2385, %v2383
  %v2418 = vpack.c.b16 %v2386, %v2384
  %2451 = vmatpush.bf16.msra.mxu0 %v2401
  %2452 = vmatpush.bf16.msra.mxu0 %v2399
  %2453 = vmatpush.bf16.msra.mxu0 %v2397
  %2454 = vmatpush.bf16.msra.mxu0 %v2395
  %2455 = vmatpush.bf16.msra.mxu0 %v2393
  %2456 = vmatpush.bf16.msra.mxu0 %v2391
  %2457 = vmatpush.bf16.msra.mxu0 %v2389
  %2458 = vmatpush.bf16.msra.mxu0 %v2387
  %2459 = vmatmul.bf16.gmra.mxu0 %v845
  %v2460 = vpop.f32.mrf.mxu0
  %v2461 = vadd.f32 %v2214, %v2460
  %v2462 = vpop.f32.mrf.mxu0
  %v2463 = vadd.f32 %v2216, %v2462
  %2464 = vmatmul.bf16.gmra.mxu0 %v847
  %v2465 = vpop.f32.mrf.mxu0
  %v2466 = vadd.f32 %v2219, %v2465
  %v2467 = vpop.f32.mrf.mxu0
  %v2468 = vadd.f32 %v2221, %v2467
  %2469 = vmatmul.bf16.gmra.mxu0 %v849
  %v2470 = vpop.f32.mrf.mxu0
  %v2471 = vadd.f32 %v2224, %v2470
  %v2472 = vpop.f32.mrf.mxu0
  %v2473 = vadd.f32 %v2226, %v2472
  %2474 = vmatmul.bf16.gmra.mxu0 %v851
  %v2475 = vpop.f32.mrf.mxu0
  %v2476 = vadd.f32 %v2229, %v2475
  %v2477 = vpop.f32.mrf.mxu0
  %v2478 = vadd.f32 %v2231, %v2477
  %2479 = vdwg.mxu0
  %2480 = vmatpush.bf16.msra.mxu0 %v2417
  %2481 = vmatpush.bf16.msra.mxu0 %v2415
  %2482 = vmatpush.bf16.msra.mxu0 %v2413
  %2483 = vmatpush.bf16.msra.mxu0 %v2411
  %2484 = vmatpush.bf16.msra.mxu0 %v2409
  %2485 = vmatpush.bf16.msra.mxu0 %v2407
  %2486 = vmatpush.bf16.msra.mxu0 %v2405
  %2487 = vmatpush.bf16.msra.mxu0 %v2403
  %2488 = vmatmul.bf16.gmra.mxu0 %v846
  %v2489 = vpop.f32.mrf.mxu0
  %v2490 = vadd.f32 %v2461, %v2489
  %v2491 = vpop.f32.mrf.mxu0
  %v2492 = vadd.f32 %v2463, %v2491
  %2493 = vmatmul.bf16.gmra.mxu0 %v848
  %v2494 = vpop.f32.mrf.mxu0
  %v2495 = vadd.f32 %v2466, %v2494
  %v2496 = vpop.f32.mrf.mxu0
  %v2497 = vadd.f32 %v2468, %v2496
  %2498 = vmatmul.bf16.gmra.mxu0 %v850
  %v2499 = vpop.f32.mrf.mxu0
  %v2500 = vadd.f32 %v2471, %v2499
  %v2501 = vpop.f32.mrf.mxu0
  %v2502 = vadd.f32 %v2473, %v2501
  %2503 = vmatmul.bf16.gmra.mxu0 %v852
  %v2504 = vpop.f32.mrf.mxu0
  %v2505 = vadd.f32 %v2476, %v2504
  %v2506 = vpop.f32.mrf.mxu0
  %v2507 = vadd.f32 %v2478, %v2506
  %2508 = vdwg.mxu0
  %2509 = vmatpush.bf16.msra.mxu0 %v2402
  %2510 = vmatpush.bf16.msra.mxu0 %v2400
  %2511 = vmatpush.bf16.msra.mxu0 %v2398
  %2512 = vmatpush.bf16.msra.mxu0 %v2396
  %2513 = vmatpush.bf16.msra.mxu0 %v2394
  %2514 = vmatpush.bf16.msra.mxu0 %v2392
  %2515 = vmatpush.bf16.msra.mxu0 %v2390
  %2516 = vmatpush.bf16.msra.mxu0 %v2388
  %2517 = vmatmul.bf16.gmra.mxu0 %v845
  %v2518 = vpop.f32.mrf.mxu0
  %v2519 = vadd.f32 %v2272, %v2518
  %v2520 = vpop.f32.mrf.mxu0
  %v2521 = vadd.f32 %v2274, %v2520
  %2522 = vmatmul.bf16.gmra.mxu0 %v847
  %v2523 = vpop.f32.mrf.mxu0
  %v2524 = vadd.f32 %v2277, %v2523
  %v2525 = vpop.f32.mrf.mxu0
  %v2526 = vadd.f32 %v2279, %v2525
  %2527 = vmatmul.bf16.gmra.mxu0 %v849
  %v2528 = vpop.f32.mrf.mxu0
  %v2529 = vadd.f32 %v2282, %v2528
  %v2530 = vpop.f32.mrf.mxu0
  %v2531 = vadd.f32 %v2284, %v2530
  %2532 = vmatmul.bf16.gmra.mxu0 %v851
  %v2533 = vpop.f32.mrf.mxu0
  %v2534 = vadd.f32 %v2287, %v2533
  %v2535 = vpop.f32.mrf.mxu0
  %v2536 = vadd.f32 %v2289, %v2535
  %2537 = vdwg.mxu0
  %2538 = vmatpush.bf16.msra.mxu0 %v2418
  %2539 = vmatpush.bf16.msra.mxu0 %v2416
  %2540 = vmatpush.bf16.msra.mxu0 %v2414
  %2541 = vmatpush.bf16.msra.mxu0 %v2412
  %2542 = vmatpush.bf16.msra.mxu0 %v2410
  %2543 = vmatpush.bf16.msra.mxu0 %v2408
  %2544 = vmatpush.bf16.msra.mxu0 %v2406
  %2545 = vmatpush.bf16.msra.mxu0 %v2404
  %2546 = vmatmul.bf16.gmra.mxu0 %v846
  %v2547 = vpop.f32.mrf.mxu0
  %v2548 = vadd.f32 %v2519, %v2547
  %v2549 = vpop.f32.mrf.mxu0
  %v2550 = vadd.f32 %v2521, %v2549
  %2551 = vmatmul.bf16.gmra.mxu0 %v848
  %v2552 = vpop.f32.mrf.mxu0
  %v2553 = vadd.f32 %v2524, %v2552
  %v2554 = vpop.f32.mrf.mxu0
  %v2555 = vadd.f32 %v2526, %v2554
  %2556 = vmatmul.bf16.gmra.mxu0 %v850
  %v2557 = vpop.f32.mrf.mxu0
  %v2558 = vadd.f32 %v2529, %v2557
  %v2559 = vpop.f32.mrf.mxu0
  %v2560 = vadd.f32 %v2531, %v2559
  %2561 = vmatmul.bf16.gmra.mxu0 %v852
  %v2562 = vpop.f32.mrf.mxu0
  %v2563 = vadd.f32 %v2534, %v2562
  %v2564 = vpop.f32.mrf.mxu0
  %v2565 = vadd.f32 %v2536, %v2564
  %2566 = vdwg.mxu0
  %s2567 = scalar_lea.vmem %s2, 1280
  %v2568 = vld [vmem:[%s2567] sm:$0xff]
  %v2569 = vld [vmem:[%s2567 + $0x8] sm:$0xff]
  %v2570 = vld [vmem:[%s2567 + $0x10] sm:$0xff]
  %v2571 = vld [vmem:[%s2567 + $0x18] sm:$0xff]
  %v2572 = vld [vmem:[%s2567 + $0x20] sm:$0xff]
  %v2573 = vld [vmem:[%s2567 + $0x28] sm:$0xff]
  %v2574 = vld [vmem:[%s2567 + $0x30] sm:$0xff]
  %v2575 = vld [vmem:[%s2567 + $0x38] sm:$0xff]
  %v2576 = vld [vmem:[%s2567 + $0x40] sm:$0xff]
  %v2577 = vld [vmem:[%s2567 + $0x48] sm:$0xff]
  %v2578 = vld [vmem:[%s2567 + $0x50] sm:$0xff]
  %v2579 = vld [vmem:[%s2567 + $0x58] sm:$0xff]
  %v2580 = vld [vmem:[%s2567 + $0x60] sm:$0xff]
  %v2581 = vld [vmem:[%s2567 + $0x68] sm:$0xff]
  %v2582 = vld [vmem:[%s2567 + $0x70] sm:$0xff]
  %v2583 = vld [vmem:[%s2567 + $0x78] sm:$0xff]
  %v2584 = vld [vmem:[%s2567 + $0x80] sm:$0xff]
  %v2585 = vld [vmem:[%s2567 + $0x88] sm:$0xff]
  %v2586 = vld [vmem:[%s2567 + $0x90] sm:$0xff]
  %v2587 = vld [vmem:[%s2567 + $0x98] sm:$0xff]
  %v2588 = vld [vmem:[%s2567 + $0xa0] sm:$0xff]
  %v2589 = vld [vmem:[%s2567 + $0xa8] sm:$0xff]
  %v2590 = vld [vmem:[%s2567 + $0xb0] sm:$0xff]
  %v2591 = vld [vmem:[%s2567 + $0xb8] sm:$0xff]
  %v2592 = vld [vmem:[%s2567 + $0xc0] sm:$0xff]
  %v2593 = vld [vmem:[%s2567 + $0xc8] sm:$0xff]
  %v2594 = vld [vmem:[%s2567 + $0xd0] sm:$0xff]
  %v2595 = vld [vmem:[%s2567 + $0xd8] sm:$0xff]
  %v2596 = vld [vmem:[%s2567 + $0xe0] sm:$0xff]
  %v2597 = vld [vmem:[%s2567 + $0xe8] sm:$0xff]
  %v2598 = vld [vmem:[%s2567 + $0xf0] sm:$0xff]
  %v2599 = vld [vmem:[%s2567 + $0xf8] sm:$0xff]
  %v2632 = vunpack.c.l.b16 %v2568
  %v2633 = vunpack.c.h.b16 %v2568
  %v2634 = vunpack.c.l.b16 %v2569
  %v2635 = vunpack.c.h.b16 %v2569
  %v2636 = vunpack.c.l.b16 %v2570
  %v2637 = vunpack.c.h.b16 %v2570
  %v2638 = vunpack.c.l.b16 %v2571
  %v2639 = vunpack.c.h.b16 %v2571
  %v2640 = vunpack.c.l.b16 %v2572
  %v2641 = vunpack.c.h.b16 %v2572
  %v2642 = vunpack.c.l.b16 %v2573
  %v2643 = vunpack.c.h.b16 %v2573
  %v2644 = vunpack.c.l.b16 %v2574
  %v2645 = vunpack.c.h.b16 %v2574
  %v2646 = vunpack.c.l.b16 %v2575
  %v2647 = vunpack.c.h.b16 %v2575
  %v2648 = vunpack.c.l.b16 %v2576
  %v2649 = vunpack.c.h.b16 %v2576
  %v2650 = vunpack.c.l.b16 %v2577
  %v2651 = vunpack.c.h.b16 %v2577
  %v2652 = vunpack.c.l.b16 %v2578
  %v2653 = vunpack.c.h.b16 %v2578
  %v2654 = vunpack.c.l.b16 %v2579
  %v2655 = vunpack.c.h.b16 %v2579
  %v2656 = vunpack.c.l.b16 %v2580
  %v2657 = vunpack.c.h.b16 %v2580
  %v2658 = vunpack.c.l.b16 %v2581
  %v2659 = vunpack.c.h.b16 %v2581
  %v2660 = vunpack.c.l.b16 %v2582
  %v2661 = vunpack.c.h.b16 %v2582
  %v2662 = vunpack.c.l.b16 %v2583
  %v2663 = vunpack.c.h.b16 %v2583
  %v2664 = vunpack.c.l.b16 %v2584
  %v2665 = vunpack.c.h.b16 %v2584
  %v2666 = vunpack.c.l.b16 %v2585
  %v2667 = vunpack.c.h.b16 %v2585
  %v2668 = vunpack.c.l.b16 %v2586
  %v2669 = vunpack.c.h.b16 %v2586
  %v2670 = vunpack.c.l.b16 %v2587
  %v2671 = vunpack.c.h.b16 %v2587
  %v2672 = vunpack.c.l.b16 %v2588
  %v2673 = vunpack.c.h.b16 %v2588
  %v2674 = vunpack.c.l.b16 %v2589
  %v2675 = vunpack.c.h.b16 %v2589
  %v2676 = vunpack.c.l.b16 %v2590
  %v2677 = vunpack.c.h.b16 %v2590
  %v2678 = vunpack.c.l.b16 %v2591
  %v2679 = vunpack.c.h.b16 %v2591
  %v2680 = vunpack.c.l.b16 %v2592
  %v2681 = vunpack.c.h.b16 %v2592
  %v2682 = vunpack.c.l.b16 %v2593
  %v2683 = vunpack.c.h.b16 %v2593
  %v2684 = vunpack.c.l.b16 %v2594
  %v2685 = vunpack.c.h.b16 %v2594
  %v2686 = vunpack.c.l.b16 %v2595
  %v2687 = vunpack.c.h.b16 %v2595
  %v2688 = vunpack.c.l.b16 %v2596
  %v2689 = vunpack.c.h.b16 %v2596
  %v2690 = vunpack.c.l.b16 %v2597
  %v2691 = vunpack.c.h.b16 %v2597
  %v2692 = vunpack.c.l.b16 %v2598
  %v2693 = vunpack.c.h.b16 %v2598
  %v2694 = vunpack.c.l.b16 %v2599
  %v2695 = vunpack.c.h.b16 %v2599
  %v2696 = vpack.c.b16 %v2634, %v2632
  %v2697 = vpack.c.b16 %v2635, %v2633
  %v2698 = vpack.c.b16 %v2638, %v2636
  %v2699 = vpack.c.b16 %v2639, %v2637
  %v2700 = vpack.c.b16 %v2642, %v2640
  %v2701 = vpack.c.b16 %v2643, %v2641
  %v2702 = vpack.c.b16 %v2646, %v2644
  %v2703 = vpack.c.b16 %v2647, %v2645
  %v2704 = vpack.c.b16 %v2650, %v2648
  %v2705 = vpack.c.b16 %v2651, %v2649
  %v2706 = vpack.c.b16 %v2654, %v2652
  %v2707 = vpack.c.b16 %v2655, %v2653
  %v2708 = vpack.c.b16 %v2658, %v2656
  %v2709 = vpack.c.b16 %v2659, %v2657
  %v2710 = vpack.c.b16 %v2662, %v2660
  %v2711 = vpack.c.b16 %v2663, %v2661
  %v2712 = vpack.c.b16 %v2666, %v2664
  %v2713 = vpack.c.b16 %v2667, %v2665
  %v2714 = vpack.c.b16 %v2670, %v2668
  %v2715 = vpack.c.b16 %v2671, %v2669
  %v2716 = vpack.c.b16 %v2674, %v2672
  %v2717 = vpack.c.b16 %v2675, %v2673
  %v2718 = vpack.c.b16 %v2678, %v2676
  %v2719 = vpack.c.b16 %v2679, %v2677
  %v2720 = vpack.c.b16 %v2682, %v2680
  %v2721 = vpack.c.b16 %v2683, %v2681
  %v2722 = vpack.c.b16 %v2686, %v2684
  %v2723 = vpack.c.b16 %v2687, %v2685
  %v2724 = vpack.c.b16 %v2690, %v2688
  %v2725 = vpack.c.b16 %v2691, %v2689
  %v2726 = vpack.c.b16 %v2694, %v2692
  %v2727 = vpack.c.b16 %v2695, %v2693
  %2760 = vmatpush.bf16.msra.mxu0 %v2710
  %2761 = vmatpush.bf16.msra.mxu0 %v2708
  %2762 = vmatpush.bf16.msra.mxu0 %v2706
  %2763 = vmatpush.bf16.msra.mxu0 %v2704
  %2764 = vmatpush.bf16.msra.mxu0 %v2702
  %2765 = vmatpush.bf16.msra.mxu0 %v2700
  %2766 = vmatpush.bf16.msra.mxu0 %v2698
  %2767 = vmatpush.bf16.msra.mxu0 %v2696
  %2768 = vmatmul.bf16.gmra.mxu0 %v1633
  %v2769 = vpop.f32.mrf.mxu0
  %v2770 = vadd.f32 0.0, %v2769
  %v2771 = vpop.f32.mrf.mxu0
  %v2772 = vadd.f32 0.0, %v2771
  %2773 = vmatmul.bf16.gmra.mxu0 %v1638
  %v2774 = vpop.f32.mrf.mxu0
  %v2775 = vadd.f32 0.0, %v2774
  %v2776 = vpop.f32.mrf.mxu0
  %v2777 = vadd.f32 0.0, %v2776
  %2778 = vmatmul.bf16.gmra.mxu0 %v1642
  %v2779 = vpop.f32.mrf.mxu0
  %v2780 = vadd.f32 0.0, %v2779
  %v2781 = vpop.f32.mrf.mxu0
  %v2782 = vadd.f32 0.0, %v2781
  %2783 = vmatmul.bf16.gmra.mxu0 %v1646
  %v2784 = vpop.f32.mrf.mxu0
  %v2785 = vadd.f32 0.0, %v2784
  %v2786 = vpop.f32.mrf.mxu0
  %v2787 = vadd.f32 0.0, %v2786
  %2788 = vdwg.mxu0
  %2789 = vmatpush.bf16.msra.mxu0 %v2726
  %2790 = vmatpush.bf16.msra.mxu0 %v2724
  %2791 = vmatpush.bf16.msra.mxu0 %v2722
  %2792 = vmatpush.bf16.msra.mxu0 %v2720
  %2793 = vmatpush.bf16.msra.mxu0 %v2718
  %2794 = vmatpush.bf16.msra.mxu0 %v2716
  %2795 = vmatpush.bf16.msra.mxu0 %v2714
  %2796 = vmatpush.bf16.msra.mxu0 %v2712
  %2797 = vmatmul.bf16.gmra.mxu0 %v1636
  %v2798 = vpop.f32.mrf.mxu0
  %v2799 = vadd.f32 %v2770, %v2798
  %v2800 = vpop.f32.mrf.mxu0
  %v2801 = vadd.f32 %v2772, %v2800
  %2802 = vmatmul.bf16.gmra.mxu0 %v1640
  %v2803 = vpop.f32.mrf.mxu0
  %v2804 = vadd.f32 %v2775, %v2803
  %v2805 = vpop.f32.mrf.mxu0
  %v2806 = vadd.f32 %v2777, %v2805
  %2807 = vmatmul.bf16.gmra.mxu0 %v1644
  %v2808 = vpop.f32.mrf.mxu0
  %v2809 = vadd.f32 %v2780, %v2808
  %v2810 = vpop.f32.mrf.mxu0
  %v2811 = vadd.f32 %v2782, %v2810
  %2812 = vmatmul.bf16.gmra.mxu0 %v1648
  %v2813 = vpop.f32.mrf.mxu0
  %v2814 = vadd.f32 %v2785, %v2813
  %v2815 = vpop.f32.mrf.mxu0
  %v2816 = vadd.f32 %v2787, %v2815
  %2817 = vdwg.mxu0
  %2818 = vmatpush.bf16.msra.mxu0 %v2711
  %2819 = vmatpush.bf16.msra.mxu0 %v2709
  %2820 = vmatpush.bf16.msra.mxu0 %v2707
  %2821 = vmatpush.bf16.msra.mxu0 %v2705
  %2822 = vmatpush.bf16.msra.mxu0 %v2703
  %2823 = vmatpush.bf16.msra.mxu0 %v2701
  %2824 = vmatpush.bf16.msra.mxu0 %v2699
  %2825 = vmatpush.bf16.msra.mxu0 %v2697
  %2826 = vmatmul.bf16.gmra.mxu0 %v1633
  %v2827 = vpop.f32.mrf.mxu0
  %v2828 = vadd.f32 0.0, %v2827
  %v2829 = vpop.f32.mrf.mxu0
  %v2830 = vadd.f32 0.0, %v2829
  %2831 = vmatmul.bf16.gmra.mxu0 %v1638
  %v2832 = vpop.f32.mrf.mxu0
  %v2833 = vadd.f32 0.0, %v2832
  %v2834 = vpop.f32.mrf.mxu0
  %v2835 = vadd.f32 0.0, %v2834
  %2836 = vmatmul.bf16.gmra.mxu0 %v1642
  %v2837 = vpop.f32.mrf.mxu0
  %v2838 = vadd.f32 0.0, %v2837
  %v2839 = vpop.f32.mrf.mxu0
  %v2840 = vadd.f32 0.0, %v2839
  %2841 = vmatmul.bf16.gmra.mxu0 %v1646
  %v2842 = vpop.f32.mrf.mxu0
  %v2843 = vadd.f32 0.0, %v2842
  %v2844 = vpop.f32.mrf.mxu0
  %v2845 = vadd.f32 0.0, %v2844
  %2846 = vdwg.mxu0
  %2847 = vmatpush.bf16.msra.mxu0 %v2727
  %2848 = vmatpush.bf16.msra.mxu0 %v2725
  %2849 = vmatpush.bf16.msra.mxu0 %v2723
  %2850 = vmatpush.bf16.msra.mxu0 %v2721
  %2851 = vmatpush.bf16.msra.mxu0 %v2719
  %2852 = vmatpush.bf16.msra.mxu0 %v2717
  %2853 = vmatpush.bf16.msra.mxu0 %v2715
  %2854 = vmatpush.bf16.msra.mxu0 %v2713
  %2855 = vmatmul.bf16.gmra.mxu0 %v1636
  %v2856 = vpop.f32.mrf.mxu0
  %v2857 = vadd.f32 %v2828, %v2856
  %v2858 = vpop.f32.mrf.mxu0
  %v2859 = vadd.f32 %v2830, %v2858
  %2860 = vmatmul.bf16.gmra.mxu0 %v1640
  %v2861 = vpop.f32.mrf.mxu0
  %v2862 = vadd.f32 %v2833, %v2861
  %v2863 = vpop.f32.mrf.mxu0
  %v2864 = vadd.f32 %v2835, %v2863
  %2865 = vmatmul.bf16.gmra.mxu0 %v1644
  %v2866 = vpop.f32.mrf.mxu0
  %v2867 = vadd.f32 %v2838, %v2866
  %v2868 = vpop.f32.mrf.mxu0
  %v2869 = vadd.f32 %v2840, %v2868
  %2870 = vmatmul.bf16.gmra.mxu0 %v1648
  %v2871 = vpop.f32.mrf.mxu0
  %v2872 = vadd.f32 %v2843, %v2871
  %v2873 = vpop.f32.mrf.mxu0
  %v2874 = vadd.f32 %v2845, %v2873
  %2875 = vdwg.mxu0
  %v2876 = vadd.f32 %v2490, %v2799
  %v2877 = vadd.f32 %v2548, %v2857
  %v2878 = vadd.f32 %v2492, %v2801
  %v2879 = vadd.f32 %v2550, %v2859
  %v2880 = vadd.f32 %v2495, %v2804
  %v2881 = vadd.f32 %v2553, %v2862
  %v2882 = vadd.f32 %v2497, %v2806
  %v2883 = vadd.f32 %v2555, %v2864
  %v2884 = vadd.f32 %v2500, %v2809
  %v2885 = vadd.f32 %v2558, %v2867
  %v2886 = vadd.f32 %v2502, %v2811
  %v2887 = vadd.f32 %v2560, %v2869
  %v2888 = vadd.f32 %v2505, %v2814
  %v2889 = vadd.f32 %v2563, %v2872
  %v2890 = vadd.f32 %v2507, %v2816
  %v2891 = vadd.f32 %v2565, %v2874
  %v2892 = vmax.f32 %v1933, %v2876
  %v2893 = vmax.f32 %v1934, %v2877
  %v2894 = vmax.f32 %v1935, %v2878
  %v2895 = vmax.f32 %v1936, %v2879
  %v2896 = vmax.f32 %v1937, %v2880
  %v2897 = vmax.f32 %v1938, %v2881
  %v2898 = vmax.f32 %v1939, %v2882
  %v2899 = vmax.f32 %v1940, %v2883
  %v2900 = vmax.f32 %v1941, %v2884
  %v2901 = vmax.f32 %v1942, %v2885
  %v2902 = vmax.f32 %v1943, %v2886
  %v2903 = vmax.f32 %v1944, %v2887
  %v2904 = vmax.f32 %v1945, %v2888
  %v2905 = vmax.f32 %v1946, %v2889
  %v2906 = vmax.f32 %v1947, %v2890
  %v2907 = vmax.f32 %v1948, %v2891
  %v2908 = vmax.f32 %v2892, %v2893
  %v2909 = vmax.f32 %v2894, %v2895
  %v2910 = vmax.f32 %v2896, %v2897
  %v2911 = vmax.f32 %v2898, %v2899
  %v2912 = vmax.f32 %v2900, %v2901
  %v2913 = vmax.f32 %v2902, %v2903
  %v2914 = vmax.f32 %v2904, %v2905
  %v2915 = vmax.f32 %v2906, %v2907
  %v2916 = vld [vmem:[%s4] sm:$0x1]
  %v2918 = vperm.slane %v2916, 0
  %v2920 = vadd.f32 %v2908, %v2918
  %v2921 = vadd.f32 %v2909, %v2918
  %v2922 = vadd.f32 %v2910, %v2918
  %v2923 = vadd.f32 %v2911, %v2918
  %v2924 = vadd.f32 %v2912, %v2918
  %v2925 = vadd.f32 %v2913, %v2918
  %v2926 = vadd.f32 %v2914, %v2918
  %v2927 = vadd.f32 %v2915, %v2918
  %v2928 = vmax.f32 %v2920, 0.0
  %v2929 = vmax.f32 %v2921, 0.0
  %v2930 = vmax.f32 %v2922, 0.0
  %v2931 = vmax.f32 %v2923, 0.0
  %v2932 = vmax.f32 %v2924, 0.0
  %v2933 = vmax.f32 %v2925, 0.0
  %v2934 = vmax.f32 %v2926, 0.0
  %v2935 = vmax.f32 %v2927, 0.0
  %2936 = vst [vmem:[#allocation3] sm:$0xff] %v2928
  %2937 = vst [vmem:[#allocation3 + $0x8] sm:$0xff] %v2929
  %2938 = vst [vmem:[#allocation3 + $0x10] sm:$0xff] %v2930
  %2939 = vst [vmem:[#allocation3 + $0x18] sm:$0xff] %v2931
  %2940 = vst [vmem:[#allocation3 + $0x20] sm:$0xff] %v2932
  %2941 = vst [vmem:[#allocation3 + $0x28] sm:$0xff] %v2933
  %2942 = vst [vmem:[#allocation3 + $0x30] sm:$0xff] %v2934
  %2943 = vst [vmem:[#allocation3 + $0x38] sm:$0xff] %v2935
  %v2944 = vld [vmem:[%s6] sm:$0x1]
  %v2945 = vld [vmem:[#allocation3] ss:$8 sm:$0xf]
  %v2946 = vld [vmem:[#allocation3] ss:$8 sm:$0xf0]
  %v2947 = vor.u32 %v2945, %v2946
  %v2948 = vpack.c.bf16 %v2947, %v2947
  %v2949 = vld [vmem:[%s5] sm:$0xf]
  %v2950 = vld [vmem:[%s5 + $0x4] sm:$0xf]
  %v2951 = vld [vmem:[%s5 + $0x8] sm:$0xf]
  %v2952 = vld [vmem:[%s5 + $0xc] sm:$0xf]
  %v2953 = vld [vmem:[%s5 + $0x10] sm:$0xf]
  %v2954 = vld [vmem:[%s5 + $0x14] sm:$0xf]
  %v2955 = vld [vmem:[%s5 + $0x18] sm:$0xf]
  %v2956 = vld [vmem:[%s5 + $0x1c] sm:$0xf]
  %v2957 = vld [vmem:[%s5 + $0x20] sm:$0xf]
  %v2958 = vld [vmem:[%s5 + $0x24] sm:$0xf]
  %v2959 = vld [vmem:[%s5 + $0x28] sm:$0xf]
  %v2960 = vld [vmem:[%s5 + $0x2c] sm:$0xf]
  %v2961 = vld [vmem:[%s5 + $0x30] sm:$0xf]
  %v2962 = vld [vmem:[%s5 + $0x34] sm:$0xf]
  %v2963 = vld [vmem:[%s5 + $0x38] sm:$0xf]
  %v2964 = vld [vmem:[%s5 + $0x3c] sm:$0xf]
  %v2981 = vunpack.c.l.b16 %v2949
  %v2982 = vunpack.c.l.b16 %v2950
  %v2983 = vunpack.c.l.b16 %v2951
  %v2984 = vunpack.c.l.b16 %v2952
  %v2985 = vunpack.c.l.b16 %v2953
  %v2986 = vunpack.c.l.b16 %v2954
  %v2987 = vunpack.c.l.b16 %v2955
  %v2988 = vunpack.c.l.b16 %v2956
  %v2989 = vunpack.c.l.b16 %v2957
  %v2990 = vunpack.c.l.b16 %v2958
  %v2991 = vunpack.c.l.b16 %v2959
  %v2992 = vunpack.c.l.b16 %v2960
  %v2993 = vunpack.c.l.b16 %v2961
  %v2994 = vunpack.c.l.b16 %v2962
  %v2995 = vunpack.c.l.b16 %v2963
  %v2996 = vunpack.c.l.b16 %v2964
  %v2997 = vpack.c.b16 %v2982, %v2981
  %v2998 = vpack.c.b16 %v2984, %v2983
  %v2999 = vpack.c.b16 %v2986, %v2985
  %v3000 = vpack.c.b16 %v2988, %v2987
  %v3001 = vpack.c.b16 %v2990, %v2989
  %v3002 = vpack.c.b16 %v2992, %v2991
  %v3003 = vpack.c.b16 %v2994, %v2993
  %v3004 = vpack.c.b16 %v2996, %v2995
  %3013 = vmatpush.bf16.msra.mxu0 %v3004
  %3014 = vmatpush.bf16.msra.mxu0 %v3003
  %3015 = vmatpush.bf16.msra.mxu0 %v3002
  %3016 = vmatpush.bf16.msra.mxu0 %v3001
  %3017 = vmatpush.bf16.msra.mxu0 %v3000
  %3018 = vmatpush.bf16.msra.mxu0 %v2999
  %3019 = vmatpush.bf16.msra.mxu0 %v2998
  %3020 = vmatpush.bf16.msra.mxu0 %v2997
  %3021 = vmatmul.bf16.gmra.mxu0 %v2948
  %v3022 = vpop.f32.mrf.mxu0
  %v3023 = vadd.f32 0.0, %v3022
  %v3024 = vpop.f32.mrf.mxu0
  %3025 = vdwg.mxu0
  %v3027 = vperm.slane %v2944, 0
  %v3029 = vadd.f32 %v3027, %v3023
  %s3030 = scalar_lea.vmem [#allocation3], 1
  %v3031 = vld [vmem:[%s3030] ss:$8 sm:$0xf]
  %v3032 = vld [vmem:[%s3030] ss:$8 sm:$0xf0]
  %v3033 = vor.u32 %v3031, %v3032
  %v3034 = vpack.c.bf16 %v3033, %v3033
  %s3035 = scalar_lea.vmem %s5, 64
  %v3036 = vld [vmem:[%s3035] sm:$0xf]
  %v3037 = vld [vmem:[%s3035 + $0x4] sm:$0xf]
  %v3038 = vld [vmem:[%s3035 + $0x8] sm:$0xf]
  %v3039 = vld [vmem:[%s3035 + $0xc] sm:$0xf]
  %v3040 = vld [vmem:[%s3035 + $0x10] sm:$0xf]
  %v3041 = vld [vmem:[%s3035 + $0x14] sm:$0xf]
  %v3042 = vld [vmem:[%s3035 + $0x18] sm:$0xf]
  %v3043 = vld [vmem:[%s3035 + $0x1c] sm:$0xf]
  %v3044 = vld [vmem:[%s3035 + $0x20] sm:$0xf]
  %v3045 = vld [vmem:[%s3035 + $0x24] sm:$0xf]
  %v3046 = vld [vmem:[%s3035 + $0x28] sm:$0xf]
  %v3047 = vld [vmem:[%s3035 + $0x2c] sm:$0xf]
  %v3048 = vld [vmem:[%s3035 + $0x30] sm:$0xf]
  %v3049 = vld [vmem:[%s3035 + $0x34] sm:$0xf]
  %v3050 = vld [vmem:[%s3035 + $0x38] sm:$0xf]
  %v3051 = vld [vmem:[%s3035 + $0x3c] sm:$0xf]
  %v3068 = vunpack.c.l.b16 %v3036
  %v3069 = vunpack.c.l.b16 %v3037
  %v3070 = vunpack.c.l.b16 %v3038
  %v3071 = vunpack.c.l.b16 %v3039
  %v3072 = vunpack.c.l.b16 %v3040
  %v3073 = vunpack.c.l.b16 %v3041
  %v3074 = vunpack.c.l.b16 %v3042
  %v3075 = vunpack.c.l.b16 %v3043
  %v3076 = vunpack.c.l.b16 %v3044
  %v3077 = vunpack.c.l.b16 %v3045
  %v3078 = vunpack.c.l.b16 %v3046
  %v3079 = vunpack.c.l.b16 %v3047
  %v3080 = vunpack.c.l.b16 %v3048
  %v3081 = vunpack.c.l.b16 %v3049
  %v3082 = vunpack.c.l.b16 %v3050
  %v3083 = vunpack.c.l.b16 %v3051
  %v3084 = vpack.c.b16 %v3069, %v3068
  %v3085 = vpack.c.b16 %v3071, %v3070
  %v3086 = vpack.c.b16 %v3073, %v3072
  %v3087 = vpack.c.b16 %v3075, %v3074
  %v3088 = vpack.c.b16 %v3077, %v3076
  %v3089 = vpack.c.b16 %v3079, %v3078
  %v3090 = vpack.c.b16 %v3081, %v3080
  %v3091 = vpack.c.b16 %v3083, %v3082
  %3100 = vmatpush.bf16.msra.mxu0 %v3091
  %3101 = vmatpush.bf16.msra.mxu0 %v3090
  %3102 = vmatpush.bf16.msra.mxu0 %v3089
  %3103 = vmatpush.bf16.msra.mxu0 %v3088
  %3104 = vmatpush.bf16.msra.mxu0 %v3087
  %3105 = vmatpush.bf16.msra.mxu0 %v3086
  %3106 = vmatpush.bf16.msra.mxu0 %v3085
  %3107 = vmatpush.bf16.msra.mxu0 %v3084
  %3108 = vmatmul.bf16.gmra.mxu0 %v3034
  %v3109 = vpop.f32.mrf.mxu0
  %v3110 = vadd.f32 0.0, %v3109
  %v3111 = vpop.f32.mrf.mxu0
  %3112 = vdwg.mxu0
  %v3113 = vadd.f32 %v3029, %v3110
  %s3114 = scalar_lea.vmem [#allocation3], 2
  %v3115 = vld [vmem:[%s3114] ss:$8 sm:$0xf]
  %v3116 = vld [vmem:[%s3114] ss:$8 sm:$0xf0]
  %v3117 = vor.u32 %v3115, %v3116
  %v3118 = vpack.c.bf16 %v3117, %v3117
  %s3119 = scalar_lea.vmem %s5, 128
  %v3120 = vld [vmem:[%s3119] sm:$0xf]
  %v3121 = vld [vmem:[%s3119 + $0x4] sm:$0xf]
  %v3122 = vld [vmem:[%s3119 + $0x8] sm:$0xf]
  %v3123 = vld [vmem:[%s3119 + $0xc] sm:$0xf]
  %v3124 = vld [vmem:[%s3119 + $0x10] sm:$0xf]
  %v3125 = vld [vmem:[%s3119 + $0x14] sm:$0xf]
  %v3126 = vld [vmem:[%s3119 + $0x18] sm:$0xf]
  %v3127 = vld [vmem:[%s3119 + $0x1c] sm:$0xf]
  %v3128 = vld [vmem:[%s3119 + $0x20] sm:$0xf]
  %v3129 = vld [vmem:[%s3119 + $0x24] sm:$0xf]
  %v3130 = vld [vmem:[%s3119 + $0x28] sm:$0xf]
  %v3131 = vld [vmem:[%s3119 + $0x2c] sm:$0xf]
  %v3132 = vld [vmem:[%s3119 + $0x30] sm:$0xf]
  %v3133 = vld [vmem:[%s3119 + $0x34] sm:$0xf]
  %v3134 = vld [vmem:[%s3119 + $0x38] sm:$0xf]
  %v3135 = vld [vmem:[%s3119 + $0x3c] sm:$0xf]
  %v3152 = vunpack.c.l.b16 %v3120
  %v3153 = vunpack.c.l.b16 %v3121
  %v3154 = vunpack.c.l.b16 %v3122
  %v3155 = vunpack.c.l.b16 %v3123
  %v3156 = vunpack.c.l.b16 %v3124
  %v3157 = vunpack.c.l.b16 %v3125
  %v3158 = vunpack.c.l.b16 %v3126
  %v3159 = vunpack.c.l.b16 %v3127
  %v3160 = vunpack.c.l.b16 %v3128
  %v3161 = vunpack.c.l.b16 %v3129
  %v3162 = vunpack.c.l.b16 %v3130
  %v3163 = vunpack.c.l.b16 %v3131
  %v3164 = vunpack.c.l.b16 %v3132
  %v3165 = vunpack.c.l.b16 %v3133
  %v3166 = vunpack.c.l.b16 %v3134
  %v3167 = vunpack.c.l.b16 %v3135
  %v3168 = vpack.c.b16 %v3153, %v3152
  %v3169 = vpack.c.b16 %v3155, %v3154
  %v3170 = vpack.c.b16 %v3157, %v3156
  %v3171 = vpack.c.b16 %v3159, %v3158
  %v3172 = vpack.c.b16 %v3161, %v3160
  %v3173 = vpack.c.b16 %v3163, %v3162
  %v3174 = vpack.c.b16 %v3165, %v3164
  %v3175 = vpack.c.b16 %v3167, %v3166
  %3184 = vmatpush.bf16.msra.mxu0 %v3175
  %3185 = vmatpush.bf16.msra.mxu0 %v3174
  %3186 = vmatpush.bf16.msra.mxu0 %v3173
  %3187 = vmatpush.bf16.msra.mxu0 %v3172
  %3188 = vmatpush.bf16.msra.mxu0 %v3171
  %3189 = vmatpush.bf16.msra.mxu0 %v3170
  %3190 = vmatpush.bf16.msra.mxu0 %v3169
  %3191 = vmatpush.bf16.msra.mxu0 %v3168
  %3192 = vmatmul.bf16.gmra.mxu0 %v3118
  %v3193 = vpop.f32.mrf.mxu0
  %v3194 = vadd.f32 0.0, %v3193
  %v3195 = vpop.f32.mrf.mxu0
  %3196 = vdwg.mxu0
  %v3197 = vadd.f32 %v3113, %v3194
  %s3198 = scalar_lea.vmem [#allocation3], 3
  %v3199 = vld [vmem:[%s3198] ss:$8 sm:$0xf]
  %v3200 = vld [vmem:[%s3198] ss:$8 sm:$0xf0]
  %v3201 = vor.u32 %v3199, %v3200
  %v3202 = vpack.c.bf16 %v3201, %v3201
  %s3203 = scalar_lea.vmem %s5, 192
  %v3204 = vld [vmem:[%s3203] sm:$0xf]
  %v3205 = vld [vmem:[%s3203 + $0x4] sm:$0xf]
  %v3206 = vld [vmem:[%s3203 + $0x8] sm:$0xf]
  %v3207 = vld [vmem:[%s3203 + $0xc] sm:$0xf]
  %v3208 = vld [vmem:[%s3203 + $0x10] sm:$0xf]
  %v3209 = vld [vmem:[%s3203 + $0x14] sm:$0xf]
  %v3210 = vld [vmem:[%s3203 + $0x18] sm:$0xf]
  %v3211 = vld [vmem:[%s3203 + $0x1c] sm:$0xf]
  %v3212 = vld [vmem:[%s3203 + $0x20] sm:$0xf]
  %v3213 = vld [vmem:[%s3203 + $0x24] sm:$0xf]
  %v3214 = vld [vmem:[%s3203 + $0x28] sm:$0xf]
  %v3215 = vld [vmem:[%s3203 + $0x2c] sm:$0xf]
  %v3216 = vld [vmem:[%s3203 + $0x30] sm:$0xf]
  %v3217 = vld [vmem:[%s3203 + $0x34] sm:$0xf]
  %v3218 = vld [vmem:[%s3203 + $0x38] sm:$0xf]
  %v3219 = vld [vmem:[%s3203 + $0x3c] sm:$0xf]
  %v3236 = vunpack.c.l.b16 %v3204
  %v3237 = vunpack.c.l.b16 %v3205
  %v3238 = vunpack.c.l.b16 %v3206
  %v3239 = vunpack.c.l.b16 %v3207
  %v3240 = vunpack.c.l.b16 %v3208
  %v3241 = vunpack.c.l.b16 %v3209
  %v3242 = vunpack.c.l.b16 %v3210
  %v3243 = vunpack.c.l.b16 %v3211
  %v3244 = vunpack.c.l.b16 %v3212
  %v3245 = vunpack.c.l.b16 %v3213
  %v3246 = vunpack.c.l.b16 %v3214
  %v3247 = vunpack.c.l.b16 %v3215
  %v3248 = vunpack.c.l.b16 %v3216
  %v3249 = vunpack.c.l.b16 %v3217
  %v3250 = vunpack.c.l.b16 %v3218
  %v3251 = vunpack.c.l.b16 %v3219
  %v3252 = vpack.c.b16 %v3237, %v3236
  %v3253 = vpack.c.b16 %v3239, %v3238
  %v3254 = vpack.c.b16 %v3241, %v3240
  %v3255 = vpack.c.b16 %v3243, %v3242
  %v3256 = vpack.c.b16 %v3245, %v3244
  %v3257 = vpack.c.b16 %v3247, %v3246
  %v3258 = vpack.c.b16 %v3249, %v3248
  %v3259 = vpack.c.b16 %v3251, %v3250
  %3268 = vmatpush.bf16.msra.mxu0 %v3259
  %3269 = vmatpush.bf16.msra.mxu0 %v3258
  %3270 = vmatpush.bf16.msra.mxu0 %v3257
  %3271 = vmatpush.bf16.msra.mxu0 %v3256
  %3272 = vmatpush.bf16.msra.mxu0 %v3255
  %3273 = vmatpush.bf16.msra.mxu0 %v3254
  %3274 = vmatpush.bf16.msra.mxu0 %v3253
  %3275 = vmatpush.bf16.msra.mxu0 %v3252
  %3276 = vmatmul.bf16.gmra.mxu0 %v3202
  %v3277 = vpop.f32.mrf.mxu0
  %v3278 = vadd.f32 0.0, %v3277
  %v3279 = vpop.f32.mrf.mxu0
  %3280 = vdwg.mxu0
  %v3281 = vadd.f32 %v3197, %v3278
  %v3282 = vmax.f32 %v3281, 0.0
  %v3283 = vld [vmem:[%s7] sm:$0xff]
  %v3284 = vld [vmem:[%s7 + $0x8] sm:$0xff]
  %v3285 = vld [vmem:[%s7 + $0x10] sm:$0xff]
  %v3286 = vld [vmem:[%s7 + $0x18] sm:$0xff]
  %v3287 = vld [vmem:[%s7 + $0x20] sm:$0xff]
  %v3288 = vld [vmem:[%s7 + $0x28] sm:$0xff]
  %v3289 = vld [vmem:[%s7 + $0x30] sm:$0x3]
  %v3290 = vld [vmem:[%s8] sm:$0x1]
  %v3292 = vperm.slane %v3290, 0
  %vm3294 = vcmask 408576
  %v3296 = vsel %vm3294, %v3282, 0
  %vm3298 = vcmask 1041408
  %v3300 = vsel %vm3298, %v3289, 0
  %3302 = vmatpush.msra.mxu0 0.0
  %3303 = vmatpush.msra.mxu0 0.0
  %3304 = vmatpush.msra.mxu0 0.0
  %3305 = vmatpush.msra.mxu0 0.0
  %3306 = vmatpush.msra.mxu0 0.0
  %3307 = vmatpush.msra.mxu0 0.0
  %3308 = vmatpush.msra.mxu0 0.0
  %3309 = vmatpush.msra.mxu0 0.0
  %3310 = vmatpush.msra.mxu0 0.0
  %3311 = vmatpush.msra.mxu0 %v3300
  %3312 = vmatpush.msra.mxu0 %v3288
  %3313 = vmatpush.msra.mxu0 %v3287
  %3314 = vmatpush.msra.mxu0 %v3286
  %3315 = vmatpush.msra.mxu0 %v3285
  %3316 = vmatpush.msra.mxu0 %v3284
  %3317 = vmatpush.msra.mxu0 %v3283
  %3318 = vmatmul.f32.gmra.mxu0 %v3296
  %v3319 = vpop.f32.mrf.mxu0
  %v3320 = vadd.f32 %v3292, %v3319
  %3321 = vdwg.mxu0
  %vm3322 = vcmask 80896
  %v3323 = vsel %vm3322, %v3320, -inf
  %3324 = vmax.xlane.f32.xlu0 %v3323
  %v3325 = vpop.xlane.xlu0 %3324
  %v3326 = vsub.f32 %v3320, %v3325
  %v3327 = vmul.f32 %v3326, 1.442695
  %v3328 = vpow.pop %v3327
  %v3329 = vsel %vm3322, %v3328, 0.0
  %3330 = vadd.xlane.f32.xlu0 %v3329
  %v3331 = vpop.xlane.xlu0 %3330
  %v3332 = vlog2.pop %v3331
  %v3333 = vmul.f32 %v3332, 0.6931472
  %v3334 = vsub.f32 %v3326, %v3333
  %3335 = vst.msk [vmem:[%s9] sm:$0xff] %vm3322, %v3334
  // Predicated region
  $region38: #{my_network_forward.1} parent=0 // pred_check
    _
  $region39: #{my_network_forward.1} parent=0 // pred_check_branch
    %3337 = sbr.rel (0) target = $region41
  $region40: #{my_network_forward.1} parent=0 // pred_region
    _
  $region41: #{my_network_forward.1} parent=0 // pred_fallthru
    _
  // Predicated region
  $region42: #{my_network_forward.1} parent=0 // pred_check
    _
  $region43: #{my_network_forward.1} parent=0 // pred_check_branch
    %3339 = sbr.rel (0) target = $region45
  $region44: #{my_network_forward.1} parent=0 // pred_region
    _
  $region45: #{my_network_forward.1} parent=0 // pred_fallthru
    _

</llo_original>
